<compile_context>
chip_gen: v7x
topology: tpu7x:2x2x1
jax: 0.10.0
libtpu: 0.0.40
codegen_flags: <defaults>
</compile_context>

<pallas_src>
import functools

import jax
import jax.numpy as jnp
from jax.experimental import pallas as pl
from jax.experimental.pallas import tpu as pltpu

LANES = 128  # pad every channel / feature dim to one full lane tile


# ----------------------------------------------------------------------------
# Pallas kernels
# ----------------------------------------------------------------------------
def _conv_block_kernel(*refs, n_layers, c_main, reduction):
    """One full conv block: n_layers k=2 convs + skip + concat + reduction."""
    x_ref, keep_ref = refs[0], refs[1]
    idx = 2
    layer_refs = refs[idx: idx + 3 * n_layers]
    idx += 3 * n_layers
    ws_ref, bs_ref = refs[idx], refs[idx + 1]
    idx += 2
    if reduction == "conv":
        wre_ref, wro_ref, brr_ref = refs[idx: idx + 3]
        idx += 3
    out_ref = refs[idx]
    y_scratch = refs[idx + 1]

    M = x_ref.shape[0]                       # B * L rows, 128 lanes
    x = x_ref[...]                           # f32, zero beyond real channels
    keep = keep_ref[...]                     # (M, 1) f32: 0 at each batch element's last position

    # main path: k=2, stride=1, right-zero "same" pad convs + ReLU
    h = x
    for i in range(n_layers):
        w0 = layer_refs[3 * i][...]          # (128, 128) bf16, rows = current position
        w1 = layer_refs[3 * i + 1][...]      # (128, 128) bf16, rows = next position
        b = layer_refs[3 * i + 2][...]       # (1, 128) f32
        # shifted activations: h_next[t] = h[t+1], zero at sequence boundary
        h_next = pltpu.roll(h, M - 1, axis=0) * keep
        acc = jnp.dot(h.astype(jnp.bfloat16), w0, preferred_element_type=jnp.float32)
        acc = acc + jnp.dot(h_next.astype(jnp.bfloat16), w1,
                            preferred_element_type=jnp.float32)
        h = jnp.maximum(acc + b, 0.0)

    # skip path: 1x1 conv + ReLU on the block input
    skip = jnp.dot(x.astype(jnp.bfloat16), ws_ref[...],
                   preferred_element_type=jnp.float32) + bs_ref[...]
    skip = jnp.maximum(skip, 0.0)

    # channel concat (main || skip): roll skip's real lanes up to [c_main, ...);
    # padding lanes of both are zero, so a plain add implements the concat.
    y_scratch[...] = h + pltpu.roll(skip, c_main, axis=1)

    # length-halving reduction: strided even/odd reads straight from VMEM.
    half = M // 2
    y_even = y_scratch[pl.ds(0, half, stride=2), :]
    y_odd = y_scratch[pl.ds(1, half, stride=2), :]
    if reduction == "conv":                  # k=2, stride=2 conv + ReLU
        r = jnp.dot(y_even.astype(jnp.bfloat16), wre_ref[...],
                    preferred_element_type=jnp.float32)
        r = r + jnp.dot(y_odd.astype(jnp.bfloat16), wro_ref[...],
                        preferred_element_type=jnp.float32)
        out = jnp.maximum(r + brr_ref[...], 0.0)
    elif reduction == "max_pool":
        out = jnp.maximum(y_even, y_odd)
    else:                                    # avg_pool
        out = (y_even + y_odd) * 0.5
    out_ref[...] = out


def _mlp_kernel(x_ref, *refs, acts):
    """Fused seq-encoder + classifier: all Linear(+act) layers in one kernel."""
    n = len(acts)
    out_ref = refs[2 * n]
    h = x_ref[...]                           # f32
    for i, act in enumerate(acts):
        w = refs[2 * i][...]                 # bf16
        b = refs[2 * i + 1][...]             # (1, 128) f32
        y = jnp.dot(h.astype(jnp.bfloat16), w,
                    preferred_element_type=jnp.float32) + b
        if act == "relu":
            y = jnp.maximum(y, 0.0)
        elif act == "sigmoid":
            y = 1.0 / (1.0 + jnp.exp(-y))
        h = y
    out_ref[...] = h


# ----------------------------------------------------------------------------
# pallas_call wrappers
# ----------------------------------------------------------------------------
def _conv_block(x, blk):
    """x: (B*L, 128) f32 -> (B*L//2, 128) f32, one fused kernel."""
    M = x.shape[0]
    half = M // 2
    operands = [x, blk["keep"]]
    for (w0, w1, b) in blk["layers"]:
        operands += [w0, w1, b]
    operands += [blk["skip_w"], blk["skip_b"]]
    if blk["reduction"] == "conv":
        operands += list(blk["reduce"])
    kernel = functools.partial(
        _conv_block_kernel,
        n_layers=len(blk["layers"]),
        c_main=blk["c_main"],
        reduction=blk["reduction"],
    )
    return pl.pallas_call(
        kernel,
        out_shape=jax.ShapeDtypeStruct((half, LANES), jnp.float32),
        scratch_shapes=[pltpu.VMEM((M, LANES), jnp.float32)],
    )(*operands)


def _mlp(x, mlp):
    """x: (B, F) f32 -> (B, 128) f32 (real outputs in the leading lanes)."""
    operands = [x]
    for (w, b) in mlp["layers"]:
        operands += [w, b]
    kernel = functools.partial(_mlp_kernel, acts=tuple(mlp["acts"]))
    return pl.pallas_call(
        kernel,
        out_shape=jax.ShapeDtypeStruct((x.shape[0], LANES), jnp.float32),
    )(*operands)


def cnn_dense_assembly_forward(x_ncl, params):
    """x_ncl: (B, C, L) like the PyTorch module; returns (B, n_classes)."""
    B, Cin, L = x_ncl.shape
    # NCL -> NLC rows (tiny, one-time), pad channels to 128 lanes.
    x = jnp.transpose(x_ncl, (0, 2, 1)).reshape(B * L, Cin).astype(jnp.float32)
    x = jnp.pad(x, ((0, 0), (0, LANES - Cin)))
    for blk in params["blocks"]:
        x = _conv_block(x, blk)
    # (B*Lf, 128) -> (B, Lf*128) is a contiguous (free) reshape; the torch
    # (B, C, L) flatten order is already folded into the first MLP weight.
    x = x.reshape(B, params["final_len"] * LANES)
    out = _mlp(x, params["mlp"])
    return out[:, : params["n_classes"]]


# ----------------------------------------------------------------------------
# Parameter construction (deterministic); weights are padded / split / bf16-
# packed for the kernels at build time.
# ----------------------------------------------------------------------------
def _dense_init(key, fan_in, fan_out):
    kw, kb = jax.random.split(key)
    scale = 1.0 / jnp.sqrt(jnp.float32(fan_in))
    w = jax.random.normal(kw, (fan_in, fan_out), jnp.float32) * scale
    b = jax.random.normal(kb, (fan_out,), jnp.float32) * 0.01
    return w, b


def _pad_weight(w, rows=LANES, cols=LANES):
    r, c = w.shape
    out = jnp.zeros((rows, cols), jnp.float32).at[:r, :c].set(w)
    return out.astype(jnp.bfloat16)


def _pad_bias(b, cols=LANES):
    return jnp.zeros((1, cols), jnp.float32).at[0, : b.shape[0]].set(b)


def build_params(key, *, batch, input_len, n_input_channels, n_blocks,
                 n_layers_per_block, n_filters_per_block, n_filters_per_skip,
                 reduction_strat, n_seq_units, n_embedding_dims, n_cls_units,
                 n_classes):
    assert input_len % (2 ** n_blocks) == 0, "input_len must be divisible by 2**n_blocks"
    assert n_input_channels <= LANES

    blocks = []
    c_in = n_input_channels
    L = input_len
    for blk in range(n_blocks):
        c_main = n_filters_per_block[blk]
        c_skip = n_filters_per_skip[blk]
        assert c_main + c_skip <= LANES
        layers = []
        c = c_in
        for _ in range(n_layers_per_block[blk]):
            key, sub = jax.random.split(key)
            w, b = _dense_init(sub, 2 * c, c_main)      # k=2 conv as (2*Cin -> Cout)
            layers.append((_pad_weight(w[:c]), _pad_weight(w[c:]), _pad_bias(b)))
            c = c_main
        key, sub = jax.random.split(key)
        ws, bs = _dense_init(sub, c_in, c_skip)          # 1x1 skip conv
        c_out = c_main + c_skip
        red = None
        if reduction_strat == "conv":
            key, sub = jax.random.split(key)
            wr, br = _dense_init(sub, 2 * c_out, c_out)  # k=2, stride=2 conv
            red = (_pad_weight(wr[:c_out]), _pad_weight(wr[c_out:]), _pad_bias(br))
        M = batch * L
        keep = (jnp.arange(M) % L != (L - 1)).astype(jnp.float32).reshape(M, 1)
        blocks.append(dict(layers=layers, skip_w=_pad_weight(ws), skip_b=_pad_bias(bs),
                           reduce=red, keep=keep, c_main=c_main,
                           reduction=reduction_strat))
        c_in = c_out
        L //= 2

    final_len = L
    c_final = c_in
    feat = final_len * c_final

    # MLP layer plan: seq-encoder hiddens (ReLU) -> embedding (linear) ->
    # classifier hiddens (ReLU) -> classes (sigmoid).
    plan = []
    fan = feat
    for u in n_seq_units:
        plan.append((fan, u, "relu")); fan = u
    plan.append((fan, n_embedding_dims, "none")); fan = n_embedding_dims
    for u in n_cls_units:
        plan.append((fan, u, "relu")); fan = u
    plan.append((fan, n_classes, "sigmoid"))
    assert all(d[1] <= LANES for d in plan)

    mlp_layers, acts = [], []
    for li, (fi, fo, act) in enumerate(plan):
        key, sub = jax.random.split(key)
        w, b = _dense_init(sub, fi, fo)
        if li == 0:
            # Fold the torch (B, C, L) -> (B, C*L) flatten (rows ordered
            # c*final_len + l) into a (final_len*128, 128) weight consuming
            # the lane-padded NLC conv output directly.
            w_clu = w.reshape(c_final, final_len, fo)                    # (c, l, u)
            wp = jnp.zeros((final_len, LANES, LANES), jnp.float32)
            wp = wp.at[:, :c_final, :fo].set(jnp.transpose(w_clu, (1, 0, 2)))
            mlp_layers.append((wp.reshape(final_len * LANES, LANES).astype(jnp.bfloat16),
                               _pad_bias(b)))
        else:
            mlp_layers.append((_pad_weight(w), _pad_bias(b)))
        acts.append(act)

    return dict(blocks=blocks, mlp=dict(layers=mlp_layers, acts=acts),
                final_len=final_len, n_classes=n_classes)


# ----------------------------------------------------------------------------
# Demo
# ----------------------------------------------------------------------------
if __name__ == "__main__":
    batch = 2
    input_len = 16
    n_input_channels = 4
    n_blocks = 2
    n_layers_per_block = [2, 2]
    n_filters_per_block = [8, 16]
    n_filters_per_skip = [4, 8]
    reduction_strat = "conv"            # 'conv' | 'max_pool' | 'avg_pool'

    n_seq_encoder_layers_units = [64, 48]
    n_embedding_dims = 32
    n_classifier_layers_units = [32, 16]
    n_classes = 5

    key = jax.random.PRNGKey(0)
    key, xkey = jax.random.split(key)
    x = jax.random.normal(xkey, (batch, n_input_channels, input_len), jnp.float32)

    params = build_params(
        key,
        batch=batch, input_len=input_len, n_input_channels=n_input_channels,
        n_blocks=n_blocks, n_layers_per_block=n_layers_per_block,
        n_filters_per_block=n_filters_per_block,
        n_filters_per_skip=n_filters_per_skip,
        reduction_strat=reduction_strat,
        n_seq_units=n_seq_encoder_layers_units,
        n_embedding_dims=n_embedding_dims,
        n_cls_units=n_classifier_layers_units,
        n_classes=n_classes,
    )

    fwd = jax.jit(lambda inp: cnn_dense_assembly_forward(inp, params))
    out = jax.block_until_ready(fwd(x))
    assert out.shape == (batch, n_classes), out.shape
    assert bool(jnp.all(jnp.isfinite(out)))
    print("KERNEL_OK")
</pallas_src>

<mosaic_0001>
module attributes {stable_mosaic.version = 11 : i64} {
  func.func @_conv_block_kernel(%arg0: memref<32x128xf32, #tpu.memory_space<vmem>>, %arg1: memref<32x1xf32, #tpu.memory_space<vmem>>, %arg2: memref<128x128xbf16, #tpu.memory_space<vmem>>, %arg3: memref<128x128xbf16, #tpu.memory_space<vmem>>, %arg4: memref<1x128xf32, #tpu.memory_space<vmem>>, %arg5: memref<128x128xbf16, #tpu.memory_space<vmem>>, %arg6: memref<128x128xbf16, #tpu.memory_space<vmem>>, %arg7: memref<1x128xf32, #tpu.memory_space<vmem>>, %arg8: memref<128x128xbf16, #tpu.memory_space<vmem>>, %arg9: memref<1x128xf32, #tpu.memory_space<vmem>>, %arg10: memref<128x128xbf16, #tpu.memory_space<vmem>>, %arg11: memref<128x128xbf16, #tpu.memory_space<vmem>>, %arg12: memref<1x128xf32, #tpu.memory_space<vmem>>, %arg13: memref<16x128xf32, #tpu.memory_space<vmem>>, %arg14: memref<32x128xf32, #tpu.memory_space<vmem>>) attributes {dimension_semantics = [], scalar_prefetch = 0 : i64, scratch_operands = 1 : i64, tpu.core_type = #tpu.core_type<tc>} {
    %c0 = arith.constant 0 : index
    %c0_0 = arith.constant 0 : index
    %0 = vector.load %arg0[%c0, %c0_0] : memref<32x128xf32, #tpu.memory_space<vmem>>, vector<32x128xf32>
    %c0_1 = arith.constant 0 : index
    %c0_2 = arith.constant 0 : index
    %1 = vector.load %arg1[%c0_1, %c0_2] : memref<32x1xf32, #tpu.memory_space<vmem>>, vector<32x1xf32>
    %c0_3 = arith.constant 0 : index
    %c0_4 = arith.constant 0 : index
    %2 = vector.load %arg2[%c0_3, %c0_4] : memref<128x128xbf16, #tpu.memory_space<vmem>>, vector<128x128xbf16>
    %c0_5 = arith.constant 0 : index
    %c0_6 = arith.constant 0 : index
    %3 = vector.load %arg3[%c0_5, %c0_6] : memref<128x128xbf16, #tpu.memory_space<vmem>>, vector<128x128xbf16>
    %c0_7 = arith.constant 0 : index
    %c0_8 = arith.constant 0 : index
    %4 = vector.load %arg4[%c0_7, %c0_8] : memref<1x128xf32, #tpu.memory_space<vmem>>, vector<1x128xf32>
    %c31_i32 = arith.constant 31 : i32
    %5 = tpu.dynamic_rotate %0 by %c31_i32 dim 0 : vector<32x128xf32>, i32 -> vector<32x128xf32>
    %6 = vector.broadcast %1 : vector<32x1xf32> to vector<32x128xf32>
    %7 = arith.mulf %5, %6 : vector<32x128xf32>
    %8 = arith.truncf %0 : vector<32x128xf32> to vector<32x128xbf16>
    %cst = arith.constant dense<0.000000e+00> : vector<32x128xf32>
    %9 = tpu.matmul %8, %2, %cst {dimension_numbers = #tpu.dot_dimension_numbers<[1], [0], [0], [1], [0, 0, 1, 1], [], []>} : vector<32x128xbf16>, vector<128x128xbf16>, vector<32x128xf32> -> vector<32x128xf32>
    %10 = arith.truncf %7 : vector<32x128xf32> to vector<32x128xbf16>
    %cst_9 = arith.constant dense<0.000000e+00> : vector<32x128xf32>
    %11 = tpu.matmul %10, %3, %cst_9 {dimension_numbers = #tpu.dot_dimension_numbers<[1], [0], [0], [1], [0, 0, 1, 1], [], []>} : vector<32x128xbf16>, vector<128x128xbf16>, vector<32x128xf32> -> vector<32x128xf32>
    %12 = arith.addf %9, %11 : vector<32x128xf32>
    %13 = vector.broadcast %4 : vector<1x128xf32> to vector<32x128xf32>
    %14 = arith.addf %12, %13 : vector<32x128xf32>
    %cst_10 = arith.constant 0.000000e+00 : f32
    %15 = vector.broadcast %cst_10 : f32 to vector<32x128xf32>
    %16 = arith.maximumf %14, %15 : vector<32x128xf32>
    %c0_11 = arith.constant 0 : index
    %c0_12 = arith.constant 0 : index
    %17 = vector.load %arg5[%c0_11, %c0_12] : memref<128x128xbf16, #tpu.memory_space<vmem>>, vector<128x128xbf16>
    %c0_13 = arith.constant 0 : index
    %c0_14 = arith.constant 0 : index
    %18 = vector.load %arg6[%c0_13, %c0_14] : memref<128x128xbf16, #tpu.memory_space<vmem>>, vector<128x128xbf16>
    %c0_15 = arith.constant 0 : index
    %c0_16 = arith.constant 0 : index
    %19 = vector.load %arg7[%c0_15, %c0_16] : memref<1x128xf32, #tpu.memory_space<vmem>>, vector<1x128xf32>
    %c31_i32_17 = arith.constant 31 : i32
    %20 = tpu.dynamic_rotate %16 by %c31_i32_17 dim 0 : vector<32x128xf32>, i32 -> vector<32x128xf32>
    %21 = vector.broadcast %1 : vector<32x1xf32> to vector<32x128xf32>
    %22 = arith.mulf %20, %21 : vector<32x128xf32>
    %23 = arith.truncf %16 : vector<32x128xf32> to vector<32x128xbf16>
    %cst_18 = arith.constant dense<0.000000e+00> : vector<32x128xf32>
    %24 = tpu.matmul %23, %17, %cst_18 {dimension_numbers = #tpu.dot_dimension_numbers<[1], [0], [0], [1], [0, 0, 1, 1], [], []>} : vector<32x128xbf16>, vector<128x128xbf16>, vector<32x128xf32> -> vector<32x128xf32>
    %25 = arith.truncf %22 : vector<32x128xf32> to vector<32x128xbf16>
    %cst_19 = arith.constant dense<0.000000e+00> : vector<32x128xf32>
    %26 = tpu.matmul %25, %18, %cst_19 {dimension_numbers = #tpu.dot_dimension_numbers<[1], [0], [0], [1], [0, 0, 1, 1], [], []>} : vector<32x128xbf16>, vector<128x128xbf16>, vector<32x128xf32> -> vector<32x128xf32>
    %27 = arith.addf %24, %26 : vector<32x128xf32>
    %28 = vector.broadcast %19 : vector<1x128xf32> to vector<32x128xf32>
    %29 = arith.addf %27, %28 : vector<32x128xf32>
    %cst_20 = arith.constant 0.000000e+00 : f32
    %30 = vector.broadcast %cst_20 : f32 to vector<32x128xf32>
    %31 = arith.maximumf %29, %30 : vector<32x128xf32>
    %32 = arith.truncf %0 : vector<32x128xf32> to vector<32x128xbf16>
    %c0_21 = arith.constant 0 : index
    %c0_22 = arith.constant 0 : index
    %33 = vector.load %arg8[%c0_21, %c0_22] : memref<128x128xbf16, #tpu.memory_space<vmem>>, vector<128x128xbf16>
    %cst_23 = arith.constant dense<0.000000e+00> : vector<32x128xf32>
    %34 = tpu.matmul %32, %33, %cst_23 {dimension_numbers = #tpu.dot_dimension_numbers<[1], [0], [0], [1], [0, 0, 1, 1], [], []>} : vector<32x128xbf16>, vector<128x128xbf16>, vector<32x128xf32> -> vector<32x128xf32>
    %c0_24 = arith.constant 0 : index
    %c0_25 = arith.constant 0 : index
    %35 = vector.load %arg9[%c0_24, %c0_25] : memref<1x128xf32, #tpu.memory_space<vmem>>, vector<1x128xf32>
    %36 = vector.broadcast %35 : vector<1x128xf32> to vector<32x128xf32>
    %37 = arith.addf %34, %36 : vector<32x128xf32>
    %cst_26 = arith.constant 0.000000e+00 : f32
    %38 = vector.broadcast %cst_26 : f32 to vector<32x128xf32>
    %39 = arith.maximumf %37, %38 : vector<32x128xf32>
    %c8_i32 = arith.constant 8 : i32
    %40 = tpu.dynamic_rotate %39 by %c8_i32 dim 1 : vector<32x128xf32>, i32 -> vector<32x128xf32>
    %41 = arith.addf %31, %40 : vector<32x128xf32>
    %c0_27 = arith.constant 0 : index
    %c0_28 = arith.constant 0 : index
    %42 = vector.load %arg14[%c0_27, %c0_28] : memref<32x128xf32, #tpu.memory_space<vmem>>, vector<32x128xf32>
    tpu.vector_store %arg14[%c0_27, %c0_28], %41 {strides = array<i32>} : memref<32x128xf32, #tpu.memory_space<vmem>>, vector<32x128xf32>,
    %c0_29 = arith.constant 0 : index
    %c0_30 = arith.constant 0 : index
    %43 = tpu.strided_load %arg14[%c0_29, %c0_30] {strides = array<i32: 2, 1>} : memref<32x128xf32, #tpu.memory_space<vmem>>, vector<16x128xf32>
    %c1 = arith.constant 1 : index
    %c0_31 = arith.constant 0 : index
    %44 = tpu.strided_load %arg14[%c1, %c0_31] {strides = array<i32: 2, 1>} : memref<32x128xf32, #tpu.memory_space<vmem>>, vector<16x128xf32>
    %45 = arith.truncf %43 : vector<16x128xf32> to vector<16x128xbf16>
    %c0_32 = arith.constant 0 : index
    %c0_33 = arith.constant 0 : index
    %46 = vector.load %arg10[%c0_32, %c0_33] : memref<128x128xbf16, #tpu.memory_space<vmem>>, vector<128x128xbf16>
    %cst_34 = arith.constant dense<0.000000e+00> : vector<16x128xf32>
    %47 = tpu.matmul %45, %46, %cst_34 {dimension_numbers = #tpu.dot_dimension_numbers<[1], [0], [0], [1], [0, 0, 1, 1], [], []>} : vector<16x128xbf16>, vector<128x128xbf16>, vector<16x128xf32> -> vector<16x128xf32>
    %48 = arith.truncf %44 : vector<16x128xf32> to vector<16x128xbf16>
    %c0_35 = arith.constant 0 : index
    %c0_36 = arith.constant 0 : index
    %49 = vector.load %arg11[%c0_35, %c0_36] : memref<128x128xbf16, #tpu.memory_space<vmem>>, vector<128x128xbf16>
    %cst_37 = arith.constant dense<0.000000e+00> : vector<16x128xf32>
    %50 = tpu.matmul %48, %49, %cst_37 {dimension_numbers = #tpu.dot_dimension_numbers<[1], [0], [0], [1], [0, 0, 1, 1], [], []>} : vector<16x128xbf16>, vector<128x128xbf16>, vector<16x128xf32> -> vector<16x128xf32>
    %51 = arith.addf %47, %50 : vector<16x128xf32>
    %c0_38 = arith.constant 0 : index
    %c0_39 = arith.constant 0 : index
    %52 = vector.load %arg12[%c0_38, %c0_39] : memref<1x128xf32, #tpu.memory_space<vmem>>, vector<1x128xf32>
    %53 = vector.broadcast %52 : vector<1x128xf32> to vector<16x128xf32>
    %54 = arith.addf %51, %53 : vector<16x128xf32>
    %cst_40 = arith.constant 0.000000e+00 : f32
    %55 = vector.broadcast %cst_40 : f32 to vector<16x128xf32>
    %56 = arith.maximumf %54, %55 : vector<16x128xf32>
    %c0_41 = arith.constant 0 : index
    %c0_42 = arith.constant 0 : index
    %57 = vector.load %arg13[%c0_41, %c0_42] : memref<16x128xf32, #tpu.memory_space<vmem>>, vector<16x128xf32>
    tpu.vector_store %arg13[%c0_41, %c0_42], %56 {strides = array<i32>} : memref<16x128xf32, #tpu.memory_space<vmem>>, vector<16x128xf32>,
    return
  }
}

module attributes {stable_mosaic.version = 11 : i64} {
  func.func @_conv_block_kernel(%arg0: memref<16x128xf32, #tpu.memory_space<vmem>>, %arg1: memref<16x1xf32, #tpu.memory_space<vmem>>, %arg2: memref<128x128xbf16, #tpu.memory_space<vmem>>, %arg3: memref<128x128xbf16, #tpu.memory_space<vmem>>, %arg4: memref<1x128xf32, #tpu.memory_space<vmem>>, %arg5: memref<128x128xbf16, #tpu.memory_space<vmem>>, %arg6: memref<128x128xbf16, #tpu.memory_space<vmem>>, %arg7: memref<1x128xf32, #tpu.memory_space<vmem>>, %arg8: memref<128x128xbf16, #tpu.memory_space<vmem>>, %arg9: memref<1x128xf32, #tpu.memory_space<vmem>>, %arg10: memref<128x128xbf16, #tpu.memory_space<vmem>>, %arg11: memref<128x128xbf16, #tpu.memory_space<vmem>>, %arg12: memref<1x128xf32, #tpu.memory_space<vmem>>, %arg13: memref<8x128xf32, #tpu.memory_space<vmem>>, %arg14: memref<16x128xf32, #tpu.memory_space<vmem>>) attributes {dimension_semantics = [], scalar_prefetch = 0 : i64, scratch_operands = 1 : i64, tpu.core_type = #tpu.core_type<tc>} {
    %c0 = arith.constant 0 : index
    %c0_0 = arith.constant 0 : index
    %0 = vector.load %arg0[%c0, %c0_0] : memref<16x128xf32, #tpu.memory_space<vmem>>, vector<16x128xf32>
    %c0_1 = arith.constant 0 : index
    %c0_2 = arith.constant 0 : index
    %1 = vector.load %arg1[%c0_1, %c0_2] : memref<16x1xf32, #tpu.memory_space<vmem>>, vector<16x1xf32>
    %c0_3 = arith.constant 0 : index
    %c0_4 = arith.constant 0 : index
    %2 = vector.load %arg2[%c0_3, %c0_4] : memref<128x128xbf16, #tpu.memory_space<vmem>>, vector<128x128xbf16>
    %c0_5 = arith.constant 0 : index
    %c0_6 = arith.constant 0 : index
    %3 = vector.load %arg3[%c0_5, %c0_6] : memref<128x128xbf16, #tpu.memory_space<vmem>>, vector<128x128xbf16>
    %c0_7 = arith.constant 0 : index
    %c0_8 = arith.constant 0 : index
    %4 = vector.load %arg4[%c0_7, %c0_8] : memref<1x128xf32, #tpu.memory_space<vmem>>, vector<1x128xf32>
    %c15_i32 = arith.constant 15 : i32
    %5 = tpu.dynamic_rotate %0 by %c15_i32 dim 0 : vector<16x128xf32>, i32 -> vector<16x128xf32>
    %6 = vector.broadcast %1 : vector<16x1xf32> to vector<16x128xf32>
    %7 = arith.mulf %5, %6 : vector<16x128xf32>
    %8 = arith.truncf %0 : vector<16x128xf32> to vector<16x128xbf16>
    %cst = arith.constant dense<0.000000e+00> : vector<16x128xf32>
    %9 = tpu.matmul %8, %2, %cst {dimension_numbers = #tpu.dot_dimension_numbers<[1], [0], [0], [1], [0, 0, 1, 1], [], []>} : vector<16x128xbf16>, vector<128x128xbf16>, vector<16x128xf32> -> vector<16x128xf32>
    %10 = arith.truncf %7 : vector<16x128xf32> to vector<16x128xbf16>
    %cst_9 = arith.constant dense<0.000000e+00> : vector<16x128xf32>
    %11 = tpu.matmul %10, %3, %cst_9 {dimension_numbers = #tpu.dot_dimension_numbers<[1], [0], [0], [1], [0, 0, 1, 1], [], []>} : vector<16x128xbf16>, vector<128x128xbf16>, vector<16x128xf32> -> vector<16x128xf32>
    %12 = arith.addf %9, %11 : vector<16x128xf32>
    %13 = vector.broadcast %4 : vector<1x128xf32> to vector<16x128xf32>
    %14 = arith.addf %12, %13 : vector<16x128xf32>
    %cst_10 = arith.constant 0.000000e+00 : f32
    %15 = vector.broadcast %cst_10 : f32 to vector<16x128xf32>
    %16 = arith.maximumf %14, %15 : vector<16x128xf32>
    %c0_11 = arith.constant 0 : index
    %c0_12 = arith.constant 0 : index
    %17 = vector.load %arg5[%c0_11, %c0_12] : memref<128x128xbf16, #tpu.memory_space<vmem>>, vector<128x128xbf16>
    %c0_13 = arith.constant 0 : index
    %c0_14 = arith.constant 0 : index
    %18 = vector.load %arg6[%c0_13, %c0_14] : memref<128x128xbf16, #tpu.memory_space<vmem>>, vector<128x128xbf16>
    %c0_15 = arith.constant 0 : index
    %c0_16 = arith.constant 0 : index
    %19 = vector.load %arg7[%c0_15, %c0_16] : memref<1x128xf32, #tpu.memory_space<vmem>>, vector<1x128xf32>
    %c15_i32_17 = arith.constant 15 : i32
    %20 = tpu.dynamic_rotate %16 by %c15_i32_17 dim 0 : vector<16x128xf32>, i32 -> vector<16x128xf32>
    %21 = vector.broadcast %1 : vector<16x1xf32> to vector<16x128xf32>
    %22 = arith.mulf %20, %21 : vector<16x128xf32>
    %23 = arith.truncf %16 : vector<16x128xf32> to vector<16x128xbf16>
    %cst_18 = arith.constant dense<0.000000e+00> : vector<16x128xf32>
    %24 = tpu.matmul %23, %17, %cst_18 {dimension_numbers = #tpu.dot_dimension_numbers<[1], [0], [0], [1], [0, 0, 1, 1], [], []>} : vector<16x128xbf16>, vector<128x128xbf16>, vector<16x128xf32> -> vector<16x128xf32>
    %25 = arith.truncf %22 : vector<16x128xf32> to vector<16x128xbf16>
    %cst_19 = arith.constant dense<0.000000e+00> : vector<16x128xf32>
    %26 = tpu.matmul %25, %18, %cst_19 {dimension_numbers = #tpu.dot_dimension_numbers<[1], [0], [0], [1], [0, 0, 1, 1], [], []>} : vector<16x128xbf16>, vector<128x128xbf16>, vector<16x128xf32> -> vector<16x128xf32>
    %27 = arith.addf %24, %26 : vector<16x128xf32>
    %28 = vector.broadcast %19 : vector<1x128xf32> to vector<16x128xf32>
    %29 = arith.addf %27, %28 : vector<16x128xf32>
    %cst_20 = arith.constant 0.000000e+00 : f32
    %30 = vector.broadcast %cst_20 : f32 to vector<16x128xf32>
    %31 = arith.maximumf %29, %30 : vector<16x128xf32>
    %32 = arith.truncf %0 : vector<16x128xf32> to vector<16x128xbf16>
    %c0_21 = arith.constant 0 : index
    %c0_22 = arith.constant 0 : index
    %33 = vector.load %arg8[%c0_21, %c0_22] : memref<128x128xbf16, #tpu.memory_space<vmem>>, vector<128x128xbf16>
    %cst_23 = arith.constant dense<0.000000e+00> : vector<16x128xf32>
    %34 = tpu.matmul %32, %33, %cst_23 {dimension_numbers = #tpu.dot_dimension_numbers<[1], [0], [0], [1], [0, 0, 1, 1], [], []>} : vector<16x128xbf16>, vector<128x128xbf16>, vector<16x128xf32> -> vector<16x128xf32>
    %c0_24 = arith.constant 0 : index
    %c0_25 = arith.constant 0 : index
    %35 = vector.load %arg9[%c0_24, %c0_25] : memref<1x128xf32, #tpu.memory_space<vmem>>, vector<1x128xf32>
    %36 = vector.broadcast %35 : vector<1x128xf32> to vector<16x128xf32>
    %37 = arith.addf %34, %36 : vector<16x128xf32>
    %cst_26 = arith.constant 0.000000e+00 : f32
    %38 = vector.broadcast %cst_26 : f32 to vector<16x128xf32>
    %39 = arith.maximumf %37, %38 : vector<16x128xf32>
    %c16_i32 = arith.constant 16 : i32
    %40 = tpu.dynamic_rotate %39 by %c16_i32 dim 1 : vector<16x128xf32>, i32 -> vector<16x128xf32>
    %41 = arith.addf %31, %40 : vector<16x128xf32>
    %c0_27 = arith.constant 0 : index
    %c0_28 = arith.constant 0 : index
    %42 = vector.load %arg14[%c0_27, %c0_28] : memref<16x128xf32, #tpu.memory_space<vmem>>, vector<16x128xf32>
    tpu.vector_store %arg14[%c0_27, %c0_28], %41 {strides = array<i32>} : memref<16x128xf32, #tpu.memory_space<vmem>>, vector<16x128xf32>,
    %c0_29 = arith.constant 0 : index
    %c0_30 = arith.constant 0 : index
    %43 = tpu.strided_load %arg14[%c0_29, %c0_30] {strides = array<i32: 2, 1>} : memref<16x128xf32, #tpu.memory_space<vmem>>, vector<8x128xf32>
    %c1 = arith.constant 1 : index
    %c0_31 = arith.constant 0 : index
    %44 = tpu.strided_load %arg14[%c1, %c0_31] {strides = array<i32: 2, 1>} : memref<16x128xf32, #tpu.memory_space<vmem>>, vector<8x128xf32>
    %45 = arith.truncf %43 : vector<8x128xf32> to vector<8x128xbf16>
    %c0_32 = arith.constant 0 : index
    %c0_33 = arith.constant 0 : index
    %46 = vector.load %arg10[%c0_32, %c0_33] : memref<128x128xbf16, #tpu.memory_space<vmem>>, vector<128x128xbf16>
    %cst_34 = arith.constant dense<0.000000e+00> : vector<8x128xf32>
    %47 = tpu.matmul %45, %46, %cst_34 {dimension_numbers = #tpu.dot_dimension_numbers<[1], [0], [0], [1], [0, 0, 1, 1], [], []>} : vector<8x128xbf16>, vector<128x128xbf16>, vector<8x128xf32> -> vector<8x128xf32>
    %48 = arith.truncf %44 : vector<8x128xf32> to vector<8x128xbf16>
    %c0_35 = arith.constant 0 : index
    %c0_36 = arith.constant 0 : index
    %49 = vector.load %arg11[%c0_35, %c0_36] : memref<128x128xbf16, #tpu.memory_space<vmem>>, vector<128x128xbf16>
    %cst_37 = arith.constant dense<0.000000e+00> : vector<8x128xf32>
    %50 = tpu.matmul %48, %49, %cst_37 {dimension_numbers = #tpu.dot_dimension_numbers<[1], [0], [0], [1], [0, 0, 1, 1], [], []>} : vector<8x128xbf16>, vector<128x128xbf16>, vector<8x128xf32> -> vector<8x128xf32>
    %51 = arith.addf %47, %50 : vector<8x128xf32>
    %c0_38 = arith.constant 0 : index
    %c0_39 = arith.constant 0 : index
    %52 = vector.load %arg12[%c0_38, %c0_39] : memref<1x128xf32, #tpu.memory_space<vmem>>, vector<1x128xf32>
    %53 = vector.broadcast %52 : vector<1x128xf32> to vector<8x128xf32>
    %54 = arith.addf %51, %53 : vector<8x128xf32>
    %cst_40 = arith.constant 0.000000e+00 : f32
    %55 = vector.broadcast %cst_40 : f32 to vector<8x128xf32>
    %56 = arith.maximumf %54, %55 : vector<8x128xf32>
    %c0_41 = arith.constant 0 : index
    %c0_42 = arith.constant 0 : index
    %57 = vector.load %arg13[%c0_41, %c0_42] : memref<8x128xf32, #tpu.memory_space<vmem>>, vector<8x128xf32>
    tpu.vector_store %arg13[%c0_41, %c0_42], %56 {strides = array<i32>} : memref<8x128xf32, #tpu.memory_space<vmem>>, vector<8x128xf32>,
    return
  }
}

module attributes {stable_mosaic.version = 11 : i64} {
  func.func @_mlp_kernel(%arg0: memref<2x512xf32, #tpu.memory_space<vmem>>, %arg1: memref<512x128xbf16, #tpu.memory_space<vmem>>, %arg2: memref<1x128xf32, #tpu.memory_space<vmem>>, %arg3: memref<128x128xbf16, #tpu.memory_space<vmem>>, %arg4: memref<1x128xf32, #tpu.memory_space<vmem>>, %arg5: memref<128x128xbf16, #tpu.memory_space<vmem>>, %arg6: memref<1x128xf32, #tpu.memory_space<vmem>>, %arg7: memref<128x128xbf16, #tpu.memory_space<vmem>>, %arg8: memref<1x128xf32, #tpu.memory_space<vmem>>, %arg9: memref<128x128xbf16, #tpu.memory_space<vmem>>, %arg10: memref<1x128xf32, #tpu.memory_space<vmem>>, %arg11: memref<128x128xbf16, #tpu.memory_space<vmem>>, %arg12: memref<1x128xf32, #tpu.memory_space<vmem>>, %arg13: memref<2x128xf32, #tpu.memory_space<vmem>>) attributes {dimension_semantics = [], scalar_prefetch = 0 : i64, scratch_operands = 0 : i64, tpu.core_type = #tpu.core_type<tc>} {
    %c0 = arith.constant 0 : index
    %c0_0 = arith.constant 0 : index
    %0 = vector.load %arg0[%c0, %c0_0] : memref<2x512xf32, #tpu.memory_space<vmem>>, vector<2x512xf32>
    %c0_1 = arith.constant 0 : index
    %c0_2 = arith.constant 0 : index
    %1 = vector.load %arg1[%c0_1, %c0_2] : memref<512x128xbf16, #tpu.memory_space<vmem>>, vector<512x128xbf16>
    %c0_3 = arith.constant 0 : index
    %c0_4 = arith.constant 0 : index
    %2 = vector.load %arg2[%c0_3, %c0_4] : memref<1x128xf32, #tpu.memory_space<vmem>>, vector<1x128xf32>
    %3 = arith.truncf %0 : vector<2x512xf32> to vector<2x512xbf16>
    %cst = arith.constant dense<0.000000e+00> : vector<2x128xf32>
    %4 = tpu.matmul %3, %1, %cst {dimension_numbers = #tpu.dot_dimension_numbers<[1], [0], [0], [1], [0, 0, 1, 1], [], []>} : vector<2x512xbf16>, vector<512x128xbf16>, vector<2x128xf32> -> vector<2x128xf32>
    %5 = vector.broadcast %2 : vector<1x128xf32> to vector<2x128xf32>
    %6 = arith.addf %4, %5 : vector<2x128xf32>
    %cst_5 = arith.constant 0.000000e+00 : f32
    %7 = vector.broadcast %cst_5 : f32 to vector<2x128xf32>
    %8 = arith.maximumf %6, %7 : vector<2x128xf32>
    %c0_6 = arith.constant 0 : index
    %c0_7 = arith.constant 0 : index
    %9 = vector.load %arg3[%c0_6, %c0_7] : memref<128x128xbf16, #tpu.memory_space<vmem>>, vector<128x128xbf16>
    %c0_8 = arith.constant 0 : index
    %c0_9 = arith.constant 0 : index
    %10 = vector.load %arg4[%c0_8, %c0_9] : memref<1x128xf32, #tpu.memory_space<vmem>>, vector<1x128xf32>
    %11 = arith.truncf %8 : vector<2x128xf32> to vector<2x128xbf16>
    %cst_10 = arith.constant dense<0.000000e+00> : vector<2x128xf32>
    %12 = tpu.matmul %11, %9, %cst_10 {dimension_numbers = #tpu.dot_dimension_numbers<[1], [0], [0], [1], [0, 0, 1, 1], [], []>} : vector<2x128xbf16>, vector<128x128xbf16>, vector<2x128xf32> -> vector<2x128xf32>
    %13 = vector.broadcast %10 : vector<1x128xf32> to vector<2x128xf32>
    %14 = arith.addf %12, %13 : vector<2x128xf32>
    %cst_11 = arith.constant 0.000000e+00 : f32
    %15 = vector.broadcast %cst_11 : f32 to vector<2x128xf32>
    %16 = arith.maximumf %14, %15 : vector<2x128xf32>
    %c0_12 = arith.constant 0 : index
    %c0_13 = arith.constant 0 : index
    %17 = vector.load %arg5[%c0_12, %c0_13] : memref<128x128xbf16, #tpu.memory_space<vmem>>, vector<128x128xbf16>
    %c0_14 = arith.constant 0 : index
    %c0_15 = arith.constant 0 : index
    %18 = vector.load %arg6[%c0_14, %c0_15] : memref<1x128xf32, #tpu.memory_space<vmem>>, vector<1x128xf32>
    %19 = arith.truncf %16 : vector<2x128xf32> to vector<2x128xbf16>
    %cst_16 = arith.constant dense<0.000000e+00> : vector<2x128xf32>
    %20 = tpu.matmul %19, %17, %cst_16 {dimension_numbers = #tpu.dot_dimension_numbers<[1], [0], [0], [1], [0, 0, 1, 1], [], []>} : vector<2x128xbf16>, vector<128x128xbf16>, vector<2x128xf32> -> vector<2x128xf32>
    %21 = vector.broadcast %18 : vector<1x128xf32> to vector<2x128xf32>
    %22 = arith.addf %20, %21 : vector<2x128xf32>
    %c0_17 = arith.constant 0 : index
    %c0_18 = arith.constant 0 : index
    %23 = vector.load %arg7[%c0_17, %c0_18] : memref<128x128xbf16, #tpu.memory_space<vmem>>, vector<128x128xbf16>
    %c0_19 = arith.constant 0 : index
    %c0_20 = arith.constant 0 : index
    %24 = vector.load %arg8[%c0_19, %c0_20] : memref<1x128xf32, #tpu.memory_space<vmem>>, vector<1x128xf32>
    %25 = arith.truncf %22 : vector<2x128xf32> to vector<2x128xbf16>
    %cst_21 = arith.constant dense<0.000000e+00> : vector<2x128xf32>
    %26 = tpu.matmul %25, %23, %cst_21 {dimension_numbers = #tpu.dot_dimension_numbers<[1], [0], [0], [1], [0, 0, 1, 1], [], []>} : vector<2x128xbf16>, vector<128x128xbf16>, vector<2x128xf32> -> vector<2x128xf32>
    %27 = vector.broadcast %24 : vector<1x128xf32> to vector<2x128xf32>
    %28 = arith.addf %26, %27 : vector<2x128xf32>
    %cst_22 = arith.constant 0.000000e+00 : f32
    %29 = vector.broadcast %cst_22 : f32 to vector<2x128xf32>
    %30 = arith.maximumf %28, %29 : vector<2x128xf32>
    %c0_23 = arith.constant 0 : index
    %c0_24 = arith.constant 0 : index
    %31 = vector.load %arg9[%c0_23, %c0_24] : memref<128x128xbf16, #tpu.memory_space<vmem>>, vector<128x128xbf16>
    %c0_25 = arith.constant 0 : index
    %c0_26 = arith.constant 0 : index
    %32 = vector.load %arg10[%c0_25, %c0_26] : memref<1x128xf32, #tpu.memory_space<vmem>>, vector<1x128xf32>
    %33 = arith.truncf %30 : vector<2x128xf32> to vector<2x128xbf16>
    %cst_27 = arith.constant dense<0.000000e+00> : vector<2x128xf32>
    %34 = tpu.matmul %33, %31, %cst_27 {dimension_numbers = #tpu.dot_dimension_numbers<[1], [0], [0], [1], [0, 0, 1, 1], [], []>} : vector<2x128xbf16>, vector<128x128xbf16>, vector<2x128xf32> -> vector<2x128xf32>
    %35 = vector.broadcast %32 : vector<1x128xf32> to vector<2x128xf32>
    %36 = arith.addf %34, %35 : vector<2x128xf32>
    %cst_28 = arith.constant 0.000000e+00 : f32
    %37 = vector.broadcast %cst_28 : f32 to vector<2x128xf32>
    %38 = arith.maximumf %36, %37 : vector<2x128xf32>
    %c0_29 = arith.constant 0 : index
    %c0_30 = arith.constant 0 : index
    %39 = vector.load %arg11[%c0_29, %c0_30] : memref<128x128xbf16, #tpu.memory_space<vmem>>, vector<128x128xbf16>
    %c0_31 = arith.constant 0 : index
    %c0_32 = arith.constant 0 : index
    %40 = vector.load %arg12[%c0_31, %c0_32] : memref<1x128xf32, #tpu.memory_space<vmem>>, vector<1x128xf32>
    %41 = arith.truncf %38 : vector<2x128xf32> to vector<2x128xbf16>
    %cst_33 = arith.constant dense<0.000000e+00> : vector<2x128xf32>
    %42 = tpu.matmul %41, %39, %cst_33 {dimension_numbers = #tpu.dot_dimension_numbers<[1], [0], [0], [1], [0, 0, 1, 1], [], []>} : vector<2x128xbf16>, vector<128x128xbf16>, vector<2x128xf32> -> vector<2x128xf32>
    %43 = vector.broadcast %40 : vector<1x128xf32> to vector<2x128xf32>
    %44 = arith.addf %42, %43 : vector<2x128xf32>
    %cst_34 = arith.constant 0.000000e+00 : f32
    %45 = vector.broadcast %cst_34 : f32 to vector<2x128xf32>
    %46 = arith.subf %45, %44 : vector<2x128xf32>
    %47 = math.exp %46 : vector<2x128xf32>
    %cst_35 = arith.constant 1.000000e+00 : f32
    %48 = vector.broadcast %cst_35 : f32 to vector<2x128xf32>
    %49 = arith.addf %48, %47 : vector<2x128xf32>
    %cst_36 = arith.constant 1.000000e+00 : f32
    %50 = vector.broadcast %cst_36 : f32 to vector<2x128xf32>
    %51 = arith.divf %50, %49 : vector<2x128xf32>
    %c0_37 = arith.constant 0 : index
    %c0_38 = arith.constant 0 : index
    %52 = vector.load %arg13[%c0_37, %c0_38] : memref<2x128xf32, #tpu.memory_space<vmem>>, vector<2x128xf32>
    tpu.vector_store %arg13[%c0_37, %c0_38], %51 {strides = array<i32>} : memref<2x128xf32, #tpu.memory_space<vmem>>, vector<2x128xf32>,
    return
  }
}

</mosaic_0001>

<llo_original>
// kernel: _lambda_.3
$region0: #{_lambda_.3}
  #allocation0 [shape = 'u32[]', space=smem, size = 0x4, offset = 0x4, fixed_abs, tag = 'smem constant byte address 0x4 - core index']
  #allocation1 [shape = 'u32[144,128]{1,0:T(1,128)}', space=vmem, size = 0x12000, scoped, tag = 'internal scratch']
  #allocation2 [shape = 'f32[32,128]{1,0:T(8,128)}', space=vmem, size = 0x4000, scoped, tag = 'scratch operand']
  %s0 = inlined_call_operand.vmem [shape: f32[32,128], index: 0, kind: input, shape index: {}]
  %s1 = inlined_call_operand.hbm [shape: f32[32,1], index: 1, kind: input, shape index: {}]
  %s2 = inlined_call_operand.hbm [shape: bf16[128,128], index: 2, kind: input, shape index: {}]
  %s3 = inlined_call_operand.hbm [shape: bf16[128,128], index: 3, kind: input, shape index: {}]
  %s4 = inlined_call_operand.hbm [shape: f32[1,128], index: 4, kind: input, shape index: {}]
  %s5 = inlined_call_operand.hbm [shape: bf16[128,128], index: 5, kind: input, shape index: {}]
  %s6 = inlined_call_operand.hbm [shape: bf16[128,128], index: 6, kind: input, shape index: {}]
  %s7 = inlined_call_operand.vmem [shape: f32[1,128], index: 7, kind: input, shape index: {}]
  %s8 = inlined_call_operand.vmem [shape: bf16[128,128], index: 8, kind: input, shape index: {}]
  %s9 = inlined_call_operand.vmem [shape: f32[1,128], index: 9, kind: input, shape index: {}]
  %s10 = inlined_call_operand.vmem [shape: bf16[128,128], index: 10, kind: input, shape index: {}]
  %s11 = inlined_call_operand.vmem [shape: bf16[128,128], index: 11, kind: input, shape index: {}]
  %s12 = inlined_call_operand.vmem [shape: f32[1,128], index: 12, kind: input, shape index: {}]
  %s13 = inlined_call_operand.vmem [shape: f32[16,128], index: 13, kind: output, shape index: {}]
  %s14 = sld [smem:[#allocation0]]
  $region86: #{_lambda_.3} parent=0
    _
  %s16 = ssub.s32 1, %s14
  %s17 = scalar_select 0, %s16, %s14
  $region1: #{_lambda_.3} parent=0
    #allocation3 [shape = 'u8[16384]{0}', space=vmem, size = 0x4000, scoped, tag = 'input window, operand 1, single buffered']
    #allocation4 [shape = 's32[1]{0}', space=sflag, size = 0x4, scoped, tag = 'scoped memory for _lambda_.3']
    #allocation5 [shape = 'u8[32768]{0}', space=vmem, size = 0x8000, scoped, tag = 'input window, operand 2, single buffered']
    #allocation6 [shape = 's32[1]{0}', space=sflag, size = 0x4, scoped, tag = 'scoped memory for _lambda_.3']
    #allocation7 [shape = 'u8[32768]{0}', space=vmem, size = 0x8000, scoped, tag = 'input window, operand 3, single buffered']
    #allocation8 [shape = 'u8[512]{0}', space=vmem, size = 0x400, scoped, tag = 'input window, operand 4, single buffered']
    #allocation9 [shape = 's32[1]{0}', space=sflag, size = 0x4, scoped, tag = 'scoped memory for _lambda_.3']
    #allocation10 [shape = 'u8[32768]{0}', space=vmem, size = 0x8000, scoped, tag = 'input window, operand 5, single buffered']
    #allocation11 [shape = 'u8[32768]{0}', space=vmem, size = 0x8000, scoped, tag = 'input window, operand 6, single buffered']
    #allocation12 [shape = 's32[1]{0}', space=sflag, size = 0x4, scoped, tag = 'scoped memory for _lambda_.3']
    %18 = vsyncpa [#allocation4], 0
    %19 = vsyncpa [#allocation6], 0
    %20 = vsyncpa [#allocation9], 0
    %21 = vsyncpa [#allocation12], 0
    // Predicated region
    $region2: #{_lambda_.3} parent=1 // pred_check
      _
    $region3: #{_lambda_.3} parent=1 // pred_check_branch
      %23 = sbr.rel (0) target = $region5
    $region4: #{_lambda_.3} parent=1 // pred_region
      _
    $region5: #{_lambda_.3} parent=1 // pred_fallthru
      _
    // Predicated region
    $region6: #{_lambda_.3} parent=1 // pred_check
      _
    $region7: #{_lambda_.3} parent=1 // pred_check_branch
      %25 = sbr.rel (0) target = $region9
    $region8: #{_lambda_.3} parent=1 // pred_region
      %s27 = ssub.s32 512, 512
      %28 = vsyncadd [#allocation4], %s27
      %s29 = sshll.u32 [#allocation3], 4
      %s30 = int_to_ptr.vmem [resolvable:$true] %s29
      %35 = dma.hbm_to_vmem [thread:$0]  %s1, 512, %s30, [#allocation4], 128, 128, 8
    $region9: #{_lambda_.3} parent=1 // pred_fallthru
      _
    // Predicated region
    $region10: #{_lambda_.3} parent=1 // pred_check
      _
    $region11: #{_lambda_.3} parent=1 // pred_check_branch
      %37 = sbr.rel (0) target = $region13
    $region12: #{_lambda_.3} parent=1 // pred_region
      %s39 = ssub.s32 1024, 1024
      %40 = vsyncadd [#allocation6], %s39
      %s41 = sshll.u32 [#allocation5], 4
      %s42 = int_to_ptr.vmem [resolvable:$true] %s41
      %47 = dma.hbm_to_vmem [thread:$0]  %s2, 1024, %s42, [#allocation6], 64, 64, 4
    $region13: #{_lambda_.3} parent=1 // pred_fallthru
      _
    // Predicated region
    $region14: #{_lambda_.3} parent=1 // pred_check
      _
    $region15: #{_lambda_.3} parent=1 // pred_check_branch
      %49 = sbr.rel (0) target = $region17
    $region16: #{_lambda_.3} parent=1 // pred_region
      %s51 = ssub.s32 1024, 1024
      %52 = vsyncadd [#allocation6], %s51
      %s53 = sshll.u32 [#allocation7], 4
      %s54 = int_to_ptr.vmem [resolvable:$true] %s53
      %59 = dma.hbm_to_vmem [thread:$0]  %s3, 1024, %s54, [#allocation6], 64, 64, 4
    $region17: #{_lambda_.3} parent=1 // pred_fallthru
      _
    // Predicated region
    $region18: #{_lambda_.3} parent=1 // pred_check
      _
    $region19: #{_lambda_.3} parent=1 // pred_check_branch
      %61 = sbr.rel (0) target = $region21
    $region20: #{_lambda_.3} parent=1 // pred_region
      %s63 = ssub.s32 16, 16
      %64 = vsyncadd [#allocation9], %s63
      %s66 = sshll.u32 [#allocation8], 4
      %s67 = int_to_ptr.vmem [resolvable:$true] %s66
      %69 = dma.hbm_to_vmem [thread:$0]  %s4, 16, %s67, [#allocation9]
    $region21: #{_lambda_.3} parent=1 // pred_fallthru
      _
    // Predicated region
    $region22: #{_lambda_.3} parent=1 // pred_check
      _
    $region23: #{_lambda_.3} parent=1 // pred_check_branch
      %71 = sbr.rel (0) target = $region25
    $region24: #{_lambda_.3} parent=1 // pred_region
      %s73 = ssub.s32 1024, 1024
      %74 = vsyncadd [#allocation9], %s73
      %s75 = sshll.u32 [#allocation10], 4
      %s76 = int_to_ptr.vmem [resolvable:$true] %s75
      %81 = dma.hbm_to_vmem [thread:$0]  %s5, 1024, %s76, [#allocation9], 64, 64, 4
    $region25: #{_lambda_.3} parent=1 // pred_fallthru
      _
    // Predicated region
    $region26: #{_lambda_.3} parent=1 // pred_check
      _
    $region27: #{_lambda_.3} parent=1 // pred_check_branch
      %83 = sbr.rel (0) target = $region29
    $region28: #{_lambda_.3} parent=1 // pred_region
      %s85 = ssub.s32 1024, 1024
      %86 = vsyncadd [#allocation12], %s85
      %s87 = sshll.u32 [#allocation11], 4
      %s88 = int_to_ptr.vmem [resolvable:$true] %s87
      %93 = dma.hbm_to_vmem [thread:$0]  %s6, 1024, %s88, [#allocation12], 64, 64, 4
    $region29: #{_lambda_.3} parent=1 // pred_fallthru
      _
    // Predicated region
    $region30: #{_lambda_.3} parent=1 // pred_check
      _
    $region31: #{_lambda_.3} parent=1 // pred_check_branch
      %95 = sbr.rel (0) target = $region33
    $region32: #{_lambda_.3} parent=1 // pred_region
      _
    $region33: #{_lambda_.3} parent=1 // pred_fallthru
      _
    // Predicated region
    $region34: #{_lambda_.3} parent=1 // pred_check
      _
    $region35: #{_lambda_.3} parent=1 // pred_check_branch
      %97 = sbr.rel (0) target = $region37
    $region36: #{_lambda_.3} parent=1 // pred_region
      _
    $region37: #{_lambda_.3} parent=1 // pred_fallthru
      _
    // Predicated region
    $region38: #{_lambda_.3} parent=1 // pred_check
      _
    $region39: #{_lambda_.3} parent=1 // pred_check_branch
      %99 = sbr.rel (0) target = $region41
    $region40: #{_lambda_.3} parent=1 // pred_region
      _
    $region41: #{_lambda_.3} parent=1 // pred_fallthru
      _
    // Predicated region
    $region42: #{_lambda_.3} parent=1 // pred_check
      _
    $region43: #{_lambda_.3} parent=1 // pred_check_branch
      %101 = sbr.rel (0) target = $region45
    $region44: #{_lambda_.3} parent=1 // pred_region
      _
    $region45: #{_lambda_.3} parent=1 // pred_fallthru
      _
    // Predicated region
    $region46: #{_lambda_.3} parent=1 // pred_check
      _
    $region47: #{_lambda_.3} parent=1 // pred_check_branch
      %103 = sbr.rel (0) target = $region49
    $region48: #{_lambda_.3} parent=1 // pred_region
      _
    $region49: #{_lambda_.3} parent=1 // pred_fallthru
      _
    // Predicated region
    $region50: #{_lambda_.3} parent=1 // pred_check
      _
    $region51: #{_lambda_.3} parent=1 // pred_check_branch
      %105 = sbr.rel (0) target = $region53
    $region52: #{_lambda_.3} parent=1 // pred_region
      _
    $region53: #{_lambda_.3} parent=1 // pred_fallthru
      _
    // Predicated region
    $region54: #{_lambda_.3} parent=1 // pred_check
      _
    $region55: #{_lambda_.3} parent=1 // pred_check_branch
      %107 = sbr.rel (0) target = $region57
    $region56: #{_lambda_.3} parent=1 // pred_region
      %108 = dma.done [#allocation4], 512
    $region57: #{_lambda_.3} parent=1 // pred_fallthru
      _
    // Predicated region
    $region58: #{_lambda_.3} parent=1 // pred_check
      _
    $region59: #{_lambda_.3} parent=1 // pred_check_branch
      %110 = sbr.rel (0) target = $region61
    $region60: #{_lambda_.3} parent=1 // pred_region
      %111 = dma.done [#allocation6], 1024
    $region61: #{_lambda_.3} parent=1 // pred_fallthru
      _
    // Predicated region
    $region62: #{_lambda_.3} parent=1 // pred_check
      _
    $region63: #{_lambda_.3} parent=1 // pred_check_branch
      %113 = sbr.rel (0) target = $region65
    $region64: #{_lambda_.3} parent=1 // pred_region
      %114 = dma.done [#allocation6], 1024
    $region65: #{_lambda_.3} parent=1 // pred_fallthru
      _
    // Predicated region
    $region66: #{_lambda_.3} parent=1 // pred_check
      _
    $region67: #{_lambda_.3} parent=1 // pred_check_branch
      %116 = sbr.rel (0) target = $region69
    $region68: #{_lambda_.3} parent=1 // pred_region
      %117 = dma.done [#allocation9], 16
    $region69: #{_lambda_.3} parent=1 // pred_fallthru
      _
    // Predicated region
    $region70: #{_lambda_.3} parent=1 // pred_check
      _
    $region71: #{_lambda_.3} parent=1 // pred_check_branch
      %119 = sbr.rel (0) target = $region73
    $region72: #{_lambda_.3} parent=1 // pred_region
      %120 = dma.done [#allocation9], 1024
    $region73: #{_lambda_.3} parent=1 // pred_fallthru
      _
    // Predicated region
    $region74: #{_lambda_.3} parent=1 // pred_check
      _
    $region75: #{_lambda_.3} parent=1 // pred_check_branch
      %122 = sbr.rel (0) target = $region77
    $region76: #{_lambda_.3} parent=1 // pred_region
      %123 = dma.done [#allocation12], 1024
    $region77: #{_lambda_.3} parent=1 // pred_fallthru
      _
    %v125 = vld [vmem:[%s0] sm:$0xff]
    %v126 = vld [vmem:[%s0 + $0x8] sm:$0xff]
    %v127 = vld [vmem:[%s0 + $0x10] sm:$0xff]
    %v128 = vld [vmem:[%s0 + $0x18] sm:$0xff]
    %v129 = vld [vmem:[#allocation3] sm:$0xff]
    %v130 = vld [vmem:[#allocation3 + $0x8] sm:$0xff]
    %v131 = vld [vmem:[#allocation3 + $0x10] sm:$0xff]
    %v132 = vld [vmem:[#allocation3 + $0x18] sm:$0xff]
    %v133 = vld [vmem:[#allocation5] sm:$0xf]
    %v134 = vld [vmem:[#allocation5 + $0x4] sm:$0xf]
    %v135 = vld [vmem:[#allocation5 + $0x8] sm:$0xf]
    %v136 = vld [vmem:[#allocation5 + $0xc] sm:$0xf]
    %v137 = vld [vmem:[#allocation5 + $0x10] sm:$0xf]
    %v138 = vld [vmem:[#allocation5 + $0x14] sm:$0xf]
    %v139 = vld [vmem:[#allocation5 + $0x18] sm:$0xf]
    %v140 = vld [vmem:[#allocation5 + $0x1c] sm:$0xf]
    %v141 = vld [vmem:[#allocation5 + $0x20] sm:$0xf]
    %v142 = vld [vmem:[#allocation5 + $0x24] sm:$0xf]
    %v143 = vld [vmem:[#allocation5 + $0x28] sm:$0xf]
    %v144 = vld [vmem:[#allocation5 + $0x2c] sm:$0xf]
    %v145 = vld [vmem:[#allocation5 + $0x30] sm:$0xf]
    %v146 = vld [vmem:[#allocation5 + $0x34] sm:$0xf]
    %v147 = vld [vmem:[#allocation5 + $0x38] sm:$0xf]
    %v148 = vld [vmem:[#allocation5 + $0x3c] sm:$0xf]
    %v149 = vld [vmem:[#allocation7] sm:$0xf]
    %v150 = vld [vmem:[#allocation7 + $0x4] sm:$0xf]
    %v151 = vld [vmem:[#allocation7 + $0x8] sm:$0xf]
    %v152 = vld [vmem:[#allocation7 + $0xc] sm:$0xf]
    %v153 = vld [vmem:[#allocation7 + $0x10] sm:$0xf]
    %v154 = vld [vmem:[#allocation7 + $0x14] sm:$0xf]
    %v155 = vld [vmem:[#allocation7 + $0x18] sm:$0xf]
    %v156 = vld [vmem:[#allocation7 + $0x1c] sm:$0xf]
    %v157 = vld [vmem:[#allocation7 + $0x20] sm:$0xf]
    %v158 = vld [vmem:[#allocation7 + $0x24] sm:$0xf]
    %v159 = vld [vmem:[#allocation7 + $0x28] sm:$0xf]
    %v160 = vld [vmem:[#allocation7 + $0x2c] sm:$0xf]
    %v161 = vld [vmem:[#allocation7 + $0x30] sm:$0xf]
    %v162 = vld [vmem:[#allocation7 + $0x34] sm:$0xf]
    %v163 = vld [vmem:[#allocation7 + $0x38] sm:$0xf]
    %v164 = vld [vmem:[#allocation7 + $0x3c] sm:$0xf]
    %v165 = vld [vmem:[#allocation8] sm:$0x1]
    %v166 = vrot.slane %v125, 1
    %v167 = vrot.slane %v126, 1
    %v168 = vrot.slane %v127, 1
    %v169 = vrot.slane %v128, 1
    %v170 = vlaneseq
    %v171 = vshrl.u32 %v170, 7
    %vm172 = vcmp.lt.s32.totalorder %v171, 7
    %v173 = vsel %vm172, %v168, %v169
    %v174 = vsel %vm172, %v167, %v168
    %v175 = vsel %vm172, %v166, %v167
    %v176 = vsel %vm172, %v169, %v166
    %178 = vset.pattern.permute.xlu0 0
    %179 = vperm.xlu0 %178, %v129
    %v180 = vpop.permute.xlu0 %179
    %183 = vset.pattern.permute.xlu0 0
    %184 = vperm.xlu0 %183, %v130
    %v185 = vpop.permute.xlu0 %184
    %188 = vset.pattern.permute.xlu0 0
    %189 = vperm.xlu0 %188, %v131
    %v190 = vpop.permute.xlu0 %189
    %193 = vset.pattern.permute.xlu0 0
    %194 = vperm.xlu0 %193, %v132
    %v195 = vpop.permute.xlu0 %194
    %v197 = vmul.f32 %v175, %v180
    %v198 = vmul.f32 %v174, %v185
    %v199 = vmul.f32 %v173, %v190
    %v200 = vmul.f32 %v176, %v195
    %v201 = vpack.c.bf16 %v126, %v125
    %v202 = vpack.c.bf16 %v128, %v127
    %v203 = vpack.c.bf16 %v198, %v197
    %v204 = vpack.c.bf16 %v200, %v199
    %v221 = vunpack.c.l.b16 %v149
    %v222 = vunpack.c.l.b16 %v150
    %v223 = vunpack.c.l.b16 %v151
    %v224 = vunpack.c.l.b16 %v152
    %v225 = vunpack.c.l.b16 %v153
    %v226 = vunpack.c.l.b16 %v154
    %v227 = vunpack.c.l.b16 %v155
    %v228 = vunpack.c.l.b16 %v156
    %v229 = vunpack.c.l.b16 %v157
    %v230 = vunpack.c.l.b16 %v158
    %v231 = vunpack.c.l.b16 %v159
    %v232 = vunpack.c.l.b16 %v160
    %v233 = vunpack.c.l.b16 %v161
    %v234 = vunpack.c.l.b16 %v162
    %v235 = vunpack.c.l.b16 %v163
    %v236 = vunpack.c.l.b16 %v164
    %v237 = vpack.c.b16 %v222, %v221
    %v238 = vpack.c.b16 %v224, %v223
    %v239 = vpack.c.b16 %v226, %v225
    %v240 = vpack.c.b16 %v228, %v227
    %v241 = vpack.c.b16 %v230, %v229
    %v242 = vpack.c.b16 %v232, %v231
    %v243 = vpack.c.b16 %v234, %v233
    %v244 = vpack.c.b16 %v236, %v235
    %253 = vmatprep.subr.bf16.mxu0 0
    %254 = vmatpush1.bf16.msra.mxu0 %v237
    %255 = vmatprep.subr.bf16.mxu0 0
    %256 = vmatpush1.bf16.msra.mxu0 %v238
    %257 = vmatprep.subr.bf16.mxu0 0
    %258 = vmatpush1.bf16.msra.mxu0 %v239
    %259 = vmatprep.subr.bf16.mxu0 0
    %260 = vmatpush1.bf16.msra.mxu0 %v240
    %261 = vmatprep.subr.bf16.mxu0 0
    %262 = vmatpush1.bf16.msra.mxu0 %v241
    %263 = vmatprep.subr.bf16.mxu0 0
    %264 = vmatpush1.bf16.msra.mxu0 %v242
    %265 = vmatprep.subr.bf16.mxu0 0
    %266 = vmatpush1.bf16.msra.mxu0 %v243
    %267 = vmatprep.subr.bf16.mxu0 0
    %268 = vmatpush1.bf16.msra.mxu0 %v244
    %269 = vmatprep.subr.bf16.mxu0 0
    %270 = vmatpush1.bf16.msra.mxu0 0
    %271 = vmatprep.subr.bf16.mxu0 0
    %272 = vmatpush1.bf16.msra.mxu0 0
    %273 = vmatprep.subr.bf16.mxu0 0
    %274 = vmatpush1.bf16.msra.mxu0 0
    %275 = vmatprep.subr.bf16.mxu0 0
    %276 = vmatpush1.bf16.msra.mxu0 0
    %277 = vmatprep.subr.bf16.mxu0 0
    %278 = vmatpush1.bf16.msra.mxu0 0
    %279 = vmatprep.subr.bf16.mxu0 0
    %280 = vmatpush1.bf16.msra.mxu0 0
    %281 = vmatprep.subr.bf16.mxu0 0
    %282 = vmatpush1.bf16.msra.mxu0 0
    %283 = vmatprep.subr.bf16.mxu0 0
    %284 = vmatpush1.bf16.msra.mxu0 0
    %285 = vmatprep.mubr.bf16.mxu0 0
    %286 = vmatmul.mubr.bf16.gmra.mrb[0].mxu0 %v203
    %v287 = vpop.f32.mrb[0].mxu0
    %v288 = vadd.f32 0.0, %v287
    %v289 = vpop.f32.mrb[0].mxu0
    %v290 = vpop.f32.mrb[0].mxu0
    %v291 = vadd.f32 0.0, %v290
    %v292 = vpop.f32.mrb[0].mxu0
    %293 = vmatprep.mubr.bf16.mxu0 0
    %294 = vmatmul.mubr.bf16.gmra.mrb[0].mxu0 %v204
    %v295 = vpop.f32.mrb[0].mxu0
    %v296 = vadd.f32 0.0, %v295
    %v297 = vpop.f32.mrb[0].mxu0
    %v298 = vpop.f32.mrb[0].mxu0
    %v299 = vadd.f32 0.0, %v298
    %v300 = vpop.f32.mrb[0].mxu0
    %301 = vdwg.mxu0
    %v318 = vunpack.c.l.b16 %v133
    %v319 = vunpack.c.l.b16 %v134
    %v320 = vunpack.c.l.b16 %v135
    %v321 = vunpack.c.l.b16 %v136
    %v322 = vunpack.c.l.b16 %v137
    %v323 = vunpack.c.l.b16 %v138
    %v324 = vunpack.c.l.b16 %v139
    %v325 = vunpack.c.l.b16 %v140
    %v326 = vunpack.c.l.b16 %v141
    %v327 = vunpack.c.l.b16 %v142
    %v328 = vunpack.c.l.b16 %v143
    %v329 = vunpack.c.l.b16 %v144
    %v330 = vunpack.c.l.b16 %v145
    %v331 = vunpack.c.l.b16 %v146
    %v332 = vunpack.c.l.b16 %v147
    %v333 = vunpack.c.l.b16 %v148
    %v334 = vpack.c.b16 %v319, %v318
    %v335 = vpack.c.b16 %v321, %v320
    %v336 = vpack.c.b16 %v323, %v322
    %v337 = vpack.c.b16 %v325, %v324
    %v338 = vpack.c.b16 %v327, %v326
    %v339 = vpack.c.b16 %v329, %v328
    %v340 = vpack.c.b16 %v331, %v330
    %v341 = vpack.c.b16 %v333, %v332
    %350 = vmatprep.subr.bf16.mxu0 0
    %351 = vmatpush1.bf16.msra.mxu0 %v334
    %352 = vmatprep.subr.bf16.mxu0 0
    %353 = vmatpush1.bf16.msra.mxu0 %v335
    %354 = vmatprep.subr.bf16.mxu0 0
    %355 = vmatpush1.bf16.msra.mxu0 %v336
    %356 = vmatprep.subr.bf16.mxu0 0
    %357 = vmatpush1.bf16.msra.mxu0 %v337
    %358 = vmatprep.subr.bf16.mxu0 0
    %359 = vmatpush1.bf16.msra.mxu0 %v338
    %360 = vmatprep.subr.bf16.mxu0 0
    %361 = vmatpush1.bf16.msra.mxu0 %v339
    %362 = vmatprep.subr.bf16.mxu0 0
    %363 = vmatpush1.bf16.msra.mxu0 %v340
    %364 = vmatprep.subr.bf16.mxu0 0
    %365 = vmatpush1.bf16.msra.mxu0 %v341
    %366 = vmatprep.subr.bf16.mxu0 0
    %367 = vmatpush1.bf16.msra.mxu0 0
    %368 = vmatprep.subr.bf16.mxu0 0
    %369 = vmatpush1.bf16.msra.mxu0 0
    %370 = vmatprep.subr.bf16.mxu0 0
    %371 = vmatpush1.bf16.msra.mxu0 0
    %372 = vmatprep.subr.bf16.mxu0 0
    %373 = vmatpush1.bf16.msra.mxu0 0
    %374 = vmatprep.subr.bf16.mxu0 0
    %375 = vmatpush1.bf16.msra.mxu0 0
    %376 = vmatprep.subr.bf16.mxu0 0
    %377 = vmatpush1.bf16.msra.mxu0 0
    %378 = vmatprep.subr.bf16.mxu0 0
    %379 = vmatpush1.bf16.msra.mxu0 0
    %380 = vmatprep.subr.bf16.mxu0 0
    %381 = vmatpush1.bf16.msra.mxu0 0
    %382 = vmatprep.mubr.bf16.mxu0 0
    %383 = vmatmul.mubr.bf16.gmra.mrb[0].mxu0 %v201
    %v384 = vpop.f32.mrb[0].mxu0
    %v385 = vadd.f32 %v288, %v384
    %v386 = vpop.f32.mrb[0].mxu0
    %v387 = vpop.f32.mrb[0].mxu0
    %v388 = vadd.f32 %v291, %v387
    %v389 = vpop.f32.mrb[0].mxu0
    %390 = vmatprep.mubr.bf16.mxu0 0
    %391 = vmatmul.mubr.bf16.gmra.mrb[0].mxu0 %v202
    %v392 = vpop.f32.mrb[0].mxu0
    %v393 = vadd.f32 %v296, %v392
    %v394 = vpop.f32.mrb[0].mxu0
    %v395 = vpop.f32.mrb[0].mxu0
    %v396 = vadd.f32 %v299, %v395
    %v397 = vpop.f32.mrb[0].mxu0
    %398 = vdwg.mxu0
    %v400 = vlaneseq
    %v401 = vshrl.u32 %v400, 7
    %v402 = vsub.s32 0, %v401
    %v403 = vrot.slane %v165, %v402
    %v405 = vadd.f32 %v385, %v403
    %v406 = vadd.f32 %v388, %v403
    %v407 = vadd.f32 %v393, %v403
    %v408 = vadd.f32 %v396, %v403
    %v409 = vmax.f32 %v405, 0.0
    %v410 = vmax.f32 %v406, 0.0
    %v411 = vmax.f32 %v407, 0.0
    %v412 = vmax.f32 %v408, 0.0
    %v413 = vld [vmem:[#allocation10] sm:$0xf]
    %v414 = vld [vmem:[#allocation10 + $0x4] sm:$0xf]
    %v415 = vld [vmem:[#allocation10 + $0x8] sm:$0xf]
    %v416 = vld [vmem:[#allocation10 + $0xc] sm:$0xf]
    %v417 = vld [vmem:[#allocation10 + $0x10] sm:$0xf]
    %v418 = vld [vmem:[#allocation10 + $0x14] sm:$0xf]
    %v419 = vld [vmem:[#allocation10 + $0x18] sm:$0xf]
    %v420 = vld [vmem:[#allocation10 + $0x1c] sm:$0xf]
    %v421 = vld [vmem:[#allocation10 + $0x20] sm:$0xf]
    %v422 = vld [vmem:[#allocation10 + $0x24] sm:$0xf]
    %v423 = vld [vmem:[#allocation10 + $0x28] sm:$0xf]
    %v424 = vld [vmem:[#allocation10 + $0x2c] sm:$0xf]
    %v425 = vld [vmem:[#allocation10 + $0x30] sm:$0xf]
    %v426 = vld [vmem:[#allocation10 + $0x34] sm:$0xf]
    %v427 = vld [vmem:[#allocation10 + $0x38] sm:$0xf]
    %v428 = vld [vmem:[#allocation10 + $0x3c] sm:$0xf]
    %v429 = vld [vmem:[#allocation11] sm:$0xf]
    %v430 = vld [vmem:[#allocation11 + $0x4] sm:$0xf]
    %v431 = vld [vmem:[#allocation11 + $0x8] sm:$0xf]
    %v432 = vld [vmem:[#allocation11 + $0xc] sm:$0xf]
    %v433 = vld [vmem:[#allocation11 + $0x10] sm:$0xf]
    %v434 = vld [vmem:[#allocation11 + $0x14] sm:$0xf]
    %v435 = vld [vmem:[#allocation11 + $0x18] sm:$0xf]
    %v436 = vld [vmem:[#allocation11 + $0x1c] sm:$0xf]
    %v437 = vld [vmem:[#allocation11 + $0x20] sm:$0xf]
    %v438 = vld [vmem:[#allocation11 + $0x24] sm:$0xf]
    %v439 = vld [vmem:[#allocation11 + $0x28] sm:$0xf]
    %v440 = vld [vmem:[#allocation11 + $0x2c] sm:$0xf]
    %v441 = vld [vmem:[#allocation11 + $0x30] sm:$0xf]
    %v442 = vld [vmem:[#allocation11 + $0x34] sm:$0xf]
    %v443 = vld [vmem:[#allocation11 + $0x38] sm:$0xf]
    %v444 = vld [vmem:[#allocation11 + $0x3c] sm:$0xf]
    %v445 = vld [vmem:[%s7] sm:$0x1]
    %v446 = vrot.slane %v409, 1
    %v447 = vrot.slane %v410, 1
    %v448 = vrot.slane %v411, 1
    %v449 = vrot.slane %v412, 1
    %v450 = vsel %vm172, %v448, %v449
    %v451 = vsel %vm172, %v447, %v448
    %v452 = vsel %vm172, %v446, %v447
    %v453 = vsel %vm172, %v449, %v446
    %v454 = vmul.f32 %v452, %v180
    %v455 = vmul.f32 %v451, %v185
    %v456 = vmul.f32 %v450, %v190
    %v457 = vmul.f32 %v453, %v195
    %v458 = vpack.c.bf16 %v410, %v409
    %v459 = vpack.c.bf16 %v412, %v411
    %v460 = vpack.c.bf16 %v455, %v454
    %v461 = vpack.c.bf16 %v457, %v456
    %v478 = vunpack.c.l.b16 %v429
    %v479 = vunpack.c.l.b16 %v430
    %v480 = vunpack.c.l.b16 %v431
    %v481 = vunpack.c.l.b16 %v432
    %v482 = vunpack.c.l.b16 %v433
    %v483 = vunpack.c.l.b16 %v434
    %v484 = vunpack.c.l.b16 %v435
    %v485 = vunpack.c.l.b16 %v436
    %v486 = vunpack.c.l.b16 %v437
    %v487 = vunpack.c.l.b16 %v438
    %v488 = vunpack.c.l.b16 %v439
    %v489 = vunpack.c.l.b16 %v440
    %v490 = vunpack.c.l.b16 %v441
    %v491 = vunpack.c.l.b16 %v442
    %v492 = vunpack.c.l.b16 %v443
    %v493 = vunpack.c.l.b16 %v444
    %v494 = vpack.c.b16 %v479, %v478
    %v495 = vpack.c.b16 %v481, %v480
    %v496 = vpack.c.b16 %v483, %v482
    %v497 = vpack.c.b16 %v485, %v484
    %v498 = vpack.c.b16 %v487, %v486
    %v499 = vpack.c.b16 %v489, %v488
    %v500 = vpack.c.b16 %v491, %v490
    %v501 = vpack.c.b16 %v493, %v492
    %510 = vmatprep.subr.bf16.mxu0 0
    %511 = vmatpush1.bf16.msra.mxu0 %v494
    %512 = vmatprep.subr.bf16.mxu0 0
    %513 = vmatpush1.bf16.msra.mxu0 %v495
    %514 = vmatprep.subr.bf16.mxu0 0
    %515 = vmatpush1.bf16.msra.mxu0 %v496
    %516 = vmatprep.subr.bf16.mxu0 0
    %517 = vmatpush1.bf16.msra.mxu0 %v497
    %518 = vmatprep.subr.bf16.mxu0 0
    %519 = vmatpush1.bf16.msra.mxu0 %v498
    %520 = vmatprep.subr.bf16.mxu0 0
    %521 = vmatpush1.bf16.msra.mxu0 %v499
    %522 = vmatprep.subr.bf16.mxu0 0
    %523 = vmatpush1.bf16.msra.mxu0 %v500
    %524 = vmatprep.subr.bf16.mxu0 0
    %525 = vmatpush1.bf16.msra.mxu0 %v501
    %526 = vmatprep.subr.bf16.mxu0 0
    %527 = vmatpush1.bf16.msra.mxu0 0
    %528 = vmatprep.subr.bf16.mxu0 0
    %529 = vmatpush1.bf16.msra.mxu0 0
    %530 = vmatprep.subr.bf16.mxu0 0
    %531 = vmatpush1.bf16.msra.mxu0 0
    %532 = vmatprep.subr.bf16.mxu0 0
    %533 = vmatpush1.bf16.msra.mxu0 0
    %534 = vmatprep.subr.bf16.mxu0 0
    %535 = vmatpush1.bf16.msra.mxu0 0
    %536 = vmatprep.subr.bf16.mxu0 0
    %537 = vmatpush1.bf16.msra.mxu0 0
    %538 = vmatprep.subr.bf16.mxu0 0
    %539 = vmatpush1.bf16.msra.mxu0 0
    %540 = vmatprep.subr.bf16.mxu0 0
    %541 = vmatpush1.bf16.msra.mxu0 0
    %542 = vmatprep.mubr.bf16.mxu0 0
    %543 = vmatmul.mubr.bf16.gmra.mrb[0].mxu0 %v460
    %v544 = vpop.f32.mrb[0].mxu0
    %v545 = vadd.f32 0.0, %v544
    %v546 = vpop.f32.mrb[0].mxu0
    %v547 = vpop.f32.mrb[0].mxu0
    %v548 = vadd.f32 0.0, %v547
    %v549 = vpop.f32.mrb[0].mxu0
    %550 = vmatprep.mubr.bf16.mxu0 0
    %551 = vmatmul.mubr.bf16.gmra.mrb[0].mxu0 %v461
    %v552 = vpop.f32.mrb[0].mxu0
    %v553 = vadd.f32 0.0, %v552
    %v554 = vpop.f32.mrb[0].mxu0
    %v555 = vpop.f32.mrb[0].mxu0
    %v556 = vadd.f32 0.0, %v555
    %v557 = vpop.f32.mrb[0].mxu0
    %558 = vdwg.mxu0
    %v575 = vunpack.c.l.b16 %v413
    %v576 = vunpack.c.l.b16 %v414
    %v577 = vunpack.c.l.b16 %v415
    %v578 = vunpack.c.l.b16 %v416
    %v579 = vunpack.c.l.b16 %v417
    %v580 = vunpack.c.l.b16 %v418
    %v581 = vunpack.c.l.b16 %v419
    %v582 = vunpack.c.l.b16 %v420
    %v583 = vunpack.c.l.b16 %v421
    %v584 = vunpack.c.l.b16 %v422
    %v585 = vunpack.c.l.b16 %v423
    %v586 = vunpack.c.l.b16 %v424
    %v587 = vunpack.c.l.b16 %v425
    %v588 = vunpack.c.l.b16 %v426
    %v589 = vunpack.c.l.b16 %v427
    %v590 = vunpack.c.l.b16 %v428
    %v591 = vpack.c.b16 %v576, %v575
    %v592 = vpack.c.b16 %v578, %v577
    %v593 = vpack.c.b16 %v580, %v579
    %v594 = vpack.c.b16 %v582, %v581
    %v595 = vpack.c.b16 %v584, %v583
    %v596 = vpack.c.b16 %v586, %v585
    %v597 = vpack.c.b16 %v588, %v587
    %v598 = vpack.c.b16 %v590, %v589
    %607 = vmatprep.subr.bf16.mxu0 0
    %608 = vmatpush1.bf16.msra.mxu0 %v591
    %609 = vmatprep.subr.bf16.mxu0 0
    %610 = vmatpush1.bf16.msra.mxu0 %v592
    %611 = vmatprep.subr.bf16.mxu0 0
    %612 = vmatpush1.bf16.msra.mxu0 %v593
    %613 = vmatprep.subr.bf16.mxu0 0
    %614 = vmatpush1.bf16.msra.mxu0 %v594
    %615 = vmatprep.subr.bf16.mxu0 0
    %616 = vmatpush1.bf16.msra.mxu0 %v595
    %617 = vmatprep.subr.bf16.mxu0 0
    %618 = vmatpush1.bf16.msra.mxu0 %v596
    %619 = vmatprep.subr.bf16.mxu0 0
    %620 = vmatpush1.bf16.msra.mxu0 %v597
    %621 = vmatprep.subr.bf16.mxu0 0
    %622 = vmatpush1.bf16.msra.mxu0 %v598
    %623 = vmatprep.subr.bf16.mxu0 0
    %624 = vmatpush1.bf16.msra.mxu0 0
    %625 = vmatprep.subr.bf16.mxu0 0
    %626 = vmatpush1.bf16.msra.mxu0 0
    %627 = vmatprep.subr.bf16.mxu0 0
    %628 = vmatpush1.bf16.msra.mxu0 0
    %629 = vmatprep.subr.bf16.mxu0 0
    %630 = vmatpush1.bf16.msra.mxu0 0
    %631 = vmatprep.subr.bf16.mxu0 0
    %632 = vmatpush1.bf16.msra.mxu0 0
    %633 = vmatprep.subr.bf16.mxu0 0
    %634 = vmatpush1.bf16.msra.mxu0 0
    %635 = vmatprep.subr.bf16.mxu0 0
    %636 = vmatpush1.bf16.msra.mxu0 0
    %637 = vmatprep.subr.bf16.mxu0 0
    %638 = vmatpush1.bf16.msra.mxu0 0
    %639 = vmatprep.mubr.bf16.mxu0 0
    %640 = vmatmul.mubr.bf16.gmra.mrb[0].mxu0 %v458
    %v641 = vpop.f32.mrb[0].mxu0
    %v642 = vadd.f32 %v545, %v641
    %v643 = vpop.f32.mrb[0].mxu0
    %v644 = vpop.f32.mrb[0].mxu0
    %v645 = vadd.f32 %v548, %v644
    %v646 = vpop.f32.mrb[0].mxu0
    %647 = vmatprep.mubr.bf16.mxu0 0
    %648 = vmatmul.mubr.bf16.gmra.mrb[0].mxu0 %v459
    %v649 = vpop.f32.mrb[0].mxu0
    %v650 = vadd.f32 %v553, %v649
    %v651 = vpop.f32.mrb[0].mxu0
    %v652 = vpop.f32.mrb[0].mxu0
    %v653 = vadd.f32 %v556, %v652
    %v654 = vpop.f32.mrb[0].mxu0
    %655 = vdwg.mxu0
    %v657 = vlaneseq
    %v658 = vshrl.u32 %v657, 7
    %v659 = vsub.s32 0, %v658
    %v660 = vrot.slane %v445, %v659
    %v662 = vadd.f32 %v642, %v660
    %v663 = vadd.f32 %v645, %v660
    %v664 = vadd.f32 %v650, %v660
    %v665 = vadd.f32 %v653, %v660
    %v666 = vmax.f32 %v662, 0.0
    %v667 = vmax.f32 %v663, 0.0
    %v668 = vmax.f32 %v664, 0.0
    %v669 = vmax.f32 %v665, 0.0
    %v670 = vld [vmem:[%s8] sm:$0xf]
    %v671 = vld [vmem:[%s8 + $0x4] sm:$0xf]
    %v672 = vld [vmem:[%s8 + $0x8] sm:$0xf]
    %v673 = vld [vmem:[%s8 + $0xc] sm:$0xf]
    %v674 = vld [vmem:[%s8 + $0x10] sm:$0xf]
    %v675 = vld [vmem:[%s8 + $0x14] sm:$0xf]
    %v676 = vld [vmem:[%s8 + $0x18] sm:$0xf]
    %v677 = vld [vmem:[%s8 + $0x1c] sm:$0xf]
    %v678 = vld [vmem:[%s8 + $0x20] sm:$0xf]
    %v679 = vld [vmem:[%s8 + $0x24] sm:$0xf]
    %v680 = vld [vmem:[%s8 + $0x28] sm:$0xf]
    %v681 = vld [vmem:[%s8 + $0x2c] sm:$0xf]
    %v682 = vld [vmem:[%s8 + $0x30] sm:$0xf]
    %v683 = vld [vmem:[%s8 + $0x34] sm:$0xf]
    %v684 = vld [vmem:[%s8 + $0x38] sm:$0xf]
    %v685 = vld [vmem:[%s8 + $0x3c] sm:$0xf]
    %v686 = vld [vmem:[%s9] sm:$0x1]
    %v688 = vlaneseq
    %v689 = vshrl.u32 %v688, 7
    %v690 = vsub.s32 0, %v689
    %v691 = vrot.slane %v686, %v690
    %v709 = vunpack.c.l.b16 %v670
    %v710 = vunpack.c.l.b16 %v671
    %v711 = vunpack.c.l.b16 %v672
    %v712 = vunpack.c.l.b16 %v673
    %v713 = vunpack.c.l.b16 %v674
    %v714 = vunpack.c.l.b16 %v675
    %v715 = vunpack.c.l.b16 %v676
    %v716 = vunpack.c.l.b16 %v677
    %v717 = vunpack.c.l.b16 %v678
    %v718 = vunpack.c.l.b16 %v679
    %v719 = vunpack.c.l.b16 %v680
    %v720 = vunpack.c.l.b16 %v681
    %v721 = vunpack.c.l.b16 %v682
    %v722 = vunpack.c.l.b16 %v683
    %v723 = vunpack.c.l.b16 %v684
    %v724 = vunpack.c.l.b16 %v685
    %v725 = vpack.c.b16 %v710, %v709
    %v726 = vpack.c.b16 %v712, %v711
    %v727 = vpack.c.b16 %v714, %v713
    %v728 = vpack.c.b16 %v716, %v715
    %v729 = vpack.c.b16 %v718, %v717
    %v730 = vpack.c.b16 %v720, %v719
    %v731 = vpack.c.b16 %v722, %v721
    %v732 = vpack.c.b16 %v724, %v723
    %741 = vmatprep.subr.bf16.mxu0 0
    %742 = vmatpush1.bf16.msra.mxu0 %v725
    %743 = vmatprep.subr.bf16.mxu0 0
    %744 = vmatpush1.bf16.msra.mxu0 %v726
    %745 = vmatprep.subr.bf16.mxu0 0
    %746 = vmatpush1.bf16.msra.mxu0 %v727
    %747 = vmatprep.subr.bf16.mxu0 0
    %748 = vmatpush1.bf16.msra.mxu0 %v728
    %749 = vmatprep.subr.bf16.mxu0 0
    %750 = vmatpush1.bf16.msra.mxu0 %v729
    %751 = vmatprep.subr.bf16.mxu0 0
    %752 = vmatpush1.bf16.msra.mxu0 %v730
    %753 = vmatprep.subr.bf16.mxu0 0
    %754 = vmatpush1.bf16.msra.mxu0 %v731
    %755 = vmatprep.subr.bf16.mxu0 0
    %756 = vmatpush1.bf16.msra.mxu0 %v732
    %757 = vmatprep.subr.bf16.mxu0 0
    %758 = vmatpush1.bf16.msra.mxu0 0
    %759 = vmatprep.subr.bf16.mxu0 0
    %760 = vmatpush1.bf16.msra.mxu0 0
    %761 = vmatprep.subr.bf16.mxu0 0
    %762 = vmatpush1.bf16.msra.mxu0 0
    %763 = vmatprep.subr.bf16.mxu0 0
    %764 = vmatpush1.bf16.msra.mxu0 0
    %765 = vmatprep.subr.bf16.mxu0 0
    %766 = vmatpush1.bf16.msra.mxu0 0
    %767 = vmatprep.subr.bf16.mxu0 0
    %768 = vmatpush1.bf16.msra.mxu0 0
    %769 = vmatprep.subr.bf16.mxu0 0
    %770 = vmatpush1.bf16.msra.mxu0 0
    %771 = vmatprep.subr.bf16.mxu0 0
    %772 = vmatpush1.bf16.msra.mxu0 0
    %773 = vmatprep.mubr.bf16.mxu0 0
    %774 = vmatmul.mubr.bf16.gmra.mrb[0].mxu0 %v201
    %v775 = vpop.f32.mrb[0].mxu0
    %v776 = vadd.f32 %v691, %v775
    %v777 = vpop.f32.mrb[0].mxu0
    %v778 = vpop.f32.mrb[0].mxu0
    %v779 = vadd.f32 %v691, %v778
    %v780 = vpop.f32.mrb[0].mxu0
    %781 = vmatprep.mubr.bf16.mxu0 0
    %782 = vmatmul.mubr.bf16.gmra.mrb[0].mxu0 %v202
    %v783 = vpop.f32.mrb[0].mxu0
    %v784 = vadd.f32 %v691, %v783
    %v785 = vpop.f32.mrb[0].mxu0
    %v786 = vpop.f32.mrb[0].mxu0
    %v787 = vadd.f32 %v691, %v786
    %v788 = vpop.f32.mrb[0].mxu0
    %789 = vdwg.mxu0
    %v790 = vmax.f32 %v776, 0.0
    %v791 = vmax.f32 %v779, 0.0
    %v792 = vmax.f32 %v784, 0.0
    %v793 = vmax.f32 %v787, 0.0
    %794 = vrot.lane.b32.xlu0 %v790, 8
    %v795 = vpop.permute.xlu0 %794
    %796 = vrot.lane.b32.xlu0 %v791, 8
    %v797 = vpop.permute.xlu0 %796
    %798 = vrot.lane.b32.xlu0 %v792, 8
    %v799 = vpop.permute.xlu0 %798
    %800 = vrot.lane.b32.xlu0 %v793, 8
    %v801 = vpop.permute.xlu0 %800
    %v802 = vadd.f32 %v666, %v795
    %v803 = vadd.f32 %v667, %v797
    %v804 = vadd.f32 %v668, %v799
    %v805 = vadd.f32 %v669, %v801
    %806 = vst [vmem:[#allocation2] sm:$0xff] %v802
    %807 = vst [vmem:[#allocation2 + $0x8] sm:$0xff] %v803
    %808 = vst [vmem:[#allocation2 + $0x10] sm:$0xff] %v804
    %809 = vst [vmem:[#allocation2 + $0x18] sm:$0xff] %v805
    %v810 = vld [vmem:[#allocation2] ss:$2 sm:$0xff]
    %s811 = scalar_lea.vmem [#allocation2], 16
    %v812 = vld [vmem:[%s811] ss:$2 sm:$0xff]
    %s813 = scalar_lea.vmem [#allocation2], 1
    %v814 = vld [vmem:[%s813] ss:$2 sm:$0xff]
    %s815 = scalar_lea.vmem [#allocation2], 17
    %v816 = vld [vmem:[%s815] ss:$2 sm:$0xff]
    %v817 = vpack.c.bf16 %v812, %v810
    %v818 = vld [vmem:[%s10] sm:$0xf]
    %v819 = vld [vmem:[%s10 + $0x4] sm:$0xf]
    %v820 = vld [vmem:[%s10 + $0x8] sm:$0xf]
    %v821 = vld [vmem:[%s10 + $0xc] sm:$0xf]
    %v822 = vld [vmem:[%s10 + $0x10] sm:$0xf]
    %v823 = vld [vmem:[%s10 + $0x14] sm:$0xf]
    %v824 = vld [vmem:[%s10 + $0x18] sm:$0xf]
    %v825 = vld [vmem:[%s10 + $0x1c] sm:$0xf]
    %v826 = vld [vmem:[%s10 + $0x20] sm:$0xf]
    %v827 = vld [vmem:[%s10 + $0x24] sm:$0xf]
    %v828 = vld [vmem:[%s10 + $0x28] sm:$0xf]
    %v829 = vld [vmem:[%s10 + $0x2c] sm:$0xf]
    %v830 = vld [vmem:[%s10 + $0x30] sm:$0xf]
    %v831 = vld [vmem:[%s10 + $0x34] sm:$0xf]
    %v832 = vld [vmem:[%s10 + $0x38] sm:$0xf]
    %v833 = vld [vmem:[%s10 + $0x3c] sm:$0xf]
    %v834 = vpack.c.bf16 %v816, %v814
    %v835 = vld [vmem:[%s11] sm:$0xf]
    %v836 = vld [vmem:[%s11 + $0x4] sm:$0xf]
    %v837 = vld [vmem:[%s11 + $0x8] sm:$0xf]
    %v838 = vld [vmem:[%s11 + $0xc] sm:$0xf]
    %v839 = vld [vmem:[%s11 + $0x10] sm:$0xf]
    %v840 = vld [vmem:[%s11 + $0x14] sm:$0xf]
    %v841 = vld [vmem:[%s11 + $0x18] sm:$0xf]
    %v842 = vld [vmem:[%s11 + $0x1c] sm:$0xf]
    %v843 = vld [vmem:[%s11 + $0x20] sm:$0xf]
    %v844 = vld [vmem:[%s11 + $0x24] sm:$0xf]
    %v845 = vld [vmem:[%s11 + $0x28] sm:$0xf]
    %v846 = vld [vmem:[%s11 + $0x2c] sm:$0xf]
    %v847 = vld [vmem:[%s11 + $0x30] sm:$0xf]
    %v848 = vld [vmem:[%s11 + $0x34] sm:$0xf]
    %v849 = vld [vmem:[%s11 + $0x38] sm:$0xf]
    %v850 = vld [vmem:[%s11 + $0x3c] sm:$0xf]
    %v867 = vunpack.c.l.b16 %v835
    %v868 = vunpack.c.l.b16 %v836
    %v869 = vunpack.c.l.b16 %v837
    %v870 = vunpack.c.l.b16 %v838
    %v871 = vunpack.c.l.b16 %v839
    %v872 = vunpack.c.l.b16 %v840
    %v873 = vunpack.c.l.b16 %v841
    %v874 = vunpack.c.l.b16 %v842
    %v875 = vunpack.c.l.b16 %v843
    %v876 = vunpack.c.l.b16 %v844
    %v877 = vunpack.c.l.b16 %v845
    %v878 = vunpack.c.l.b16 %v846
    %v879 = vunpack.c.l.b16 %v847
    %v880 = vunpack.c.l.b16 %v848
    %v881 = vunpack.c.l.b16 %v849
    %v882 = vunpack.c.l.b16 %v850
    %v883 = vpack.c.b16 %v868, %v867
    %v884 = vpack.c.b16 %v870, %v869
    %v885 = vpack.c.b16 %v872, %v871
    %v886 = vpack.c.b16 %v874, %v873
    %v887 = vpack.c.b16 %v876, %v875
    %v888 = vpack.c.b16 %v878, %v877
    %v889 = vpack.c.b16 %v880, %v879
    %v890 = vpack.c.b16 %v882, %v881
    %899 = vmatprep.subr.bf16.mxu0 0
    %900 = vmatpush1.bf16.msra.mxu0 %v883
    %901 = vmatprep.subr.bf16.mxu0 0
    %902 = vmatpush1.bf16.msra.mxu0 %v884
    %903 = vmatprep.subr.bf16.mxu0 0
    %904 = vmatpush1.bf16.msra.mxu0 %v885
    %905 = vmatprep.subr.bf16.mxu0 0
    %906 = vmatpush1.bf16.msra.mxu0 %v886
    %907 = vmatprep.subr.bf16.mxu0 0
    %908 = vmatpush1.bf16.msra.mxu0 %v887
    %909 = vmatprep.subr.bf16.mxu0 0
    %910 = vmatpush1.bf16.msra.mxu0 %v888
    %911 = vmatprep.subr.bf16.mxu0 0
    %912 = vmatpush1.bf16.msra.mxu0 %v889
    %913 = vmatprep.subr.bf16.mxu0 0
    %914 = vmatpush1.bf16.msra.mxu0 %v890
    %915 = vmatprep.subr.bf16.mxu0 0
    %916 = vmatpush1.bf16.msra.mxu0 0
    %917 = vmatprep.subr.bf16.mxu0 0
    %918 = vmatpush1.bf16.msra.mxu0 0
    %919 = vmatprep.subr.bf16.mxu0 0
    %920 = vmatpush1.bf16.msra.mxu0 0
    %921 = vmatprep.subr.bf16.mxu0 0
    %922 = vmatpush1.bf16.msra.mxu0 0
    %923 = vmatprep.subr.bf16.mxu0 0
    %924 = vmatpush1.bf16.msra.mxu0 0
    %925 = vmatprep.subr.bf16.mxu0 0
    %926 = vmatpush1.bf16.msra.mxu0 0
    %927 = vmatprep.subr.bf16.mxu0 0
    %928 = vmatpush1.bf16.msra.mxu0 0
    %929 = vmatprep.subr.bf16.mxu0 0
    %930 = vmatpush1.bf16.msra.mxu0 0
    %931 = vmatprep.mubr.bf16.mxu0 0
    %932 = vmatmul.mubr.bf16.gmra.mrb[0].mxu0 %v834
    %v933 = vpop.f32.mrb[0].mxu0
    %v934 = vadd.f32 0.0, %v933
    %v935 = vpop.f32.mrb[0].mxu0
    %v936 = vpop.f32.mrb[0].mxu0
    %v937 = vadd.f32 0.0, %v936
    %v938 = vpop.f32.mrb[0].mxu0
    %939 = vdwg.mxu0
    %v956 = vunpack.c.l.b16 %v818
    %v957 = vunpack.c.l.b16 %v819
    %v958 = vunpack.c.l.b16 %v820
    %v959 = vunpack.c.l.b16 %v821
    %v960 = vunpack.c.l.b16 %v822
    %v961 = vunpack.c.l.b16 %v823
    %v962 = vunpack.c.l.b16 %v824
    %v963 = vunpack.c.l.b16 %v825
    %v964 = vunpack.c.l.b16 %v826
    %v965 = vunpack.c.l.b16 %v827
    %v966 = vunpack.c.l.b16 %v828
    %v967 = vunpack.c.l.b16 %v829
    %v968 = vunpack.c.l.b16 %v830
    %v969 = vunpack.c.l.b16 %v831
    %v970 = vunpack.c.l.b16 %v832
    %v971 = vunpack.c.l.b16 %v833
    %v972 = vpack.c.b16 %v957, %v956
    %v973 = vpack.c.b16 %v959, %v958
    %v974 = vpack.c.b16 %v961, %v960
    %v975 = vpack.c.b16 %v963, %v962
    %v976 = vpack.c.b16 %v965, %v964
    %v977 = vpack.c.b16 %v967, %v966
    %v978 = vpack.c.b16 %v969, %v968
    %v979 = vpack.c.b16 %v971, %v970
    %988 = vmatprep.subr.bf16.mxu0 0
    %989 = vmatpush1.bf16.msra.mxu0 %v972
    %990 = vmatprep.subr.bf16.mxu0 0
    %991 = vmatpush1.bf16.msra.mxu0 %v973
    %992 = vmatprep.subr.bf16.mxu0 0
    %993 = vmatpush1.bf16.msra.mxu0 %v974
    %994 = vmatprep.subr.bf16.mxu0 0
    %995 = vmatpush1.bf16.msra.mxu0 %v975
    %996 = vmatprep.subr.bf16.mxu0 0
    %997 = vmatpush1.bf16.msra.mxu0 %v976
    %998 = vmatprep.subr.bf16.mxu0 0
    %999 = vmatpush1.bf16.msra.mxu0 %v977
    %1000 = vmatprep.subr.bf16.mxu0 0
    %1001 = vmatpush1.bf16.msra.mxu0 %v978
    %1002 = vmatprep.subr.bf16.mxu0 0
    %1003 = vmatpush1.bf16.msra.mxu0 %v979
    %1004 = vmatprep.subr.bf16.mxu0 0
    %1005 = vmatpush1.bf16.msra.mxu0 0
    %1006 = vmatprep.subr.bf16.mxu0 0
    %1007 = vmatpush1.bf16.msra.mxu0 0
    %1008 = vmatprep.subr.bf16.mxu0 0
    %1009 = vmatpush1.bf16.msra.mxu0 0
    %1010 = vmatprep.subr.bf16.mxu0 0
    %1011 = vmatpush1.bf16.msra.mxu0 0
    %1012 = vmatprep.subr.bf16.mxu0 0
    %1013 = vmatpush1.bf16.msra.mxu0 0
    %1014 = vmatprep.subr.bf16.mxu0 0
    %1015 = vmatpush1.bf16.msra.mxu0 0
    %1016 = vmatprep.subr.bf16.mxu0 0
    %1017 = vmatpush1.bf16.msra.mxu0 0
    %1018 = vmatprep.subr.bf16.mxu0 0
    %1019 = vmatpush1.bf16.msra.mxu0 0
    %1020 = vmatprep.mubr.bf16.mxu0 0
    %1021 = vmatmul.mubr.bf16.gmra.mrb[0].mxu0 %v817
    %v1022 = vpop.f32.mrb[0].mxu0
    %v1023 = vadd.f32 %v934, %v1022
    %v1024 = vpop.f32.mrb[0].mxu0
    %v1025 = vpop.f32.mrb[0].mxu0
    %v1026 = vadd.f32 %v937, %v1025
    %v1027 = vpop.f32.mrb[0].mxu0
    %1028 = vdwg.mxu0
    %v1029 = vld [vmem:[%s12] sm:$0x1]
    %v1031 = vlaneseq
    %v1032 = vshrl.u32 %v1031, 7
    %v1033 = vsub.s32 0, %v1032
    %v1034 = vrot.slane %v1029, %v1033
    %v1036 = vadd.f32 %v1023, %v1034
    %v1037 = vadd.f32 %v1026, %v1034
    %v1038 = vmax.f32 %v1036, 0.0
    %v1039 = vmax.f32 %v1037, 0.0
    %1040 = vst [vmem:[%s13] sm:$0xff] %v1038
    %1041 = vst [vmem:[%s13 + $0x8] sm:$0xff] %v1039
    // Predicated region
    $region78: #{_lambda_.3} parent=1 // pred_check
      _
    $region79: #{_lambda_.3} parent=1 // pred_check_branch
      %1043 = sbr.rel (0) target = $region81
    $region80: #{_lambda_.3} parent=1 // pred_region
      _
    $region81: #{_lambda_.3} parent=1 // pred_fallthru
      _
    // Predicated region
    $region82: #{_lambda_.3} parent=1 // pred_check
      _
    $region83: #{_lambda_.3} parent=1 // pred_check_branch
      %1045 = sbr.rel (0) target = $region85
    $region84: #{_lambda_.3} parent=1 // pred_region
      _
    $region85: #{_lambda_.3} parent=1 // pred_fallthru
      _
    %1046 = vsyncpa [#allocation4], 1
    %1047 = vsyncpa [#allocation6], 1
    %1048 = vsyncpa [#allocation9], 1
    %1049 = vsyncpa [#allocation12], 1

// kernel: _lambda_.4
$region0: #{_lambda_.4}
  #allocation0 [shape = 'u32[]', space=smem, size = 0x4, offset = 0x4, fixed_abs, tag = 'smem constant byte address 0x4 - core index']
  #allocation1 [shape = 'u32[144,128]{1,0:T(1,128)}', space=vmem, size = 0x12000, scoped, tag = 'internal scratch']
  #allocation2 [shape = 'f32[16,128]{1,0:T(8,128)}', space=vmem, size = 0x2000, scoped, tag = 'scratch operand']
  %s0 = inlined_call_operand.vmem [shape: f32[16,128], index: 0, kind: input, shape index: {}]
  %s1 = inlined_call_operand.hbm [shape: f32[16,1], index: 1, kind: input, shape index: {}]
  %s2 = inlined_call_operand.vmem [shape: bf16[128,128], index: 2, kind: input, shape index: {}]
  %s3 = inlined_call_operand.vmem [shape: bf16[128,128], index: 3, kind: input, shape index: {}]
  %s4 = inlined_call_operand.hbm [shape: f32[1,128], index: 4, kind: input, shape index: {}]
  %s5 = inlined_call_operand.vmem [shape: bf16[128,128], index: 5, kind: input, shape index: {}]
  %s6 = inlined_call_operand.vmem [shape: bf16[128,128], index: 6, kind: input, shape index: {}]
  %s7 = inlined_call_operand.hbm [shape: f32[1,128], index: 7, kind: input, shape index: {}]
  %s8 = inlined_call_operand.vmem [shape: bf16[128,128], index: 8, kind: input, shape index: {}]
  %s9 = inlined_call_operand.hbm [shape: f32[1,128], index: 9, kind: input, shape index: {}]
  %s10 = inlined_call_operand.vmem [shape: bf16[128,128], index: 10, kind: input, shape index: {}]
  %s11 = inlined_call_operand.vmem [shape: bf16[128,128], index: 11, kind: input, shape index: {}]
  %s12 = inlined_call_operand.vmem [shape: f32[1,128], index: 12, kind: input, shape index: {}]
  %s13 = inlined_call_operand.vmem [shape: f32[8,128], index: 13, kind: output, shape index: {}]
  %s14 = sld [smem:[#allocation0]]
  $region78: #{_lambda_.4} parent=0
    _
  %s16 = ssub.s32 1, %s14
  %s17 = scalar_select 0, %s16, %s14
  $region1: #{_lambda_.4} parent=0
    #allocation3 [shape = 'u8[8192]{0}', space=vmem, size = 0x2000, scoped, tag = 'input window, operand 1, single buffered']
    #allocation4 [shape = 's32[1]{0}', space=sflag, size = 0x4, scoped, tag = 'scoped memory for _lambda_.4']
    #allocation5 [shape = 'u8[512]{0}', space=vmem, size = 0x400, scoped, tag = 'input window, operand 4, single buffered']
    #allocation6 [shape = 's32[1]{0}', space=sflag, size = 0x4, scoped, tag = 'scoped memory for _lambda_.4']
    #allocation7 [shape = 'u8[512]{0}', space=vmem, size = 0x400, scoped, tag = 'input window, operand 7, single buffered']
    #allocation8 [shape = 'u8[512]{0}', space=vmem, size = 0x400, scoped, tag = 'input window, operand 9, single buffered']
    #allocation9 [shape = 's32[1]{0}', space=sflag, size = 0x4, scoped, tag = 'scoped memory for _lambda_.4']
    %18 = vsyncpa [#allocation4], 0
    %19 = vsyncpa [#allocation6], 0
    %20 = vsyncpa [#allocation9], 0
    // Predicated region
    $region2: #{_lambda_.4} parent=1 // pred_check
      _
    $region3: #{_lambda_.4} parent=1 // pred_check_branch
      %22 = sbr.rel (0) target = $region5
    $region4: #{_lambda_.4} parent=1 // pred_region
      _
    $region5: #{_lambda_.4} parent=1 // pred_fallthru
      _
    // Predicated region
    $region6: #{_lambda_.4} parent=1 // pred_check
      _
    $region7: #{_lambda_.4} parent=1 // pred_check_branch
      %24 = sbr.rel (0) target = $region9
    $region8: #{_lambda_.4} parent=1 // pred_region
      %s26 = ssub.s32 256, 256
      %27 = vsyncadd [#allocation4], %s26
      %s28 = sshll.u32 [#allocation3], 4
      %s29 = int_to_ptr.vmem [resolvable:$true] %s28
      %34 = dma.hbm_to_vmem [thread:$0]  %s1, 256, %s29, [#allocation4], 128, 128, 8
    $region9: #{_lambda_.4} parent=1 // pred_fallthru
      _
    // Predicated region
    $region10: #{_lambda_.4} parent=1 // pred_check
      _
    $region11: #{_lambda_.4} parent=1 // pred_check_branch
      %36 = sbr.rel (0) target = $region13
    $region12: #{_lambda_.4} parent=1 // pred_region
      _
    $region13: #{_lambda_.4} parent=1 // pred_fallthru
      _
    // Predicated region
    $region14: #{_lambda_.4} parent=1 // pred_check
      _
    $region15: #{_lambda_.4} parent=1 // pred_check_branch
      %38 = sbr.rel (0) target = $region17
    $region16: #{_lambda_.4} parent=1 // pred_region
      _
    $region17: #{_lambda_.4} parent=1 // pred_fallthru
      _
    // Predicated region
    $region18: #{_lambda_.4} parent=1 // pred_check
      _
    $region19: #{_lambda_.4} parent=1 // pred_check_branch
      %40 = sbr.rel (0) target = $region21
    $region20: #{_lambda_.4} parent=1 // pred_region
      %s42 = ssub.s32 16, 16
      %43 = vsyncadd [#allocation6], %s42
      %s45 = sshll.u32 [#allocation5], 4
      %s46 = int_to_ptr.vmem [resolvable:$true] %s45
      %48 = dma.hbm_to_vmem [thread:$0]  %s4, 16, %s46, [#allocation6]
    $region21: #{_lambda_.4} parent=1 // pred_fallthru
      _
    // Predicated region
    $region22: #{_lambda_.4} parent=1 // pred_check
      _
    $region23: #{_lambda_.4} parent=1 // pred_check_branch
      %50 = sbr.rel (0) target = $region25
    $region24: #{_lambda_.4} parent=1 // pred_region
      _
    $region25: #{_lambda_.4} parent=1 // pred_fallthru
      _
    // Predicated region
    $region26: #{_lambda_.4} parent=1 // pred_check
      _
    $region27: #{_lambda_.4} parent=1 // pred_check_branch
      %52 = sbr.rel (0) target = $region29
    $region28: #{_lambda_.4} parent=1 // pred_region
      _
    $region29: #{_lambda_.4} parent=1 // pred_fallthru
      _
    // Predicated region
    $region30: #{_lambda_.4} parent=1 // pred_check
      _
    $region31: #{_lambda_.4} parent=1 // pred_check_branch
      %54 = sbr.rel (0) target = $region33
    $region32: #{_lambda_.4} parent=1 // pred_region
      %s56 = ssub.s32 16, 16
      %57 = vsyncadd [#allocation6], %s56
      %s59 = sshll.u32 [#allocation7], 4
      %s60 = int_to_ptr.vmem [resolvable:$true] %s59
      %62 = dma.hbm_to_vmem [thread:$0]  %s7, 16, %s60, [#allocation6]
    $region33: #{_lambda_.4} parent=1 // pred_fallthru
      _
    // Predicated region
    $region34: #{_lambda_.4} parent=1 // pred_check
      _
    $region35: #{_lambda_.4} parent=1 // pred_check_branch
      %64 = sbr.rel (0) target = $region37
    $region36: #{_lambda_.4} parent=1 // pred_region
      _
    $region37: #{_lambda_.4} parent=1 // pred_fallthru
      _
    // Predicated region
    $region38: #{_lambda_.4} parent=1 // pred_check
      _
    $region39: #{_lambda_.4} parent=1 // pred_check_branch
      %66 = sbr.rel (0) target = $region41
    $region40: #{_lambda_.4} parent=1 // pred_region
      %s68 = ssub.s32 16, 16
      %69 = vsyncadd [#allocation9], %s68
      %s71 = sshll.u32 [#allocation8], 4
      %s72 = int_to_ptr.vmem [resolvable:$true] %s71
      %74 = dma.hbm_to_vmem [thread:$0]  %s9, 16, %s72, [#allocation9]
    $region41: #{_lambda_.4} parent=1 // pred_fallthru
      _
    // Predicated region
    $region42: #{_lambda_.4} parent=1 // pred_check
      _
    $region43: #{_lambda_.4} parent=1 // pred_check_branch
      %76 = sbr.rel (0) target = $region45
    $region44: #{_lambda_.4} parent=1 // pred_region
      _
    $region45: #{_lambda_.4} parent=1 // pred_fallthru
      _
    // Predicated region
    $region46: #{_lambda_.4} parent=1 // pred_check
      _
    $region47: #{_lambda_.4} parent=1 // pred_check_branch
      %78 = sbr.rel (0) target = $region49
    $region48: #{_lambda_.4} parent=1 // pred_region
      _
    $region49: #{_lambda_.4} parent=1 // pred_fallthru
      _
    // Predicated region
    $region50: #{_lambda_.4} parent=1 // pred_check
      _
    $region51: #{_lambda_.4} parent=1 // pred_check_branch
      %80 = sbr.rel (0) target = $region53
    $region52: #{_lambda_.4} parent=1 // pred_region
      _
    $region53: #{_lambda_.4} parent=1 // pred_fallthru
      _
    // Predicated region
    $region54: #{_lambda_.4} parent=1 // pred_check
      _
    $region55: #{_lambda_.4} parent=1 // pred_check_branch
      %82 = sbr.rel (0) target = $region57
    $region56: #{_lambda_.4} parent=1 // pred_region
      %83 = dma.done [#allocation4], 256
    $region57: #{_lambda_.4} parent=1 // pred_fallthru
      _
    // Predicated region
    $region58: #{_lambda_.4} parent=1 // pred_check
      _
    $region59: #{_lambda_.4} parent=1 // pred_check_branch
      %85 = sbr.rel (0) target = $region61
    $region60: #{_lambda_.4} parent=1 // pred_region
      %86 = dma.done [#allocation6], 16
    $region61: #{_lambda_.4} parent=1 // pred_fallthru
      _
    // Predicated region
    $region62: #{_lambda_.4} parent=1 // pred_check
      _
    $region63: #{_lambda_.4} parent=1 // pred_check_branch
      %88 = sbr.rel (0) target = $region65
    $region64: #{_lambda_.4} parent=1 // pred_region
      %89 = dma.done [#allocation6], 16
    $region65: #{_lambda_.4} parent=1 // pred_fallthru
      _
    // Predicated region
    $region66: #{_lambda_.4} parent=1 // pred_check
      _
    $region67: #{_lambda_.4} parent=1 // pred_check_branch
      %91 = sbr.rel (0) target = $region69
    $region68: #{_lambda_.4} parent=1 // pred_region
      %92 = dma.done [#allocation9], 16
    $region69: #{_lambda_.4} parent=1 // pred_fallthru
      _
    %v94 = vld [vmem:[%s0] sm:$0xff]
    %v95 = vld [vmem:[%s0 + $0x8] sm:$0xff]
    %v96 = vld [vmem:[#allocation3] sm:$0xff]
    %v97 = vld [vmem:[#allocation3 + $0x8] sm:$0xff]
    %v98 = vld [vmem:[%s2] sm:$0xf]
    %v99 = vld [vmem:[%s2 + $0x4] sm:$0xf]
    %v100 = vld [vmem:[%s2 + $0x8] sm:$0xf]
    %v101 = vld [vmem:[%s2 + $0xc] sm:$0xf]
    %v102 = vld [vmem:[%s2 + $0x10] sm:$0xf]
    %v103 = vld [vmem:[%s2 + $0x14] sm:$0xf]
    %v104 = vld [vmem:[%s2 + $0x18] sm:$0xf]
    %v105 = vld [vmem:[%s2 + $0x1c] sm:$0xf]
    %v106 = vld [vmem:[%s2 + $0x20] sm:$0xf]
    %v107 = vld [vmem:[%s2 + $0x24] sm:$0xf]
    %v108 = vld [vmem:[%s2 + $0x28] sm:$0xf]
    %v109 = vld [vmem:[%s2 + $0x2c] sm:$0xf]
    %v110 = vld [vmem:[%s2 + $0x30] sm:$0xf]
    %v111 = vld [vmem:[%s2 + $0x34] sm:$0xf]
    %v112 = vld [vmem:[%s2 + $0x38] sm:$0xf]
    %v113 = vld [vmem:[%s2 + $0x3c] sm:$0xf]
    %v114 = vld [vmem:[%s3] sm:$0xf]
    %v115 = vld [vmem:[%s3 + $0x4] sm:$0xf]
    %v116 = vld [vmem:[%s3 + $0x8] sm:$0xf]
    %v117 = vld [vmem:[%s3 + $0xc] sm:$0xf]
    %v118 = vld [vmem:[%s3 + $0x10] sm:$0xf]
    %v119 = vld [vmem:[%s3 + $0x14] sm:$0xf]
    %v120 = vld [vmem:[%s3 + $0x18] sm:$0xf]
    %v121 = vld [vmem:[%s3 + $0x1c] sm:$0xf]
    %v122 = vld [vmem:[%s3 + $0x20] sm:$0xf]
    %v123 = vld [vmem:[%s3 + $0x24] sm:$0xf]
    %v124 = vld [vmem:[%s3 + $0x28] sm:$0xf]
    %v125 = vld [vmem:[%s3 + $0x2c] sm:$0xf]
    %v126 = vld [vmem:[%s3 + $0x30] sm:$0xf]
    %v127 = vld [vmem:[%s3 + $0x34] sm:$0xf]
    %v128 = vld [vmem:[%s3 + $0x38] sm:$0xf]
    %v129 = vld [vmem:[%s3 + $0x3c] sm:$0xf]
    %v130 = vld [vmem:[#allocation5] sm:$0x1]
    %v131 = vrot.slane %v94, 1
    %v132 = vrot.slane %v95, 1
    %v133 = vlaneseq
    %v134 = vshrl.u32 %v133, 7
    %vm135 = vcmp.lt.s32.totalorder %v134, 7
    %v136 = vsel %vm135, %v131, %v132
    %v137 = vsel %vm135, %v132, %v131
    %139 = vset.pattern.permute.xlu0 0
    %140 = vperm.xlu0 %139, %v96
    %v141 = vpop.permute.xlu0 %140
    %144 = vset.pattern.permute.xlu0 0
    %145 = vperm.xlu0 %144, %v97
    %v146 = vpop.permute.xlu0 %145
    %v148 = vmul.f32 %v136, %v141
    %v149 = vmul.f32 %v137, %v146
    %v150 = vpack.c.bf16 %v95, %v94
    %v151 = vpack.c.bf16 %v149, %v148
    %v168 = vunpack.c.l.b16 %v114
    %v169 = vunpack.c.l.b16 %v115
    %v170 = vunpack.c.l.b16 %v116
    %v171 = vunpack.c.l.b16 %v117
    %v172 = vunpack.c.l.b16 %v118
    %v173 = vunpack.c.l.b16 %v119
    %v174 = vunpack.c.l.b16 %v120
    %v175 = vunpack.c.l.b16 %v121
    %v176 = vunpack.c.l.b16 %v122
    %v177 = vunpack.c.l.b16 %v123
    %v178 = vunpack.c.l.b16 %v124
    %v179 = vunpack.c.l.b16 %v125
    %v180 = vunpack.c.l.b16 %v126
    %v181 = vunpack.c.l.b16 %v127
    %v182 = vunpack.c.l.b16 %v128
    %v183 = vunpack.c.l.b16 %v129
    %v184 = vpack.c.b16 %v169, %v168
    %v185 = vpack.c.b16 %v171, %v170
    %v186 = vpack.c.b16 %v173, %v172
    %v187 = vpack.c.b16 %v175, %v174
    %v188 = vpack.c.b16 %v177, %v176
    %v189 = vpack.c.b16 %v179, %v178
    %v190 = vpack.c.b16 %v181, %v180
    %v191 = vpack.c.b16 %v183, %v182
    %200 = vmatprep.subr.bf16.mxu0 0
    %201 = vmatpush1.bf16.msra.mxu0 %v184
    %202 = vmatprep.subr.bf16.mxu0 0
    %203 = vmatpush1.bf16.msra.mxu0 %v185
    %204 = vmatprep.subr.bf16.mxu0 0
    %205 = vmatpush1.bf16.msra.mxu0 %v186
    %206 = vmatprep.subr.bf16.mxu0 0
    %207 = vmatpush1.bf16.msra.mxu0 %v187
    %208 = vmatprep.subr.bf16.mxu0 0
    %209 = vmatpush1.bf16.msra.mxu0 %v188
    %210 = vmatprep.subr.bf16.mxu0 0
    %211 = vmatpush1.bf16.msra.mxu0 %v189
    %212 = vmatprep.subr.bf16.mxu0 0
    %213 = vmatpush1.bf16.msra.mxu0 %v190
    %214 = vmatprep.subr.bf16.mxu0 0
    %215 = vmatpush1.bf16.msra.mxu0 %v191
    %216 = vmatprep.subr.bf16.mxu0 0
    %217 = vmatpush1.bf16.msra.mxu0 0
    %218 = vmatprep.subr.bf16.mxu0 0
    %219 = vmatpush1.bf16.msra.mxu0 0
    %220 = vmatprep.subr.bf16.mxu0 0
    %221 = vmatpush1.bf16.msra.mxu0 0
    %222 = vmatprep.subr.bf16.mxu0 0
    %223 = vmatpush1.bf16.msra.mxu0 0
    %224 = vmatprep.subr.bf16.mxu0 0
    %225 = vmatpush1.bf16.msra.mxu0 0
    %226 = vmatprep.subr.bf16.mxu0 0
    %227 = vmatpush1.bf16.msra.mxu0 0
    %228 = vmatprep.subr.bf16.mxu0 0
    %229 = vmatpush1.bf16.msra.mxu0 0
    %230 = vmatprep.subr.bf16.mxu0 0
    %231 = vmatpush1.bf16.msra.mxu0 0
    %232 = vmatprep.mubr.bf16.mxu0 0
    %233 = vmatmul.mubr.bf16.gmra.mrb[0].mxu0 %v151
    %v234 = vpop.f32.mrb[0].mxu0
    %v235 = vadd.f32 0.0, %v234
    %v236 = vpop.f32.mrb[0].mxu0
    %v237 = vpop.f32.mrb[0].mxu0
    %v238 = vadd.f32 0.0, %v237
    %v239 = vpop.f32.mrb[0].mxu0
    %240 = vdwg.mxu0
    %v257 = vunpack.c.l.b16 %v98
    %v258 = vunpack.c.l.b16 %v99
    %v259 = vunpack.c.l.b16 %v100
    %v260 = vunpack.c.l.b16 %v101
    %v261 = vunpack.c.l.b16 %v102
    %v262 = vunpack.c.l.b16 %v103
    %v263 = vunpack.c.l.b16 %v104
    %v264 = vunpack.c.l.b16 %v105
    %v265 = vunpack.c.l.b16 %v106
    %v266 = vunpack.c.l.b16 %v107
    %v267 = vunpack.c.l.b16 %v108
    %v268 = vunpack.c.l.b16 %v109
    %v269 = vunpack.c.l.b16 %v110
    %v270 = vunpack.c.l.b16 %v111
    %v271 = vunpack.c.l.b16 %v112
    %v272 = vunpack.c.l.b16 %v113
    %v273 = vpack.c.b16 %v258, %v257
    %v274 = vpack.c.b16 %v260, %v259
    %v275 = vpack.c.b16 %v262, %v261
    %v276 = vpack.c.b16 %v264, %v263
    %v277 = vpack.c.b16 %v266, %v265
    %v278 = vpack.c.b16 %v268, %v267
    %v279 = vpack.c.b16 %v270, %v269
    %v280 = vpack.c.b16 %v272, %v271
    %289 = vmatprep.subr.bf16.mxu0 0
    %290 = vmatpush1.bf16.msra.mxu0 %v273
    %291 = vmatprep.subr.bf16.mxu0 0
    %292 = vmatpush1.bf16.msra.mxu0 %v274
    %293 = vmatprep.subr.bf16.mxu0 0
    %294 = vmatpush1.bf16.msra.mxu0 %v275
    %295 = vmatprep.subr.bf16.mxu0 0
    %296 = vmatpush1.bf16.msra.mxu0 %v276
    %297 = vmatprep.subr.bf16.mxu0 0
    %298 = vmatpush1.bf16.msra.mxu0 %v277
    %299 = vmatprep.subr.bf16.mxu0 0
    %300 = vmatpush1.bf16.msra.mxu0 %v278
    %301 = vmatprep.subr.bf16.mxu0 0
    %302 = vmatpush1.bf16.msra.mxu0 %v279
    %303 = vmatprep.subr.bf16.mxu0 0
    %304 = vmatpush1.bf16.msra.mxu0 %v280
    %305 = vmatprep.subr.bf16.mxu0 0
    %306 = vmatpush1.bf16.msra.mxu0 0
    %307 = vmatprep.subr.bf16.mxu0 0
    %308 = vmatpush1.bf16.msra.mxu0 0
    %309 = vmatprep.subr.bf16.mxu0 0
    %310 = vmatpush1.bf16.msra.mxu0 0
    %311 = vmatprep.subr.bf16.mxu0 0
    %312 = vmatpush1.bf16.msra.mxu0 0
    %313 = vmatprep.subr.bf16.mxu0 0
    %314 = vmatpush1.bf16.msra.mxu0 0
    %315 = vmatprep.subr.bf16.mxu0 0
    %316 = vmatpush1.bf16.msra.mxu0 0
    %317 = vmatprep.subr.bf16.mxu0 0
    %318 = vmatpush1.bf16.msra.mxu0 0
    %319 = vmatprep.subr.bf16.mxu0 0
    %320 = vmatpush1.bf16.msra.mxu0 0
    %321 = vmatprep.mubr.bf16.mxu0 0
    %322 = vmatmul.mubr.bf16.gmra.mrb[0].mxu0 %v150
    %v323 = vpop.f32.mrb[0].mxu0
    %v324 = vadd.f32 %v235, %v323
    %v325 = vpop.f32.mrb[0].mxu0
    %v326 = vpop.f32.mrb[0].mxu0
    %v327 = vadd.f32 %v238, %v326
    %v328 = vpop.f32.mrb[0].mxu0
    %329 = vdwg.mxu0
    %v331 = vlaneseq
    %v332 = vshrl.u32 %v331, 7
    %v333 = vsub.s32 0, %v332
    %v334 = vrot.slane %v130, %v333
    %v336 = vadd.f32 %v324, %v334
    %v337 = vadd.f32 %v327, %v334
    %v338 = vmax.f32 %v336, 0.0
    %v339 = vmax.f32 %v337, 0.0
    %v340 = vld [vmem:[%s5] sm:$0xf]
    %v341 = vld [vmem:[%s5 + $0x4] sm:$0xf]
    %v342 = vld [vmem:[%s5 + $0x8] sm:$0xf]
    %v343 = vld [vmem:[%s5 + $0xc] sm:$0xf]
    %v344 = vld [vmem:[%s5 + $0x10] sm:$0xf]
    %v345 = vld [vmem:[%s5 + $0x14] sm:$0xf]
    %v346 = vld [vmem:[%s5 + $0x18] sm:$0xf]
    %v347 = vld [vmem:[%s5 + $0x1c] sm:$0xf]
    %v348 = vld [vmem:[%s5 + $0x20] sm:$0xf]
    %v349 = vld [vmem:[%s5 + $0x24] sm:$0xf]
    %v350 = vld [vmem:[%s5 + $0x28] sm:$0xf]
    %v351 = vld [vmem:[%s5 + $0x2c] sm:$0xf]
    %v352 = vld [vmem:[%s5 + $0x30] sm:$0xf]
    %v353 = vld [vmem:[%s5 + $0x34] sm:$0xf]
    %v354 = vld [vmem:[%s5 + $0x38] sm:$0xf]
    %v355 = vld [vmem:[%s5 + $0x3c] sm:$0xf]
    %v356 = vld [vmem:[%s6] sm:$0xf]
    %v357 = vld [vmem:[%s6 + $0x4] sm:$0xf]
    %v358 = vld [vmem:[%s6 + $0x8] sm:$0xf]
    %v359 = vld [vmem:[%s6 + $0xc] sm:$0xf]
    %v360 = vld [vmem:[%s6 + $0x10] sm:$0xf]
    %v361 = vld [vmem:[%s6 + $0x14] sm:$0xf]
    %v362 = vld [vmem:[%s6 + $0x18] sm:$0xf]
    %v363 = vld [vmem:[%s6 + $0x1c] sm:$0xf]
    %v364 = vld [vmem:[%s6 + $0x20] sm:$0xf]
    %v365 = vld [vmem:[%s6 + $0x24] sm:$0xf]
    %v366 = vld [vmem:[%s6 + $0x28] sm:$0xf]
    %v367 = vld [vmem:[%s6 + $0x2c] sm:$0xf]
    %v368 = vld [vmem:[%s6 + $0x30] sm:$0xf]
    %v369 = vld [vmem:[%s6 + $0x34] sm:$0xf]
    %v370 = vld [vmem:[%s6 + $0x38] sm:$0xf]
    %v371 = vld [vmem:[%s6 + $0x3c] sm:$0xf]
    %v372 = vld [vmem:[#allocation7] sm:$0x1]
    %v373 = vrot.slane %v338, 1
    %v374 = vrot.slane %v339, 1
    %v375 = vsel %vm135, %v373, %v374
    %v376 = vsel %vm135, %v374, %v373
    %v377 = vmul.f32 %v375, %v141
    %v378 = vmul.f32 %v376, %v146
    %v379 = vpack.c.bf16 %v339, %v338
    %v380 = vpack.c.bf16 %v378, %v377
    %v397 = vunpack.c.l.b16 %v356
    %v398 = vunpack.c.l.b16 %v357
    %v399 = vunpack.c.l.b16 %v358
    %v400 = vunpack.c.l.b16 %v359
    %v401 = vunpack.c.l.b16 %v360
    %v402 = vunpack.c.l.b16 %v361
    %v403 = vunpack.c.l.b16 %v362
    %v404 = vunpack.c.l.b16 %v363
    %v405 = vunpack.c.l.b16 %v364
    %v406 = vunpack.c.l.b16 %v365
    %v407 = vunpack.c.l.b16 %v366
    %v408 = vunpack.c.l.b16 %v367
    %v409 = vunpack.c.l.b16 %v368
    %v410 = vunpack.c.l.b16 %v369
    %v411 = vunpack.c.l.b16 %v370
    %v412 = vunpack.c.l.b16 %v371
    %v413 = vpack.c.b16 %v398, %v397
    %v414 = vpack.c.b16 %v400, %v399
    %v415 = vpack.c.b16 %v402, %v401
    %v416 = vpack.c.b16 %v404, %v403
    %v417 = vpack.c.b16 %v406, %v405
    %v418 = vpack.c.b16 %v408, %v407
    %v419 = vpack.c.b16 %v410, %v409
    %v420 = vpack.c.b16 %v412, %v411
    %429 = vmatprep.subr.bf16.mxu0 0
    %430 = vmatpush1.bf16.msra.mxu0 %v413
    %431 = vmatprep.subr.bf16.mxu0 0
    %432 = vmatpush1.bf16.msra.mxu0 %v414
    %433 = vmatprep.subr.bf16.mxu0 0
    %434 = vmatpush1.bf16.msra.mxu0 %v415
    %435 = vmatprep.subr.bf16.mxu0 0
    %436 = vmatpush1.bf16.msra.mxu0 %v416
    %437 = vmatprep.subr.bf16.mxu0 0
    %438 = vmatpush1.bf16.msra.mxu0 %v417
    %439 = vmatprep.subr.bf16.mxu0 0
    %440 = vmatpush1.bf16.msra.mxu0 %v418
    %441 = vmatprep.subr.bf16.mxu0 0
    %442 = vmatpush1.bf16.msra.mxu0 %v419
    %443 = vmatprep.subr.bf16.mxu0 0
    %444 = vmatpush1.bf16.msra.mxu0 %v420
    %445 = vmatprep.subr.bf16.mxu0 0
    %446 = vmatpush1.bf16.msra.mxu0 0
    %447 = vmatprep.subr.bf16.mxu0 0
    %448 = vmatpush1.bf16.msra.mxu0 0
    %449 = vmatprep.subr.bf16.mxu0 0
    %450 = vmatpush1.bf16.msra.mxu0 0
    %451 = vmatprep.subr.bf16.mxu0 0
    %452 = vmatpush1.bf16.msra.mxu0 0
    %453 = vmatprep.subr.bf16.mxu0 0
    %454 = vmatpush1.bf16.msra.mxu0 0
    %455 = vmatprep.subr.bf16.mxu0 0
    %456 = vmatpush1.bf16.msra.mxu0 0
    %457 = vmatprep.subr.bf16.mxu0 0
    %458 = vmatpush1.bf16.msra.mxu0 0
    %459 = vmatprep.subr.bf16.mxu0 0
    %460 = vmatpush1.bf16.msra.mxu0 0
    %461 = vmatprep.mubr.bf16.mxu0 0
    %462 = vmatmul.mubr.bf16.gmra.mrb[0].mxu0 %v380
    %v463 = vpop.f32.mrb[0].mxu0
    %v464 = vadd.f32 0.0, %v463
    %v465 = vpop.f32.mrb[0].mxu0
    %v466 = vpop.f32.mrb[0].mxu0
    %v467 = vadd.f32 0.0, %v466
    %v468 = vpop.f32.mrb[0].mxu0
    %469 = vdwg.mxu0
    %v486 = vunpack.c.l.b16 %v340
    %v487 = vunpack.c.l.b16 %v341
    %v488 = vunpack.c.l.b16 %v342
    %v489 = vunpack.c.l.b16 %v343
    %v490 = vunpack.c.l.b16 %v344
    %v491 = vunpack.c.l.b16 %v345
    %v492 = vunpack.c.l.b16 %v346
    %v493 = vunpack.c.l.b16 %v347
    %v494 = vunpack.c.l.b16 %v348
    %v495 = vunpack.c.l.b16 %v349
    %v496 = vunpack.c.l.b16 %v350
    %v497 = vunpack.c.l.b16 %v351
    %v498 = vunpack.c.l.b16 %v352
    %v499 = vunpack.c.l.b16 %v353
    %v500 = vunpack.c.l.b16 %v354
    %v501 = vunpack.c.l.b16 %v355
    %v502 = vpack.c.b16 %v487, %v486
    %v503 = vpack.c.b16 %v489, %v488
    %v504 = vpack.c.b16 %v491, %v490
    %v505 = vpack.c.b16 %v493, %v492
    %v506 = vpack.c.b16 %v495, %v494
    %v507 = vpack.c.b16 %v497, %v496
    %v508 = vpack.c.b16 %v499, %v498
    %v509 = vpack.c.b16 %v501, %v500
    %518 = vmatprep.subr.bf16.mxu0 0
    %519 = vmatpush1.bf16.msra.mxu0 %v502
    %520 = vmatprep.subr.bf16.mxu0 0
    %521 = vmatpush1.bf16.msra.mxu0 %v503
    %522 = vmatprep.subr.bf16.mxu0 0
    %523 = vmatpush1.bf16.msra.mxu0 %v504
    %524 = vmatprep.subr.bf16.mxu0 0
    %525 = vmatpush1.bf16.msra.mxu0 %v505
    %526 = vmatprep.subr.bf16.mxu0 0
    %527 = vmatpush1.bf16.msra.mxu0 %v506
    %528 = vmatprep.subr.bf16.mxu0 0
    %529 = vmatpush1.bf16.msra.mxu0 %v507
    %530 = vmatprep.subr.bf16.mxu0 0
    %531 = vmatpush1.bf16.msra.mxu0 %v508
    %532 = vmatprep.subr.bf16.mxu0 0
    %533 = vmatpush1.bf16.msra.mxu0 %v509
    %534 = vmatprep.subr.bf16.mxu0 0
    %535 = vmatpush1.bf16.msra.mxu0 0
    %536 = vmatprep.subr.bf16.mxu0 0
    %537 = vmatpush1.bf16.msra.mxu0 0
    %538 = vmatprep.subr.bf16.mxu0 0
    %539 = vmatpush1.bf16.msra.mxu0 0
    %540 = vmatprep.subr.bf16.mxu0 0
    %541 = vmatpush1.bf16.msra.mxu0 0
    %542 = vmatprep.subr.bf16.mxu0 0
    %543 = vmatpush1.bf16.msra.mxu0 0
    %544 = vmatprep.subr.bf16.mxu0 0
    %545 = vmatpush1.bf16.msra.mxu0 0
    %546 = vmatprep.subr.bf16.mxu0 0
    %547 = vmatpush1.bf16.msra.mxu0 0
    %548 = vmatprep.subr.bf16.mxu0 0
    %549 = vmatpush1.bf16.msra.mxu0 0
    %550 = vmatprep.mubr.bf16.mxu0 0
    %551 = vmatmul.mubr.bf16.gmra.mrb[0].mxu0 %v379
    %v552 = vpop.f32.mrb[0].mxu0
    %v553 = vadd.f32 %v464, %v552
    %v554 = vpop.f32.mrb[0].mxu0
    %v555 = vpop.f32.mrb[0].mxu0
    %v556 = vadd.f32 %v467, %v555
    %v557 = vpop.f32.mrb[0].mxu0
    %558 = vdwg.mxu0
    %v560 = vlaneseq
    %v561 = vshrl.u32 %v560, 7
    %v562 = vsub.s32 0, %v561
    %v563 = vrot.slane %v372, %v562
    %v565 = vadd.f32 %v553, %v563
    %v566 = vadd.f32 %v556, %v563
    %v567 = vmax.f32 %v565, 0.0
    %v568 = vmax.f32 %v566, 0.0
    %v569 = vld [vmem:[%s8] sm:$0xf]
    %v570 = vld [vmem:[%s8 + $0x4] sm:$0xf]
    %v571 = vld [vmem:[%s8 + $0x8] sm:$0xf]
    %v572 = vld [vmem:[%s8 + $0xc] sm:$0xf]
    %v573 = vld [vmem:[%s8 + $0x10] sm:$0xf]
    %v574 = vld [vmem:[%s8 + $0x14] sm:$0xf]
    %v575 = vld [vmem:[%s8 + $0x18] sm:$0xf]
    %v576 = vld [vmem:[%s8 + $0x1c] sm:$0xf]
    %v577 = vld [vmem:[%s8 + $0x20] sm:$0xf]
    %v578 = vld [vmem:[%s8 + $0x24] sm:$0xf]
    %v579 = vld [vmem:[%s8 + $0x28] sm:$0xf]
    %v580 = vld [vmem:[%s8 + $0x2c] sm:$0xf]
    %v581 = vld [vmem:[%s8 + $0x30] sm:$0xf]
    %v582 = vld [vmem:[%s8 + $0x34] sm:$0xf]
    %v583 = vld [vmem:[%s8 + $0x38] sm:$0xf]
    %v584 = vld [vmem:[%s8 + $0x3c] sm:$0xf]
    %v585 = vld [vmem:[#allocation8] sm:$0x1]
    %v587 = vlaneseq
    %v588 = vshrl.u32 %v587, 7
    %v589 = vsub.s32 0, %v588
    %v590 = vrot.slane %v585, %v589
    %v608 = vunpack.c.l.b16 %v569
    %v609 = vunpack.c.l.b16 %v570
    %v610 = vunpack.c.l.b16 %v571
    %v611 = vunpack.c.l.b16 %v572
    %v612 = vunpack.c.l.b16 %v573
    %v613 = vunpack.c.l.b16 %v574
    %v614 = vunpack.c.l.b16 %v575
    %v615 = vunpack.c.l.b16 %v576
    %v616 = vunpack.c.l.b16 %v577
    %v617 = vunpack.c.l.b16 %v578
    %v618 = vunpack.c.l.b16 %v579
    %v619 = vunpack.c.l.b16 %v580
    %v620 = vunpack.c.l.b16 %v581
    %v621 = vunpack.c.l.b16 %v582
    %v622 = vunpack.c.l.b16 %v583
    %v623 = vunpack.c.l.b16 %v584
    %v624 = vpack.c.b16 %v609, %v608
    %v625 = vpack.c.b16 %v611, %v610
    %v626 = vpack.c.b16 %v613, %v612
    %v627 = vpack.c.b16 %v615, %v614
    %v628 = vpack.c.b16 %v617, %v616
    %v629 = vpack.c.b16 %v619, %v618
    %v630 = vpack.c.b16 %v621, %v620
    %v631 = vpack.c.b16 %v623, %v622
    %640 = vmatprep.subr.bf16.mxu0 0
    %641 = vmatpush1.bf16.msra.mxu0 %v624
    %642 = vmatprep.subr.bf16.mxu0 0
    %643 = vmatpush1.bf16.msra.mxu0 %v625
    %644 = vmatprep.subr.bf16.mxu0 0
    %645 = vmatpush1.bf16.msra.mxu0 %v626
    %646 = vmatprep.subr.bf16.mxu0 0
    %647 = vmatpush1.bf16.msra.mxu0 %v627
    %648 = vmatprep.subr.bf16.mxu0 0
    %649 = vmatpush1.bf16.msra.mxu0 %v628
    %650 = vmatprep.subr.bf16.mxu0 0
    %651 = vmatpush1.bf16.msra.mxu0 %v629
    %652 = vmatprep.subr.bf16.mxu0 0
    %653 = vmatpush1.bf16.msra.mxu0 %v630
    %654 = vmatprep.subr.bf16.mxu0 0
    %655 = vmatpush1.bf16.msra.mxu0 %v631
    %656 = vmatprep.subr.bf16.mxu0 0
    %657 = vmatpush1.bf16.msra.mxu0 0
    %658 = vmatprep.subr.bf16.mxu0 0
    %659 = vmatpush1.bf16.msra.mxu0 0
    %660 = vmatprep.subr.bf16.mxu0 0
    %661 = vmatpush1.bf16.msra.mxu0 0
    %662 = vmatprep.subr.bf16.mxu0 0
    %663 = vmatpush1.bf16.msra.mxu0 0
    %664 = vmatprep.subr.bf16.mxu0 0
    %665 = vmatpush1.bf16.msra.mxu0 0
    %666 = vmatprep.subr.bf16.mxu0 0
    %667 = vmatpush1.bf16.msra.mxu0 0
    %668 = vmatprep.subr.bf16.mxu0 0
    %669 = vmatpush1.bf16.msra.mxu0 0
    %670 = vmatprep.subr.bf16.mxu0 0
    %671 = vmatpush1.bf16.msra.mxu0 0
    %672 = vmatprep.mubr.bf16.mxu0 0
    %673 = vmatmul.mubr.bf16.gmra.mrb[0].mxu0 %v150
    %v674 = vpop.f32.mrb[0].mxu0
    %v675 = vadd.f32 %v590, %v674
    %v676 = vpop.f32.mrb[0].mxu0
    %v677 = vpop.f32.mrb[0].mxu0
    %v678 = vadd.f32 %v590, %v677
    %v679 = vpop.f32.mrb[0].mxu0
    %680 = vdwg.mxu0
    %v681 = vmax.f32 %v675, 0.0
    %v682 = vmax.f32 %v678, 0.0
    %683 = vrot.lane.b32.xlu0 %v681, 16
    %v684 = vpop.permute.xlu0 %683
    %685 = vrot.lane.b32.xlu0 %v682, 16
    %v686 = vpop.permute.xlu0 %685
    %v687 = vadd.f32 %v567, %v684
    %v688 = vadd.f32 %v568, %v686
    %689 = vst [vmem:[#allocation2] sm:$0xff] %v687
    %690 = vst [vmem:[#allocation2 + $0x8] sm:$0xff] %v688
    %v691 = vld [vmem:[#allocation2] ss:$2 sm:$0xff]
    %s692 = scalar_lea.vmem [#allocation2], 1
    %v693 = vld [vmem:[%s692] ss:$2 sm:$0xff]
    %v694 = vpack.c.bf16 %v691, %v691
    %v695 = vld [vmem:[%s10] sm:$0xf]
    %v696 = vld [vmem:[%s10 + $0x4] sm:$0xf]
    %v697 = vld [vmem:[%s10 + $0x8] sm:$0xf]
    %v698 = vld [vmem:[%s10 + $0xc] sm:$0xf]
    %v699 = vld [vmem:[%s10 + $0x10] sm:$0xf]
    %v700 = vld [vmem:[%s10 + $0x14] sm:$0xf]
    %v701 = vld [vmem:[%s10 + $0x18] sm:$0xf]
    %v702 = vld [vmem:[%s10 + $0x1c] sm:$0xf]
    %v703 = vld [vmem:[%s10 + $0x20] sm:$0xf]
    %v704 = vld [vmem:[%s10 + $0x24] sm:$0xf]
    %v705 = vld [vmem:[%s10 + $0x28] sm:$0xf]
    %v706 = vld [vmem:[%s10 + $0x2c] sm:$0xf]
    %v707 = vld [vmem:[%s10 + $0x30] sm:$0xf]
    %v708 = vld [vmem:[%s10 + $0x34] sm:$0xf]
    %v709 = vld [vmem:[%s10 + $0x38] sm:$0xf]
    %v710 = vld [vmem:[%s10 + $0x3c] sm:$0xf]
    %v711 = vpack.c.bf16 %v693, %v693
    %v712 = vld [vmem:[%s11] sm:$0xf]
    %v713 = vld [vmem:[%s11 + $0x4] sm:$0xf]
    %v714 = vld [vmem:[%s11 + $0x8] sm:$0xf]
    %v715 = vld [vmem:[%s11 + $0xc] sm:$0xf]
    %v716 = vld [vmem:[%s11 + $0x10] sm:$0xf]
    %v717 = vld [vmem:[%s11 + $0x14] sm:$0xf]
    %v718 = vld [vmem:[%s11 + $0x18] sm:$0xf]
    %v719 = vld [vmem:[%s11 + $0x1c] sm:$0xf]
    %v720 = vld [vmem:[%s11 + $0x20] sm:$0xf]
    %v721 = vld [vmem:[%s11 + $0x24] sm:$0xf]
    %v722 = vld [vmem:[%s11 + $0x28] sm:$0xf]
    %v723 = vld [vmem:[%s11 + $0x2c] sm:$0xf]
    %v724 = vld [vmem:[%s11 + $0x30] sm:$0xf]
    %v725 = vld [vmem:[%s11 + $0x34] sm:$0xf]
    %v726 = vld [vmem:[%s11 + $0x38] sm:$0xf]
    %v727 = vld [vmem:[%s11 + $0x3c] sm:$0xf]
    %v744 = vunpack.c.l.b16 %v712
    %v745 = vunpack.c.l.b16 %v713
    %v746 = vunpack.c.l.b16 %v714
    %v747 = vunpack.c.l.b16 %v715
    %v748 = vunpack.c.l.b16 %v716
    %v749 = vunpack.c.l.b16 %v717
    %v750 = vunpack.c.l.b16 %v718
    %v751 = vunpack.c.l.b16 %v719
    %v752 = vunpack.c.l.b16 %v720
    %v753 = vunpack.c.l.b16 %v721
    %v754 = vunpack.c.l.b16 %v722
    %v755 = vunpack.c.l.b16 %v723
    %v756 = vunpack.c.l.b16 %v724
    %v757 = vunpack.c.l.b16 %v725
    %v758 = vunpack.c.l.b16 %v726
    %v759 = vunpack.c.l.b16 %v727
    %v760 = vpack.c.b16 %v745, %v744
    %v761 = vpack.c.b16 %v747, %v746
    %v762 = vpack.c.b16 %v749, %v748
    %v763 = vpack.c.b16 %v751, %v750
    %v764 = vpack.c.b16 %v753, %v752
    %v765 = vpack.c.b16 %v755, %v754
    %v766 = vpack.c.b16 %v757, %v756
    %v767 = vpack.c.b16 %v759, %v758
    %776 = vmatprep.subr.bf16.mxu0 0
    %777 = vmatpush1.bf16.msra.mxu0 %v760
    %778 = vmatprep.subr.bf16.mxu0 0
    %779 = vmatpush1.bf16.msra.mxu0 %v761
    %780 = vmatprep.subr.bf16.mxu0 0
    %781 = vmatpush1.bf16.msra.mxu0 %v762
    %782 = vmatprep.subr.bf16.mxu0 0
    %783 = vmatpush1.bf16.msra.mxu0 %v763
    %784 = vmatprep.subr.bf16.mxu0 0
    %785 = vmatpush1.bf16.msra.mxu0 %v764
    %786 = vmatprep.subr.bf16.mxu0 0
    %787 = vmatpush1.bf16.msra.mxu0 %v765
    %788 = vmatprep.subr.bf16.mxu0 0
    %789 = vmatpush1.bf16.msra.mxu0 %v766
    %790 = vmatprep.subr.bf16.mxu0 0
    %791 = vmatpush1.bf16.msra.mxu0 %v767
    %792 = vmatprep.subr.bf16.mxu0 0
    %793 = vmatpush1.bf16.msra.mxu0 0
    %794 = vmatprep.subr.bf16.mxu0 0
    %795 = vmatpush1.bf16.msra.mxu0 0
    %796 = vmatprep.subr.bf16.mxu0 0
    %797 = vmatpush1.bf16.msra.mxu0 0
    %798 = vmatprep.subr.bf16.mxu0 0
    %799 = vmatpush1.bf16.msra.mxu0 0
    %800 = vmatprep.subr.bf16.mxu0 0
    %801 = vmatpush1.bf16.msra.mxu0 0
    %802 = vmatprep.subr.bf16.mxu0 0
    %803 = vmatpush1.bf16.msra.mxu0 0
    %804 = vmatprep.subr.bf16.mxu0 0
    %805 = vmatpush1.bf16.msra.mxu0 0
    %806 = vmatprep.subr.bf16.mxu0 0
    %807 = vmatpush1.bf16.msra.mxu0 0
    %808 = vmatprep.mubr.bf16.mxu0 0
    %809 = vmatmul.mubr.bf16.gmra.mrb[0].mxu0 %v711
    %v810 = vpop.f32.mrb[0].mxu0
    %v811 = vadd.f32 0.0, %v810
    %v812 = vpop.f32.mrb[0].mxu0
    %v813 = vpop.f32.mrb[0].mxu0
    %v814 = vpop.f32.mrb[0].mxu0
    %815 = vdwg.mxu0
    %v832 = vunpack.c.l.b16 %v695
    %v833 = vunpack.c.l.b16 %v696
    %v834 = vunpack.c.l.b16 %v697
    %v835 = vunpack.c.l.b16 %v698
    %v836 = vunpack.c.l.b16 %v699
    %v837 = vunpack.c.l.b16 %v700
    %v838 = vunpack.c.l.b16 %v701
    %v839 = vunpack.c.l.b16 %v702
    %v840 = vunpack.c.l.b16 %v703
    %v841 = vunpack.c.l.b16 %v704
    %v842 = vunpack.c.l.b16 %v705
    %v843 = vunpack.c.l.b16 %v706
    %v844 = vunpack.c.l.b16 %v707
    %v845 = vunpack.c.l.b16 %v708
    %v846 = vunpack.c.l.b16 %v709
    %v847 = vunpack.c.l.b16 %v710
    %v848 = vpack.c.b16 %v833, %v832
    %v849 = vpack.c.b16 %v835, %v834
    %v850 = vpack.c.b16 %v837, %v836
    %v851 = vpack.c.b16 %v839, %v838
    %v852 = vpack.c.b16 %v841, %v840
    %v853 = vpack.c.b16 %v843, %v842
    %v854 = vpack.c.b16 %v845, %v844
    %v855 = vpack.c.b16 %v847, %v846
    %864 = vmatprep.subr.bf16.mxu0 0
    %865 = vmatpush1.bf16.msra.mxu0 %v848
    %866 = vmatprep.subr.bf16.mxu0 0
    %867 = vmatpush1.bf16.msra.mxu0 %v849
    %868 = vmatprep.subr.bf16.mxu0 0
    %869 = vmatpush1.bf16.msra.mxu0 %v850
    %870 = vmatprep.subr.bf16.mxu0 0
    %871 = vmatpush1.bf16.msra.mxu0 %v851
    %872 = vmatprep.subr.bf16.mxu0 0
    %873 = vmatpush1.bf16.msra.mxu0 %v852
    %874 = vmatprep.subr.bf16.mxu0 0
    %875 = vmatpush1.bf16.msra.mxu0 %v853
    %876 = vmatprep.subr.bf16.mxu0 0
    %877 = vmatpush1.bf16.msra.mxu0 %v854
    %878 = vmatprep.subr.bf16.mxu0 0
    %879 = vmatpush1.bf16.msra.mxu0 %v855
    %880 = vmatprep.subr.bf16.mxu0 0
    %881 = vmatpush1.bf16.msra.mxu0 0
    %882 = vmatprep.subr.bf16.mxu0 0
    %883 = vmatpush1.bf16.msra.mxu0 0
    %884 = vmatprep.subr.bf16.mxu0 0
    %885 = vmatpush1.bf16.msra.mxu0 0
    %886 = vmatprep.subr.bf16.mxu0 0
    %887 = vmatpush1.bf16.msra.mxu0 0
    %888 = vmatprep.subr.bf16.mxu0 0
    %889 = vmatpush1.bf16.msra.mxu0 0
    %890 = vmatprep.subr.bf16.mxu0 0
    %891 = vmatpush1.bf16.msra.mxu0 0
    %892 = vmatprep.subr.bf16.mxu0 0
    %893 = vmatpush1.bf16.msra.mxu0 0
    %894 = vmatprep.subr.bf16.mxu0 0
    %895 = vmatpush1.bf16.msra.mxu0 0
    %896 = vmatprep.mubr.bf16.mxu0 0
    %897 = vmatmul.mubr.bf16.gmra.mrb[0].mxu0 %v694
    %v898 = vpop.f32.mrb[0].mxu0
    %v899 = vadd.f32 %v811, %v898
    %v900 = vpop.f32.mrb[0].mxu0
    %v901 = vpop.f32.mrb[0].mxu0
    %v902 = vpop.f32.mrb[0].mxu0
    %903 = vdwg.mxu0
    %v904 = vld [vmem:[%s12] sm:$0x1]
    %v906 = vlaneseq
    %v907 = vshrl.u32 %v906, 7
    %v908 = vsub.s32 0, %v907
    %v909 = vrot.slane %v904, %v908
    %v911 = vadd.f32 %v899, %v909
    %v912 = vmax.f32 %v911, 0.0
    %913 = vst [vmem:[%s13] sm:$0xff] %v912
    // Predicated region
    $region70: #{_lambda_.4} parent=1 // pred_check
      _
    $region71: #{_lambda_.4} parent=1 // pred_check_branch
      %915 = sbr.rel (0) target = $region73
    $region72: #{_lambda_.4} parent=1 // pred_region
      _
    $region73: #{_lambda_.4} parent=1 // pred_fallthru
      _
    // Predicated region
    $region74: #{_lambda_.4} parent=1 // pred_check
      _
    $region75: #{_lambda_.4} parent=1 // pred_check_branch
      %917 = sbr.rel (0) target = $region77
    $region76: #{_lambda_.4} parent=1 // pred_region
      _
    $region77: #{_lambda_.4} parent=1 // pred_fallthru
      _
    %918 = vsyncpa [#allocation4], 1
    %919 = vsyncpa [#allocation6], 1
    %920 = vsyncpa [#allocation9], 1

// kernel: _lambda_.5
$region0: #{_lambda_.5}
  #allocation0 [shape = 'u32[]', space=smem, size = 0x4, offset = 0x4, fixed_abs, tag = 'smem constant byte address 0x4 - core index']
  #allocation1 [shape = 'u32[144,128]{1,0:T(1,128)}', space=vmem, size = 0x12000, scoped, tag = 'internal scratch']
  %s0 = inlined_call_operand.vmem [shape: f32[2,512], index: 0, kind: input, shape index: {}]
  %s1 = inlined_call_operand.vmem [shape: bf16[512,128], index: 1, kind: input, shape index: {}]
  %s2 = inlined_call_operand.vmem [shape: f32[1,128], index: 2, kind: input, shape index: {}]
  %s3 = inlined_call_operand.vmem [shape: bf16[128,128], index: 3, kind: input, shape index: {}]
  %s4 = inlined_call_operand.vmem [shape: f32[1,128], index: 4, kind: input, shape index: {}]
  %s5 = inlined_call_operand.vmem [shape: bf16[128,128], index: 5, kind: input, shape index: {}]
  %s6 = inlined_call_operand.vmem [shape: f32[1,128], index: 6, kind: input, shape index: {}]
  %s7 = inlined_call_operand.vmem [shape: bf16[128,128], index: 7, kind: input, shape index: {}]
  %s8 = inlined_call_operand.vmem [shape: f32[1,128], index: 8, kind: input, shape index: {}]
  %s9 = inlined_call_operand.vmem [shape: bf16[128,128], index: 9, kind: input, shape index: {}]
  %s10 = inlined_call_operand.vmem [shape: f32[1,128], index: 10, kind: input, shape index: {}]
  %s11 = inlined_call_operand.vmem [shape: bf16[128,128], index: 11, kind: input, shape index: {}]
  %s12 = inlined_call_operand.vmem [shape: f32[1,128], index: 12, kind: input, shape index: {}]
  %s13 = inlined_call_operand.hbm [shape: f32[2,128], index: 13, kind: output, shape index: {}]
  %s14 = sld [smem:[#allocation0]]
  $region62: #{_lambda_.5} parent=0
    _
  %s16 = ssub.s32 1, %s14
  %s17 = scalar_select 0, %s16, %s14
  $region1: #{_lambda_.5} parent=0
    #allocation2 [shape = 'u8[1024]{0}', space=vmem, size = 0x400, scoped, tag = 'output window, operand 0, single buffered']
    #allocation3 [shape = 's32[1]{0}', space=sflag, size = 0x4, scoped, tag = 'scoped memory for _lambda_.5']
    %18 = vsyncpa [#allocation3], 0
    // Predicated region
    $region2: #{_lambda_.5} parent=1 // pred_check
      _
    $region3: #{_lambda_.5} parent=1 // pred_check_branch
      %20 = sbr.rel (0) target = $region5
    $region4: #{_lambda_.5} parent=1 // pred_region
      _
    $region5: #{_lambda_.5} parent=1 // pred_fallthru
      _
    // Predicated region
    $region6: #{_lambda_.5} parent=1 // pred_check
      _
    $region7: #{_lambda_.5} parent=1 // pred_check_branch
      %22 = sbr.rel (0) target = $region9
    $region8: #{_lambda_.5} parent=1 // pred_region
      _
    $region9: #{_lambda_.5} parent=1 // pred_fallthru
      _
    // Predicated region
    $region10: #{_lambda_.5} parent=1 // pred_check
      _
    $region11: #{_lambda_.5} parent=1 // pred_check_branch
      %24 = sbr.rel (0) target = $region13
    $region12: #{_lambda_.5} parent=1 // pred_region
      _
    $region13: #{_lambda_.5} parent=1 // pred_fallthru
      _
    // Predicated region
    $region14: #{_lambda_.5} parent=1 // pred_check
      _
    $region15: #{_lambda_.5} parent=1 // pred_check_branch
      %26 = sbr.rel (0) target = $region17
    $region16: #{_lambda_.5} parent=1 // pred_region
      _
    $region17: #{_lambda_.5} parent=1 // pred_fallthru
      _
    // Predicated region
    $region18: #{_lambda_.5} parent=1 // pred_check
      _
    $region19: #{_lambda_.5} parent=1 // pred_check_branch
      %28 = sbr.rel (0) target = $region21
    $region20: #{_lambda_.5} parent=1 // pred_region
      _
    $region21: #{_lambda_.5} parent=1 // pred_fallthru
      _
    // Predicated region
    $region22: #{_lambda_.5} parent=1 // pred_check
      _
    $region23: #{_lambda_.5} parent=1 // pred_check_branch
      %30 = sbr.rel (0) target = $region25
    $region24: #{_lambda_.5} parent=1 // pred_region
      _
    $region25: #{_lambda_.5} parent=1 // pred_fallthru
      _
    // Predicated region
    $region26: #{_lambda_.5} parent=1 // pred_check
      _
    $region27: #{_lambda_.5} parent=1 // pred_check_branch
      %32 = sbr.rel (0) target = $region29
    $region28: #{_lambda_.5} parent=1 // pred_region
      _
    $region29: #{_lambda_.5} parent=1 // pred_fallthru
      _
    // Predicated region
    $region30: #{_lambda_.5} parent=1 // pred_check
      _
    $region31: #{_lambda_.5} parent=1 // pred_check_branch
      %34 = sbr.rel (0) target = $region33
    $region32: #{_lambda_.5} parent=1 // pred_region
      _
    $region33: #{_lambda_.5} parent=1 // pred_fallthru
      _
    // Predicated region
    $region34: #{_lambda_.5} parent=1 // pred_check
      _
    $region35: #{_lambda_.5} parent=1 // pred_check_branch
      %36 = sbr.rel (0) target = $region37
    $region36: #{_lambda_.5} parent=1 // pred_region
      _
    $region37: #{_lambda_.5} parent=1 // pred_fallthru
      _
    // Predicated region
    $region38: #{_lambda_.5} parent=1 // pred_check
      _
    $region39: #{_lambda_.5} parent=1 // pred_check_branch
      %38 = sbr.rel (0) target = $region41
    $region40: #{_lambda_.5} parent=1 // pred_region
      _
    $region41: #{_lambda_.5} parent=1 // pred_fallthru
      _
    // Predicated region
    $region42: #{_lambda_.5} parent=1 // pred_check
      _
    $region43: #{_lambda_.5} parent=1 // pred_check_branch
      %40 = sbr.rel (0) target = $region45
    $region44: #{_lambda_.5} parent=1 // pred_region
      _
    $region45: #{_lambda_.5} parent=1 // pred_fallthru
      _
    // Predicated region
    $region46: #{_lambda_.5} parent=1 // pred_check
      _
    $region47: #{_lambda_.5} parent=1 // pred_check_branch
      %42 = sbr.rel (0) target = $region49
    $region48: #{_lambda_.5} parent=1 // pred_region
      _
    $region49: #{_lambda_.5} parent=1 // pred_fallthru
      _
    // Predicated region
    $region50: #{_lambda_.5} parent=1 // pred_check
      _
    $region51: #{_lambda_.5} parent=1 // pred_check_branch
      %44 = sbr.rel (0) target = $region53
    $region52: #{_lambda_.5} parent=1 // pred_region
      _
    $region53: #{_lambda_.5} parent=1 // pred_fallthru
      _
    %v46 = vld [vmem:[%s0] sm:$0xff]
    %v47 = vld [vmem:[%s1] sm:$0xf]
    %v48 = vld [vmem:[%s1 + $0x4] sm:$0xf]
    %v49 = vld [vmem:[%s1 + $0x8] sm:$0xf]
    %v50 = vld [vmem:[%s1 + $0xc] sm:$0xf]
    %v51 = vld [vmem:[%s1 + $0x10] sm:$0xf]
    %v52 = vld [vmem:[%s1 + $0x14] sm:$0xf]
    %v53 = vld [vmem:[%s1 + $0x18] sm:$0xf]
    %v54 = vld [vmem:[%s1 + $0x1c] sm:$0xf]
    %v55 = vld [vmem:[%s1 + $0x20] sm:$0xf]
    %v56 = vld [vmem:[%s1 + $0x24] sm:$0xf]
    %v57 = vld [vmem:[%s1 + $0x28] sm:$0xf]
    %v58 = vld [vmem:[%s1 + $0x2c] sm:$0xf]
    %v59 = vld [vmem:[%s1 + $0x30] sm:$0xf]
    %v60 = vld [vmem:[%s1 + $0x34] sm:$0xf]
    %v61 = vld [vmem:[%s1 + $0x38] sm:$0xf]
    %v62 = vld [vmem:[%s1 + $0x3c] sm:$0xf]
    %v63 = vld [vmem:[%s1 + $0x40] sm:$0xf]
    %v64 = vld [vmem:[%s1 + $0x44] sm:$0xf]
    %v65 = vld [vmem:[%s1 + $0x48] sm:$0xf]
    %v66 = vld [vmem:[%s1 + $0x4c] sm:$0xf]
    %v67 = vld [vmem:[%s1 + $0x50] sm:$0xf]
    %v68 = vld [vmem:[%s1 + $0x54] sm:$0xf]
    %v69 = vld [vmem:[%s1 + $0x58] sm:$0xf]
    %v70 = vld [vmem:[%s1 + $0x5c] sm:$0xf]
    %v71 = vld [vmem:[%s1 + $0x60] sm:$0xf]
    %v72 = vld [vmem:[%s1 + $0x64] sm:$0xf]
    %v73 = vld [vmem:[%s1 + $0x68] sm:$0xf]
    %v74 = vld [vmem:[%s1 + $0x6c] sm:$0xf]
    %v75 = vld [vmem:[%s1 + $0x70] sm:$0xf]
    %v76 = vld [vmem:[%s1 + $0x74] sm:$0xf]
    %v77 = vld [vmem:[%s1 + $0x78] sm:$0xf]
    %v78 = vld [vmem:[%s1 + $0x7c] sm:$0xf]
    %v79 = vld [vmem:[%s1 + $0x80] sm:$0xf]
    %v80 = vld [vmem:[%s1 + $0x84] sm:$0xf]
    %v81 = vld [vmem:[%s1 + $0x88] sm:$0xf]
    %v82 = vld [vmem:[%s1 + $0x8c] sm:$0xf]
    %v83 = vld [vmem:[%s1 + $0x90] sm:$0xf]
    %v84 = vld [vmem:[%s1 + $0x94] sm:$0xf]
    %v85 = vld [vmem:[%s1 + $0x98] sm:$0xf]
    %v86 = vld [vmem:[%s1 + $0x9c] sm:$0xf]
    %v87 = vld [vmem:[%s1 + $0xa0] sm:$0xf]
    %v88 = vld [vmem:[%s1 + $0xa4] sm:$0xf]
    %v89 = vld [vmem:[%s1 + $0xa8] sm:$0xf]
    %v90 = vld [vmem:[%s1 + $0xac] sm:$0xf]
    %v91 = vld [vmem:[%s1 + $0xb0] sm:$0xf]
    %v92 = vld [vmem:[%s1 + $0xb4] sm:$0xf]
    %v93 = vld [vmem:[%s1 + $0xb8] sm:$0xf]
    %v94 = vld [vmem:[%s1 + $0xbc] sm:$0xf]
    %v95 = vld [vmem:[%s1 + $0xc0] sm:$0xf]
    %v96 = vld [vmem:[%s1 + $0xc4] sm:$0xf]
    %v97 = vld [vmem:[%s1 + $0xc8] sm:$0xf]
    %v98 = vld [vmem:[%s1 + $0xcc] sm:$0xf]
    %v99 = vld [vmem:[%s1 + $0xd0] sm:$0xf]
    %v100 = vld [vmem:[%s1 + $0xd4] sm:$0xf]
    %v101 = vld [vmem:[%s1 + $0xd8] sm:$0xf]
    %v102 = vld [vmem:[%s1 + $0xdc] sm:$0xf]
    %v103 = vld [vmem:[%s1 + $0xe0] sm:$0xf]
    %v104 = vld [vmem:[%s1 + $0xe4] sm:$0xf]
    %v105 = vld [vmem:[%s1 + $0xe8] sm:$0xf]
    %v106 = vld [vmem:[%s1 + $0xec] sm:$0xf]
    %v107 = vld [vmem:[%s1 + $0xf0] sm:$0xf]
    %v108 = vld [vmem:[%s1 + $0xf4] sm:$0xf]
    %v109 = vld [vmem:[%s1 + $0xf8] sm:$0xf]
    %v110 = vld [vmem:[%s1 + $0xfc] sm:$0xf]
    %v111 = vld [vmem:[%s2] sm:$0x1]
    %v113 = vcombine.high %v46, %v46
    %v115 = vunpack.c.l.s4 1983009808
    %v116 = vunpack.c.0.s8 %v115
    %v117 = vlaneseq
    %v118 = vshrl.u32 %v117, 7
    %v119 = vsub.s32 %v116, %v118
    %v120 = vrot.slane %v46, %v119
    %v122 = vunpack.c.l.s4 1983009808
    %v123 = vunpack.c.0.s8 %v122
    %v124 = vlaneseq
    %v125 = vshrl.u32 %v124, 7
    %v126 = vsub.s32 %v123, %v125
    %v127 = vrot.slane %v113, %v126
    %v128 = vcombine.high %v120, %v120
    %v129 = vcombine.high %v127, %v127
    %v134 = vpack.c.bf16 %v120, %v120
    %v135 = vpack.c.bf16 %v128, %v128
    %v136 = vpack.c.bf16 %v127, %v127
    %v137 = vpack.c.bf16 %v129, %v129
    %v139 = vlaneseq
    %v140 = vshrl.u32 %v139, 7
    %v141 = vsub.s32 0, %v140
    %v142 = vrot.slane %v111, %v141
    %v208 = vunpack.c.l.b16 %v47
    %v209 = vunpack.c.l.b16 %v48
    %v210 = vunpack.c.l.b16 %v49
    %v211 = vunpack.c.l.b16 %v50
    %v212 = vunpack.c.l.b16 %v51
    %v213 = vunpack.c.l.b16 %v52
    %v214 = vunpack.c.l.b16 %v53
    %v215 = vunpack.c.l.b16 %v54
    %v216 = vunpack.c.l.b16 %v55
    %v217 = vunpack.c.l.b16 %v56
    %v218 = vunpack.c.l.b16 %v57
    %v219 = vunpack.c.l.b16 %v58
    %v220 = vunpack.c.l.b16 %v59
    %v221 = vunpack.c.l.b16 %v60
    %v222 = vunpack.c.l.b16 %v61
    %v223 = vunpack.c.l.b16 %v62
    %v224 = vunpack.c.l.b16 %v63
    %v225 = vunpack.c.l.b16 %v64
    %v226 = vunpack.c.l.b16 %v65
    %v227 = vunpack.c.l.b16 %v66
    %v228 = vunpack.c.l.b16 %v67
    %v229 = vunpack.c.l.b16 %v68
    %v230 = vunpack.c.l.b16 %v69
    %v231 = vunpack.c.l.b16 %v70
    %v232 = vunpack.c.l.b16 %v71
    %v233 = vunpack.c.l.b16 %v72
    %v234 = vunpack.c.l.b16 %v73
    %v235 = vunpack.c.l.b16 %v74
    %v236 = vunpack.c.l.b16 %v75
    %v237 = vunpack.c.l.b16 %v76
    %v238 = vunpack.c.l.b16 %v77
    %v239 = vunpack.c.l.b16 %v78
    %v240 = vunpack.c.l.b16 %v79
    %v241 = vunpack.c.l.b16 %v80
    %v242 = vunpack.c.l.b16 %v81
    %v243 = vunpack.c.l.b16 %v82
    %v244 = vunpack.c.l.b16 %v83
    %v245 = vunpack.c.l.b16 %v84
    %v246 = vunpack.c.l.b16 %v85
    %v247 = vunpack.c.l.b16 %v86
    %v248 = vunpack.c.l.b16 %v87
    %v249 = vunpack.c.l.b16 %v88
    %v250 = vunpack.c.l.b16 %v89
    %v251 = vunpack.c.l.b16 %v90
    %v252 = vunpack.c.l.b16 %v91
    %v253 = vunpack.c.l.b16 %v92
    %v254 = vunpack.c.l.b16 %v93
    %v255 = vunpack.c.l.b16 %v94
    %v256 = vunpack.c.l.b16 %v95
    %v257 = vunpack.c.l.b16 %v96
    %v258 = vunpack.c.l.b16 %v97
    %v259 = vunpack.c.l.b16 %v98
    %v260 = vunpack.c.l.b16 %v99
    %v261 = vunpack.c.l.b16 %v100
    %v262 = vunpack.c.l.b16 %v101
    %v263 = vunpack.c.l.b16 %v102
    %v264 = vunpack.c.l.b16 %v103
    %v265 = vunpack.c.l.b16 %v104
    %v266 = vunpack.c.l.b16 %v105
    %v267 = vunpack.c.l.b16 %v106
    %v268 = vunpack.c.l.b16 %v107
    %v269 = vunpack.c.l.b16 %v108
    %v270 = vunpack.c.l.b16 %v109
    %v271 = vunpack.c.l.b16 %v110
    %v272 = vpack.c.b16 %v209, %v208
    %v273 = vpack.c.b16 %v211, %v210
    %v274 = vpack.c.b16 %v213, %v212
    %v275 = vpack.c.b16 %v215, %v214
    %v276 = vpack.c.b16 %v217, %v216
    %v277 = vpack.c.b16 %v219, %v218
    %v278 = vpack.c.b16 %v221, %v220
    %v279 = vpack.c.b16 %v223, %v222
    %v280 = vpack.c.b16 %v225, %v224
    %v281 = vpack.c.b16 %v227, %v226
    %v282 = vpack.c.b16 %v229, %v228
    %v283 = vpack.c.b16 %v231, %v230
    %v284 = vpack.c.b16 %v233, %v232
    %v285 = vpack.c.b16 %v235, %v234
    %v286 = vpack.c.b16 %v237, %v236
    %v287 = vpack.c.b16 %v239, %v238
    %v288 = vpack.c.b16 %v241, %v240
    %v289 = vpack.c.b16 %v243, %v242
    %v290 = vpack.c.b16 %v245, %v244
    %v291 = vpack.c.b16 %v247, %v246
    %v292 = vpack.c.b16 %v249, %v248
    %v293 = vpack.c.b16 %v251, %v250
    %v294 = vpack.c.b16 %v253, %v252
    %v295 = vpack.c.b16 %v255, %v254
    %v296 = vpack.c.b16 %v257, %v256
    %v297 = vpack.c.b16 %v259, %v258
    %v298 = vpack.c.b16 %v261, %v260
    %v299 = vpack.c.b16 %v263, %v262
    %v300 = vpack.c.b16 %v265, %v264
    %v301 = vpack.c.b16 %v267, %v266
    %v302 = vpack.c.b16 %v269, %v268
    %v303 = vpack.c.b16 %v271, %v270
    %336 = vmatprep.subr.bf16.mxu0 0
    %337 = vmatpush1.bf16.msra.mxu0 %v272
    %338 = vmatprep.subr.bf16.mxu0 0
    %339 = vmatpush1.bf16.msra.mxu0 %v273
    %340 = vmatprep.subr.bf16.mxu0 0
    %341 = vmatpush1.bf16.msra.mxu0 %v274
    %342 = vmatprep.subr.bf16.mxu0 0
    %343 = vmatpush1.bf16.msra.mxu0 %v275
    %344 = vmatprep.subr.bf16.mxu0 0
    %345 = vmatpush1.bf16.msra.mxu0 %v276
    %346 = vmatprep.subr.bf16.mxu0 0
    %347 = vmatpush1.bf16.msra.mxu0 %v277
    %348 = vmatprep.subr.bf16.mxu0 0
    %349 = vmatpush1.bf16.msra.mxu0 %v278
    %350 = vmatprep.subr.bf16.mxu0 0
    %351 = vmatpush1.bf16.msra.mxu0 %v279
    %352 = vmatprep.subr.bf16.mxu0 0
    %353 = vmatpush1.bf16.msra.mxu0 %v280
    %354 = vmatprep.subr.bf16.mxu0 0
    %355 = vmatpush1.bf16.msra.mxu0 %v281
    %356 = vmatprep.subr.bf16.mxu0 0
    %357 = vmatpush1.bf16.msra.mxu0 %v282
    %358 = vmatprep.subr.bf16.mxu0 0
    %359 = vmatpush1.bf16.msra.mxu0 %v283
    %360 = vmatprep.subr.bf16.mxu0 0
    %361 = vmatpush1.bf16.msra.mxu0 %v284
    %362 = vmatprep.subr.bf16.mxu0 0
    %363 = vmatpush1.bf16.msra.mxu0 %v285
    %364 = vmatprep.subr.bf16.mxu0 0
    %365 = vmatpush1.bf16.msra.mxu0 %v286
    %366 = vmatprep.subr.bf16.mxu0 0
    %367 = vmatpush1.bf16.msra.mxu0 %v287
    %368 = vmatprep.mubr.bf16.mxu0 %v135
    %369 = vmatmul.mubr.bf16.gmra.mrb[0].mxu0 %v134
    %v370 = vpop.f32.mrb[0].mxu0
    %v371 = vadd.f32 %v142, %v370
    %v372 = vpop.f32.mrb[0].mxu0
    %v373 = vpop.f32.mrb[0].mxu0
    %v374 = vpop.f32.mrb[0].mxu0
    %375 = vdwg.mxu0
    %376 = vmatprep.subr.bf16.mxu0 0
    %377 = vmatpush1.bf16.msra.mxu0 %v288
    %378 = vmatprep.subr.bf16.mxu0 0
    %379 = vmatpush1.bf16.msra.mxu0 %v289
    %380 = vmatprep.subr.bf16.mxu0 0
    %381 = vmatpush1.bf16.msra.mxu0 %v290
    %382 = vmatprep.subr.bf16.mxu0 0
    %383 = vmatpush1.bf16.msra.mxu0 %v291
    %384 = vmatprep.subr.bf16.mxu0 0
    %385 = vmatpush1.bf16.msra.mxu0 %v292
    %386 = vmatprep.subr.bf16.mxu0 0
    %387 = vmatpush1.bf16.msra.mxu0 %v293
    %388 = vmatprep.subr.bf16.mxu0 0
    %389 = vmatpush1.bf16.msra.mxu0 %v294
    %390 = vmatprep.subr.bf16.mxu0 0
    %391 = vmatpush1.bf16.msra.mxu0 %v295
    %392 = vmatprep.subr.bf16.mxu0 0
    %393 = vmatpush1.bf16.msra.mxu0 %v296
    %394 = vmatprep.subr.bf16.mxu0 0
    %395 = vmatpush1.bf16.msra.mxu0 %v297
    %396 = vmatprep.subr.bf16.mxu0 0
    %397 = vmatpush1.bf16.msra.mxu0 %v298
    %398 = vmatprep.subr.bf16.mxu0 0
    %399 = vmatpush1.bf16.msra.mxu0 %v299
    %400 = vmatprep.subr.bf16.mxu0 0
    %401 = vmatpush1.bf16.msra.mxu0 %v300
    %402 = vmatprep.subr.bf16.mxu0 0
    %403 = vmatpush1.bf16.msra.mxu0 %v301
    %404 = vmatprep.subr.bf16.mxu0 0
    %405 = vmatpush1.bf16.msra.mxu0 %v302
    %406 = vmatprep.subr.bf16.mxu0 0
    %407 = vmatpush1.bf16.msra.mxu0 %v303
    %408 = vmatprep.mubr.bf16.mxu0 %v137
    %409 = vmatmul.mubr.bf16.gmra.mrb[0].mxu0 %v136
    %v410 = vpop.f32.mrb[0].mxu0
    %v411 = vadd.f32 %v371, %v410
    %v412 = vpop.f32.mrb[0].mxu0
    %v413 = vpop.f32.mrb[0].mxu0
    %v414 = vpop.f32.mrb[0].mxu0
    %415 = vdwg.mxu0
    %v416 = vmax.f32 %v411, 0.0
    %v417 = vld [vmem:[%s3] sm:$0xf]
    %v418 = vld [vmem:[%s3 + $0x4] sm:$0xf]
    %v419 = vld [vmem:[%s3 + $0x8] sm:$0xf]
    %v420 = vld [vmem:[%s3 + $0xc] sm:$0xf]
    %v421 = vld [vmem:[%s3 + $0x10] sm:$0xf]
    %v422 = vld [vmem:[%s3 + $0x14] sm:$0xf]
    %v423 = vld [vmem:[%s3 + $0x18] sm:$0xf]
    %v424 = vld [vmem:[%s3 + $0x1c] sm:$0xf]
    %v425 = vld [vmem:[%s3 + $0x20] sm:$0xf]
    %v426 = vld [vmem:[%s3 + $0x24] sm:$0xf]
    %v427 = vld [vmem:[%s3 + $0x28] sm:$0xf]
    %v428 = vld [vmem:[%s3 + $0x2c] sm:$0xf]
    %v429 = vld [vmem:[%s3 + $0x30] sm:$0xf]
    %v430 = vld [vmem:[%s3 + $0x34] sm:$0xf]
    %v431 = vld [vmem:[%s3 + $0x38] sm:$0xf]
    %v432 = vld [vmem:[%s3 + $0x3c] sm:$0xf]
    %v433 = vld [vmem:[%s4] sm:$0x1]
    %v434 = vpack.c.bf16 %v416, %v416
    %v436 = vlaneseq
    %v437 = vshrl.u32 %v436, 7
    %v438 = vsub.s32 0, %v437
    %v439 = vrot.slane %v433, %v438
    %v457 = vunpack.c.l.b16 %v417
    %v458 = vunpack.c.l.b16 %v418
    %v459 = vunpack.c.l.b16 %v419
    %v460 = vunpack.c.l.b16 %v420
    %v461 = vunpack.c.l.b16 %v421
    %v462 = vunpack.c.l.b16 %v422
    %v463 = vunpack.c.l.b16 %v423
    %v464 = vunpack.c.l.b16 %v424
    %v465 = vunpack.c.l.b16 %v425
    %v466 = vunpack.c.l.b16 %v426
    %v467 = vunpack.c.l.b16 %v427
    %v468 = vunpack.c.l.b16 %v428
    %v469 = vunpack.c.l.b16 %v429
    %v470 = vunpack.c.l.b16 %v430
    %v471 = vunpack.c.l.b16 %v431
    %v472 = vunpack.c.l.b16 %v432
    %v473 = vpack.c.b16 %v458, %v457
    %v474 = vpack.c.b16 %v460, %v459
    %v475 = vpack.c.b16 %v462, %v461
    %v476 = vpack.c.b16 %v464, %v463
    %v477 = vpack.c.b16 %v466, %v465
    %v478 = vpack.c.b16 %v468, %v467
    %v479 = vpack.c.b16 %v470, %v469
    %v480 = vpack.c.b16 %v472, %v471
    %489 = vmatprep.subr.bf16.mxu0 0
    %490 = vmatpush1.bf16.msra.mxu0 %v473
    %491 = vmatprep.subr.bf16.mxu0 0
    %492 = vmatpush1.bf16.msra.mxu0 %v474
    %493 = vmatprep.subr.bf16.mxu0 0
    %494 = vmatpush1.bf16.msra.mxu0 %v475
    %495 = vmatprep.subr.bf16.mxu0 0
    %496 = vmatpush1.bf16.msra.mxu0 %v476
    %497 = vmatprep.subr.bf16.mxu0 0
    %498 = vmatpush1.bf16.msra.mxu0 %v477
    %499 = vmatprep.subr.bf16.mxu0 0
    %500 = vmatpush1.bf16.msra.mxu0 %v478
    %501 = vmatprep.subr.bf16.mxu0 0
    %502 = vmatpush1.bf16.msra.mxu0 %v479
    %503 = vmatprep.subr.bf16.mxu0 0
    %504 = vmatpush1.bf16.msra.mxu0 %v480
    %505 = vmatprep.subr.bf16.mxu0 0
    %506 = vmatpush1.bf16.msra.mxu0 0
    %507 = vmatprep.subr.bf16.mxu0 0
    %508 = vmatpush1.bf16.msra.mxu0 0
    %509 = vmatprep.subr.bf16.mxu0 0
    %510 = vmatpush1.bf16.msra.mxu0 0
    %511 = vmatprep.subr.bf16.mxu0 0
    %512 = vmatpush1.bf16.msra.mxu0 0
    %513 = vmatprep.subr.bf16.mxu0 0
    %514 = vmatpush1.bf16.msra.mxu0 0
    %515 = vmatprep.subr.bf16.mxu0 0
    %516 = vmatpush1.bf16.msra.mxu0 0
    %517 = vmatprep.subr.bf16.mxu0 0
    %518 = vmatpush1.bf16.msra.mxu0 0
    %519 = vmatprep.subr.bf16.mxu0 0
    %520 = vmatpush1.bf16.msra.mxu0 0
    %521 = vmatprep.mubr.bf16.mxu0 0
    %522 = vmatmul.mubr.bf16.gmra.mrb[0].mxu0 %v434
    %v523 = vpop.f32.mrb[0].mxu0
    %v524 = vadd.f32 %v439, %v523
    %v525 = vpop.f32.mrb[0].mxu0
    %v526 = vpop.f32.mrb[0].mxu0
    %v527 = vpop.f32.mrb[0].mxu0
    %528 = vdwg.mxu0
    %v529 = vmax.f32 %v524, 0.0
    %v530 = vld [vmem:[%s5] sm:$0xf]
    %v531 = vld [vmem:[%s5 + $0x4] sm:$0xf]
    %v532 = vld [vmem:[%s5 + $0x8] sm:$0xf]
    %v533 = vld [vmem:[%s5 + $0xc] sm:$0xf]
    %v534 = vld [vmem:[%s5 + $0x10] sm:$0xf]
    %v535 = vld [vmem:[%s5 + $0x14] sm:$0xf]
    %v536 = vld [vmem:[%s5 + $0x18] sm:$0xf]
    %v537 = vld [vmem:[%s5 + $0x1c] sm:$0xf]
    %v538 = vld [vmem:[%s5 + $0x20] sm:$0xf]
    %v539 = vld [vmem:[%s5 + $0x24] sm:$0xf]
    %v540 = vld [vmem:[%s5 + $0x28] sm:$0xf]
    %v541 = vld [vmem:[%s5 + $0x2c] sm:$0xf]
    %v542 = vld [vmem:[%s5 + $0x30] sm:$0xf]
    %v543 = vld [vmem:[%s5 + $0x34] sm:$0xf]
    %v544 = vld [vmem:[%s5 + $0x38] sm:$0xf]
    %v545 = vld [vmem:[%s5 + $0x3c] sm:$0xf]
    %v546 = vld [vmem:[%s6] sm:$0x1]
    %v547 = vpack.c.bf16 %v529, %v529
    %v549 = vlaneseq
    %v550 = vshrl.u32 %v549, 7
    %v551 = vsub.s32 0, %v550
    %v552 = vrot.slane %v546, %v551
    %v570 = vunpack.c.l.b16 %v530
    %v571 = vunpack.c.l.b16 %v531
    %v572 = vunpack.c.l.b16 %v532
    %v573 = vunpack.c.l.b16 %v533
    %v574 = vunpack.c.l.b16 %v534
    %v575 = vunpack.c.l.b16 %v535
    %v576 = vunpack.c.l.b16 %v536
    %v577 = vunpack.c.l.b16 %v537
    %v578 = vunpack.c.l.b16 %v538
    %v579 = vunpack.c.l.b16 %v539
    %v580 = vunpack.c.l.b16 %v540
    %v581 = vunpack.c.l.b16 %v541
    %v582 = vunpack.c.l.b16 %v542
    %v583 = vunpack.c.l.b16 %v543
    %v584 = vunpack.c.l.b16 %v544
    %v585 = vunpack.c.l.b16 %v545
    %v586 = vpack.c.b16 %v571, %v570
    %v587 = vpack.c.b16 %v573, %v572
    %v588 = vpack.c.b16 %v575, %v574
    %v589 = vpack.c.b16 %v577, %v576
    %v590 = vpack.c.b16 %v579, %v578
    %v591 = vpack.c.b16 %v581, %v580
    %v592 = vpack.c.b16 %v583, %v582
    %v593 = vpack.c.b16 %v585, %v584
    %602 = vmatprep.subr.bf16.mxu0 0
    %603 = vmatpush1.bf16.msra.mxu0 %v586
    %604 = vmatprep.subr.bf16.mxu0 0
    %605 = vmatpush1.bf16.msra.mxu0 %v587
    %606 = vmatprep.subr.bf16.mxu0 0
    %607 = vmatpush1.bf16.msra.mxu0 %v588
    %608 = vmatprep.subr.bf16.mxu0 0
    %609 = vmatpush1.bf16.msra.mxu0 %v589
    %610 = vmatprep.subr.bf16.mxu0 0
    %611 = vmatpush1.bf16.msra.mxu0 %v590
    %612 = vmatprep.subr.bf16.mxu0 0
    %613 = vmatpush1.bf16.msra.mxu0 %v591
    %614 = vmatprep.subr.bf16.mxu0 0
    %615 = vmatpush1.bf16.msra.mxu0 %v592
    %616 = vmatprep.subr.bf16.mxu0 0
    %617 = vmatpush1.bf16.msra.mxu0 %v593
    %618 = vmatprep.subr.bf16.mxu0 0
    %619 = vmatpush1.bf16.msra.mxu0 0
    %620 = vmatprep.subr.bf16.mxu0 0
    %621 = vmatpush1.bf16.msra.mxu0 0
    %622 = vmatprep.subr.bf16.mxu0 0
    %623 = vmatpush1.bf16.msra.mxu0 0
    %624 = vmatprep.subr.bf16.mxu0 0
    %625 = vmatpush1.bf16.msra.mxu0 0
    %626 = vmatprep.subr.bf16.mxu0 0
    %627 = vmatpush1.bf16.msra.mxu0 0
    %628 = vmatprep.subr.bf16.mxu0 0
    %629 = vmatpush1.bf16.msra.mxu0 0
    %630 = vmatprep.subr.bf16.mxu0 0
    %631 = vmatpush1.bf16.msra.mxu0 0
    %632 = vmatprep.subr.bf16.mxu0 0
    %633 = vmatpush1.bf16.msra.mxu0 0
    %634 = vmatprep.mubr.bf16.mxu0 0
    %635 = vmatmul.mubr.bf16.gmra.mrb[0].mxu0 %v547
    %v636 = vpop.f32.mrb[0].mxu0
    %v637 = vadd.f32 %v552, %v636
    %v638 = vpop.f32.mrb[0].mxu0
    %v639 = vpop.f32.mrb[0].mxu0
    %v640 = vpop.f32.mrb[0].mxu0
    %641 = vdwg.mxu0
    %v642 = vld [vmem:[%s7] sm:$0xf]
    %v643 = vld [vmem:[%s7 + $0x4] sm:$0xf]
    %v644 = vld [vmem:[%s7 + $0x8] sm:$0xf]
    %v645 = vld [vmem:[%s7 + $0xc] sm:$0xf]
    %v646 = vld [vmem:[%s7 + $0x10] sm:$0xf]
    %v647 = vld [vmem:[%s7 + $0x14] sm:$0xf]
    %v648 = vld [vmem:[%s7 + $0x18] sm:$0xf]
    %v649 = vld [vmem:[%s7 + $0x1c] sm:$0xf]
    %v650 = vld [vmem:[%s7 + $0x20] sm:$0xf]
    %v651 = vld [vmem:[%s7 + $0x24] sm:$0xf]
    %v652 = vld [vmem:[%s7 + $0x28] sm:$0xf]
    %v653 = vld [vmem:[%s7 + $0x2c] sm:$0xf]
    %v654 = vld [vmem:[%s7 + $0x30] sm:$0xf]
    %v655 = vld [vmem:[%s7 + $0x34] sm:$0xf]
    %v656 = vld [vmem:[%s7 + $0x38] sm:$0xf]
    %v657 = vld [vmem:[%s7 + $0x3c] sm:$0xf]
    %v658 = vld [vmem:[%s8] sm:$0x1]
    %v659 = vpack.c.bf16 %v637, %v637
    %v661 = vlaneseq
    %v662 = vshrl.u32 %v661, 7
    %v663 = vsub.s32 0, %v662
    %v664 = vrot.slane %v658, %v663
    %v682 = vunpack.c.l.b16 %v642
    %v683 = vunpack.c.l.b16 %v643
    %v684 = vunpack.c.l.b16 %v644
    %v685 = vunpack.c.l.b16 %v645
    %v686 = vunpack.c.l.b16 %v646
    %v687 = vunpack.c.l.b16 %v647
    %v688 = vunpack.c.l.b16 %v648
    %v689 = vunpack.c.l.b16 %v649
    %v690 = vunpack.c.l.b16 %v650
    %v691 = vunpack.c.l.b16 %v651
    %v692 = vunpack.c.l.b16 %v652
    %v693 = vunpack.c.l.b16 %v653
    %v694 = vunpack.c.l.b16 %v654
    %v695 = vunpack.c.l.b16 %v655
    %v696 = vunpack.c.l.b16 %v656
    %v697 = vunpack.c.l.b16 %v657
    %v698 = vpack.c.b16 %v683, %v682
    %v699 = vpack.c.b16 %v685, %v684
    %v700 = vpack.c.b16 %v687, %v686
    %v701 = vpack.c.b16 %v689, %v688
    %v702 = vpack.c.b16 %v691, %v690
    %v703 = vpack.c.b16 %v693, %v692
    %v704 = vpack.c.b16 %v695, %v694
    %v705 = vpack.c.b16 %v697, %v696
    %714 = vmatprep.subr.bf16.mxu0 0
    %715 = vmatpush1.bf16.msra.mxu0 %v698
    %716 = vmatprep.subr.bf16.mxu0 0
    %717 = vmatpush1.bf16.msra.mxu0 %v699
    %718 = vmatprep.subr.bf16.mxu0 0
    %719 = vmatpush1.bf16.msra.mxu0 %v700
    %720 = vmatprep.subr.bf16.mxu0 0
    %721 = vmatpush1.bf16.msra.mxu0 %v701
    %722 = vmatprep.subr.bf16.mxu0 0
    %723 = vmatpush1.bf16.msra.mxu0 %v702
    %724 = vmatprep.subr.bf16.mxu0 0
    %725 = vmatpush1.bf16.msra.mxu0 %v703
    %726 = vmatprep.subr.bf16.mxu0 0
    %727 = vmatpush1.bf16.msra.mxu0 %v704
    %728 = vmatprep.subr.bf16.mxu0 0
    %729 = vmatpush1.bf16.msra.mxu0 %v705
    %730 = vmatprep.subr.bf16.mxu0 0
    %731 = vmatpush1.bf16.msra.mxu0 0
    %732 = vmatprep.subr.bf16.mxu0 0
    %733 = vmatpush1.bf16.msra.mxu0 0
    %734 = vmatprep.subr.bf16.mxu0 0
    %735 = vmatpush1.bf16.msra.mxu0 0
    %736 = vmatprep.subr.bf16.mxu0 0
    %737 = vmatpush1.bf16.msra.mxu0 0
    %738 = vmatprep.subr.bf16.mxu0 0
    %739 = vmatpush1.bf16.msra.mxu0 0
    %740 = vmatprep.subr.bf16.mxu0 0
    %741 = vmatpush1.bf16.msra.mxu0 0
    %742 = vmatprep.subr.bf16.mxu0 0
    %743 = vmatpush1.bf16.msra.mxu0 0
    %744 = vmatprep.subr.bf16.mxu0 0
    %745 = vmatpush1.bf16.msra.mxu0 0
    %746 = vmatprep.mubr.bf16.mxu0 0
    %747 = vmatmul.mubr.bf16.gmra.mrb[0].mxu0 %v659
    %v748 = vpop.f32.mrb[0].mxu0
    %v749 = vadd.f32 %v664, %v748
    %v750 = vpop.f32.mrb[0].mxu0
    %v751 = vpop.f32.mrb[0].mxu0
    %v752 = vpop.f32.mrb[0].mxu0
    %753 = vdwg.mxu0
    %v754 = vmax.f32 %v749, 0.0
    %v755 = vld [vmem:[%s9] sm:$0xf]
    %v756 = vld [vmem:[%s9 + $0x4] sm:$0xf]
    %v757 = vld [vmem:[%s9 + $0x8] sm:$0xf]
    %v758 = vld [vmem:[%s9 + $0xc] sm:$0xf]
    %v759 = vld [vmem:[%s9 + $0x10] sm:$0xf]
    %v760 = vld [vmem:[%s9 + $0x14] sm:$0xf]
    %v761 = vld [vmem:[%s9 + $0x18] sm:$0xf]
    %v762 = vld [vmem:[%s9 + $0x1c] sm:$0xf]
    %v763 = vld [vmem:[%s9 + $0x20] sm:$0xf]
    %v764 = vld [vmem:[%s9 + $0x24] sm:$0xf]
    %v765 = vld [vmem:[%s9 + $0x28] sm:$0xf]
    %v766 = vld [vmem:[%s9 + $0x2c] sm:$0xf]
    %v767 = vld [vmem:[%s9 + $0x30] sm:$0xf]
    %v768 = vld [vmem:[%s9 + $0x34] sm:$0xf]
    %v769 = vld [vmem:[%s9 + $0x38] sm:$0xf]
    %v770 = vld [vmem:[%s9 + $0x3c] sm:$0xf]
    %v771 = vld [vmem:[%s10] sm:$0x1]
    %v772 = vpack.c.bf16 %v754, %v754
    %v774 = vlaneseq
    %v775 = vshrl.u32 %v774, 7
    %v776 = vsub.s32 0, %v775
    %v777 = vrot.slane %v771, %v776
    %v795 = vunpack.c.l.b16 %v755
    %v796 = vunpack.c.l.b16 %v756
    %v797 = vunpack.c.l.b16 %v757
    %v798 = vunpack.c.l.b16 %v758
    %v799 = vunpack.c.l.b16 %v759
    %v800 = vunpack.c.l.b16 %v760
    %v801 = vunpack.c.l.b16 %v761
    %v802 = vunpack.c.l.b16 %v762
    %v803 = vunpack.c.l.b16 %v763
    %v804 = vunpack.c.l.b16 %v764
    %v805 = vunpack.c.l.b16 %v765
    %v806 = vunpack.c.l.b16 %v766
    %v807 = vunpack.c.l.b16 %v767
    %v808 = vunpack.c.l.b16 %v768
    %v809 = vunpack.c.l.b16 %v769
    %v810 = vunpack.c.l.b16 %v770
    %v811 = vpack.c.b16 %v796, %v795
    %v812 = vpack.c.b16 %v798, %v797
    %v813 = vpack.c.b16 %v800, %v799
    %v814 = vpack.c.b16 %v802, %v801
    %v815 = vpack.c.b16 %v804, %v803
    %v816 = vpack.c.b16 %v806, %v805
    %v817 = vpack.c.b16 %v808, %v807
    %v818 = vpack.c.b16 %v810, %v809
    %827 = vmatprep.subr.bf16.mxu0 0
    %828 = vmatpush1.bf16.msra.mxu0 %v811
    %829 = vmatprep.subr.bf16.mxu0 0
    %830 = vmatpush1.bf16.msra.mxu0 %v812
    %831 = vmatprep.subr.bf16.mxu0 0
    %832 = vmatpush1.bf16.msra.mxu0 %v813
    %833 = vmatprep.subr.bf16.mxu0 0
    %834 = vmatpush1.bf16.msra.mxu0 %v814
    %835 = vmatprep.subr.bf16.mxu0 0
    %836 = vmatpush1.bf16.msra.mxu0 %v815
    %837 = vmatprep.subr.bf16.mxu0 0
    %838 = vmatpush1.bf16.msra.mxu0 %v816
    %839 = vmatprep.subr.bf16.mxu0 0
    %840 = vmatpush1.bf16.msra.mxu0 %v817
    %841 = vmatprep.subr.bf16.mxu0 0
    %842 = vmatpush1.bf16.msra.mxu0 %v818
    %843 = vmatprep.subr.bf16.mxu0 0
    %844 = vmatpush1.bf16.msra.mxu0 0
    %845 = vmatprep.subr.bf16.mxu0 0
    %846 = vmatpush1.bf16.msra.mxu0 0
    %847 = vmatprep.subr.bf16.mxu0 0
    %848 = vmatpush1.bf16.msra.mxu0 0
    %849 = vmatprep.subr.bf16.mxu0 0
    %850 = vmatpush1.bf16.msra.mxu0 0
    %851 = vmatprep.subr.bf16.mxu0 0
    %852 = vmatpush1.bf16.msra.mxu0 0
    %853 = vmatprep.subr.bf16.mxu0 0
    %854 = vmatpush1.bf16.msra.mxu0 0
    %855 = vmatprep.subr.bf16.mxu0 0
    %856 = vmatpush1.bf16.msra.mxu0 0
    %857 = vmatprep.subr.bf16.mxu0 0
    %858 = vmatpush1.bf16.msra.mxu0 0
    %859 = vmatprep.mubr.bf16.mxu0 0
    %860 = vmatmul.mubr.bf16.gmra.mrb[0].mxu0 %v772
    %v861 = vpop.f32.mrb[0].mxu0
    %v862 = vadd.f32 %v777, %v861
    %v863 = vpop.f32.mrb[0].mxu0
    %v864 = vpop.f32.mrb[0].mxu0
    %v865 = vpop.f32.mrb[0].mxu0
    %866 = vdwg.mxu0
    %v867 = vmax.f32 %v862, 0.0
    %v868 = vld [vmem:[%s11] sm:$0xf]
    %v869 = vld [vmem:[%s11 + $0x4] sm:$0xf]
    %v870 = vld [vmem:[%s11 + $0x8] sm:$0xf]
    %v871 = vld [vmem:[%s11 + $0xc] sm:$0xf]
    %v872 = vld [vmem:[%s11 + $0x10] sm:$0xf]
    %v873 = vld [vmem:[%s11 + $0x14] sm:$0xf]
    %v874 = vld [vmem:[%s11 + $0x18] sm:$0xf]
    %v875 = vld [vmem:[%s11 + $0x1c] sm:$0xf]
    %v876 = vld [vmem:[%s11 + $0x20] sm:$0xf]
    %v877 = vld [vmem:[%s11 + $0x24] sm:$0xf]
    %v878 = vld [vmem:[%s11 + $0x28] sm:$0xf]
    %v879 = vld [vmem:[%s11 + $0x2c] sm:$0xf]
    %v880 = vld [vmem:[%s11 + $0x30] sm:$0xf]
    %v881 = vld [vmem:[%s11 + $0x34] sm:$0xf]
    %v882 = vld [vmem:[%s11 + $0x38] sm:$0xf]
    %v883 = vld [vmem:[%s11 + $0x3c] sm:$0xf]
    %v884 = vld [vmem:[%s12] sm:$0x1]
    %v885 = vpack.c.bf16 %v867, %v867
    %v887 = vlaneseq
    %v888 = vshrl.u32 %v887, 7
    %v889 = vsub.s32 0, %v888
    %v890 = vrot.slane %v884, %v889
    %v908 = vunpack.c.l.b16 %v868
    %v909 = vunpack.c.l.b16 %v869
    %v910 = vunpack.c.l.b16 %v870
    %v911 = vunpack.c.l.b16 %v871
    %v912 = vunpack.c.l.b16 %v872
    %v913 = vunpack.c.l.b16 %v873
    %v914 = vunpack.c.l.b16 %v874
    %v915 = vunpack.c.l.b16 %v875
    %v916 = vunpack.c.l.b16 %v876
    %v917 = vunpack.c.l.b16 %v877
    %v918 = vunpack.c.l.b16 %v878
    %v919 = vunpack.c.l.b16 %v879
    %v920 = vunpack.c.l.b16 %v880
    %v921 = vunpack.c.l.b16 %v881
    %v922 = vunpack.c.l.b16 %v882
    %v923 = vunpack.c.l.b16 %v883
    %v924 = vpack.c.b16 %v909, %v908
    %v925 = vpack.c.b16 %v911, %v910
    %v926 = vpack.c.b16 %v913, %v912
    %v927 = vpack.c.b16 %v915, %v914
    %v928 = vpack.c.b16 %v917, %v916
    %v929 = vpack.c.b16 %v919, %v918
    %v930 = vpack.c.b16 %v921, %v920
    %v931 = vpack.c.b16 %v923, %v922
    %940 = vmatprep.subr.bf16.mxu0 0
    %941 = vmatpush1.bf16.msra.mxu0 %v924
    %942 = vmatprep.subr.bf16.mxu0 0
    %943 = vmatpush1.bf16.msra.mxu0 %v925
    %944 = vmatprep.subr.bf16.mxu0 0
    %945 = vmatpush1.bf16.msra.mxu0 %v926
    %946 = vmatprep.subr.bf16.mxu0 0
    %947 = vmatpush1.bf16.msra.mxu0 %v927
    %948 = vmatprep.subr.bf16.mxu0 0
    %949 = vmatpush1.bf16.msra.mxu0 %v928
    %950 = vmatprep.subr.bf16.mxu0 0
    %951 = vmatpush1.bf16.msra.mxu0 %v929
    %952 = vmatprep.subr.bf16.mxu0 0
    %953 = vmatpush1.bf16.msra.mxu0 %v930
    %954 = vmatprep.subr.bf16.mxu0 0
    %955 = vmatpush1.bf16.msra.mxu0 %v931
    %956 = vmatprep.subr.bf16.mxu0 0
    %957 = vmatpush1.bf16.msra.mxu0 0
    %958 = vmatprep.subr.bf16.mxu0 0
    %959 = vmatpush1.bf16.msra.mxu0 0
    %960 = vmatprep.subr.bf16.mxu0 0
    %961 = vmatpush1.bf16.msra.mxu0 0
    %962 = vmatprep.subr.bf16.mxu0 0
    %963 = vmatpush1.bf16.msra.mxu0 0
    %964 = vmatprep.subr.bf16.mxu0 0
    %965 = vmatpush1.bf16.msra.mxu0 0
    %966 = vmatprep.subr.bf16.mxu0 0
    %967 = vmatpush1.bf16.msra.mxu0 0
    %968 = vmatprep.subr.bf16.mxu0 0
    %969 = vmatpush1.bf16.msra.mxu0 0
    %970 = vmatprep.subr.bf16.mxu0 0
    %971 = vmatpush1.bf16.msra.mxu0 0
    %972 = vmatprep.mubr.bf16.mxu0 0
    %973 = vmatmul.mubr.bf16.gmra.mrb[0].mxu0 %v885
    %v974 = vpop.f32.mrb[0].mxu0
    %v975 = vadd.f32 %v890, %v974
    %v976 = vpop.f32.mrb[0].mxu0
    %v977 = vpop.f32.mrb[0].mxu0
    %v978 = vpop.f32.mrb[0].mxu0
    %979 = vdwg.mxu0
    %v980 = vsub.f32 0.0, %v975
    %v981 = vmul.f32 %v980, 1.442695
    %v982 = vpow.pop %v981
    %v983 = vadd.f32 %v982, 1.0
    %v984 = vrcp.pop %v983
    %v985 = vmul.f32 1.0, %v984
    %986 = vst [vmem:[#allocation2] sm:$0x3] %v985
    // Predicated region
    $region54: #{_lambda_.5} parent=1 // pred_check
      _
    $region55: #{_lambda_.5} parent=1 // pred_check_branch
      %988 = sbr.rel (0) target = $region57
    $region56: #{_lambda_.5} parent=1 // pred_region
      %s990 = ssub.s32 32, 32
      %991 = vsyncadd [#allocation3], %s990
      %s993 = sshll.u32 [#allocation2], 4
      %s994 = int_to_ptr.vmem [resolvable:$true] %s993
      %996 = dma.vmem_to_hbm [thread:$0]  %s994, 32, %s13, [#allocation3]
    $region57: #{_lambda_.5} parent=1 // pred_fallthru
      _
    // Predicated region
    $region58: #{_lambda_.5} parent=1 // pred_check
      _
    $region59: #{_lambda_.5} parent=1 // pred_check_branch
      %998 = sbr.rel (0) target = $region61
    $region60: #{_lambda_.5} parent=1 // pred_region
      %999 = dma.done [#allocation3], 32
    $region61: #{_lambda_.5} parent=1 // pred_fallthru
      _
    %1000 = vsyncpa [#allocation3], 1

</llo_original>
